<compile_context>
chip_gen: v6e
topology: v6e:2x2x1
jax: 0.10.0
libtpu: 0.0.40
codegen_flags: <defaults>
</compile_context>

<pallas_src>
import functools

import jax
import jax.numpy as jnp
from jax.experimental import pallas as pl
from jax.experimental.pallas import tpu as pltpu


HIDDEN_PAD = 128  # lane-dense padded hidden width (real hidden = 64)

_VMEM = pl.BlockSpec(memory_space=pltpu.MemorySpace.VMEM)


# ----------------------------------------------------------------------------
# Fused Pallas kernel: 8 GCN blocks + pooling + MLP head, everything in VMEM
# ----------------------------------------------------------------------------
def _fused_gnn_kernel(
    a_ref, x_ref,
    w_in_ref, b_in_ref, g_in_ref, bt_in_ref,
    w_mid_ref, b_mid_ref, g_mid_ref, bt_mid_ref,
    w_out_ref, b_out_ref, g_out_ref, bt_out_ref,
    p_ref, w1_ref, b1_ref, w2_ref, b2_ref,
    o_ref,
    *, num_layers, hidden_real, input_dim):
    f32 = jnp.float32
    bf16 = jnp.bfloat16

    a = a_ref[...]                                  # (N, N) bf16, resident for all layers
    inv_h = 1.0 / float(hidden_real)

    def layer_norm(h):
        # h: (N, HP) f32. Columns >= hidden_real are exactly 0 (zero-padded W/b/gamma/beta),
        # so the sums only see the real features; variance is masked so (0 - mean)^2 of the
        # pad lanes never contaminates the statistics. Divisor is the REAL hidden size.
        lane = jax.lax.broadcasted_iota(jnp.int32, h.shape, 1)
        mask = (lane < hidden_real).astype(f32)
        mean = jnp.sum(h, axis=-1, keepdims=True) * inv_h
        centered = (h - mean) * mask
        var = jnp.sum(centered * centered, axis=-1, keepdims=True) * inv_h
        return centered * jax.lax.rsqrt(var + 1e-5)

    def gcn_ln_relu(xw_f32, b, gamma, beta):
        # A_hat @ (X W) + b  ->  LayerNorm  ->  ReLU   (bf16 MXU, f32 VPU elsewhere)
        h = jnp.dot(a, xw_f32.astype(bf16), preferred_element_type=f32) + b
        return jnp.maximum(layer_norm(h) * gamma + beta, 0.0)

    # ---- layer 0 (input conv) --------------------------------------------
    if input_dim == 1:
        # Degenerate K=1 MXU matmul replaced by a VPU broadcast multiply:
        # X @ W_in  ==  x (N,1) * w_in (1,HP).
        xw = x_ref[...] * w_in_ref[...]
    else:
        xw = jnp.dot(x_ref[...].astype(bf16), w_in_ref[...].astype(bf16),
                     preferred_element_type=f32)
    h = gcn_ln_relu(xw, b_in_ref[...], g_in_ref[...], bt_in_ref[...])

    # ---- layers 1 .. num_layers-2 (shared middle weights, residual on even) ----
    w_mid = w_mid_ref[...]                          # bf16 (HP, HP), loaded once
    b_mid, g_mid, bt_mid = b_mid_ref[...], g_mid_ref[...], bt_mid_ref[...]
    for i in range(1, num_layers - 1):              # short static trip count -> unrolled
        xw = jnp.dot(h.astype(bf16), w_mid, preferred_element_type=f32)
        hh = gcn_ln_relu(xw, b_mid, g_mid, bt_mid)
        h = hh + h if (i % 2 == 0) else hh

    # ---- last layer (output conv) ------------------------------------------
    xw = jnp.dot(h.astype(bf16), w_out_ref[...], preferred_element_type=f32)
    h = gcn_ln_relu(xw, b_out_ref[...], g_out_ref[...], bt_out_ref[...])

    # ---- head: global_mean_pool (P @ h) -> fc1 -> relu -> fc2 -> sigmoid ----
    pooled = jnp.dot(p_ref[...], h, preferred_element_type=f32)          # (G, HP)
    z = jnp.dot(pooled, w1_ref[...], preferred_element_type=f32) + b1_ref[...]
    z = jnp.maximum(z, 0.0)
    # TODO(synk): dropout(p=0.5) is identity at inference time; no RNG mask applied.
    logits = jnp.dot(z, w2_ref[...], preferred_element_type=f32) + b2_ref[...]
    o_ref[...] = jax.nn.sigmoid(logits)


# ----------------------------------------------------------------------------
# Wrapper: padding / dtype prep + single pallas_call
# ----------------------------------------------------------------------------
@functools.partial(jax.jit, static_argnames=("num_layers",))
def memory_efficient_gnn_forward(params, x, a_hat, pool_mat, num_layers=8):
    hidden = params["w_in"].shape[1]
    input_dim = params["w_in"].shape[0]
    hp = HIDDEN_PAD
    num_graphs = pool_mat.shape[0]
    out_dim = params["fc2_w"].shape[1]

    def pad_last(v):
        return jnp.pad(v, [(0, 0)] * (v.ndim - 1) + [(0, hp - v.shape[-1])])

    def row_vec(v):                       # (H,) -> zero-padded (1, HP)
        return pad_last(v.reshape(1, -1))

    # Zero-pad the hidden dim 64 -> 128 so node-feature tensors are lane-dense.
    # gamma/beta pads are ZERO, so padded feature columns stay exactly 0 in every layer.
    w_in = pad_last(params["w_in"]).astype(jnp.float32)
    w_mid = jnp.pad(params["w_mid"],
                    ((0, hp - hidden), (0, hp - hidden))).astype(jnp.bfloat16)
    w_out = jnp.pad(params["w_out"],
                    ((0, hp - hidden), (0, hp - hidden))).astype(jnp.bfloat16)
    fc1_w = jnp.pad(params["fc1_w"], ((0, hp - hidden), (0, 0)))

    kernel = functools.partial(_fused_gnn_kernel, num_layers=num_layers,
                               hidden_real=hidden, input_dim=input_dim)

    return pl.pallas_call(
        kernel,
        out_shape=jax.ShapeDtypeStruct((num_graphs, out_dim), jnp.float32),
        in_specs=[_VMEM] * 19,
        out_specs=_VMEM,
        compiler_params=pltpu.CompilerParams(vmem_limit_bytes=32 * 1024 * 1024),
    )(
        a_hat.astype(jnp.bfloat16), x,
        w_in, row_vec(params["b_in"]), row_vec(params["ln_in_g"]),
        row_vec(params["ln_in_b"]),
        w_mid, row_vec(params["b_mid"]), row_vec(params["ln_mid_g"]),
        row_vec(params["ln_mid_b"]),
        w_out, row_vec(params["b_out"]), row_vec(params["ln_out_g"]),
        row_vec(params["ln_out_b"]),
        pool_mat, fc1_w, params["fc1_b"].reshape(1, -1),
        params["fc2_w"], params["fc2_b"].reshape(1, -1),
    )


# ----------------------------------------------------------------------------
# Plain-JAX glue: params, dense normalized adjacency, mean-pool matrix
# ----------------------------------------------------------------------------
def init_params(key, input_dim=1, hidden_dim=64, output_dim=1):
    ks = jax.random.split(key, 6)
    s = 0.1
    return {
        "w_in": jax.random.normal(ks[0], (input_dim, hidden_dim), jnp.float32) * s,
        "b_in": jnp.zeros((hidden_dim,), jnp.float32),
        "w_mid": jax.random.normal(ks[1], (hidden_dim, hidden_dim), jnp.float32) * s,
        "b_mid": jnp.zeros((hidden_dim,), jnp.float32),
        "w_out": jax.random.normal(ks[2], (hidden_dim, hidden_dim), jnp.float32) * s,
        "b_out": jnp.zeros((hidden_dim,), jnp.float32),
        "ln_in_g": jnp.ones((hidden_dim,), jnp.float32),
        "ln_in_b": jnp.zeros((hidden_dim,), jnp.float32),
        "ln_mid_g": jnp.ones((hidden_dim,), jnp.float32),
        "ln_mid_b": jnp.zeros((hidden_dim,), jnp.float32),
        "ln_out_g": jnp.ones((hidden_dim,), jnp.float32),
        "ln_out_b": jnp.zeros((hidden_dim,), jnp.float32),
        "fc1_w": jax.random.normal(ks[3], (hidden_dim, 64), jnp.float32) * s,
        "fc1_b": jnp.zeros((64,), jnp.float32),
        "fc2_w": jax.random.normal(ks[4], (64, output_dim), jnp.float32) * s,
        "fc2_b": jnp.zeros((output_dim,), jnp.float32),
    }


def build_a_hat(edge_index, num_nodes):
    """Dense GCN-normalized adjacency with self loops."""
    src, dst = edge_index[0], edge_index[1]
    a = jnp.zeros((num_nodes, num_nodes), jnp.float32)
    a = a.at[dst, src].add(1.0)
    a = a + jnp.eye(num_nodes, dtype=jnp.float32)
    deg = jnp.sum(a, axis=1)
    d_inv_sqrt = jnp.where(deg > 0, 1.0 / jnp.sqrt(deg), 0.0)
    return a * d_inv_sqrt[:, None] * d_inv_sqrt[None, :]


def build_pool_matrix(batch, num_graphs):
    onehot = (batch[None, :] == jnp.arange(num_graphs)[:, None]).astype(jnp.float32)
    counts = jnp.maximum(jnp.sum(onehot, axis=1, keepdims=True), 1.0)
    return onehot / counts


# ----------------------------------------------------------------------------
# Pure-JAX reference mirroring the kernel's bf16-matmul / f32-LN math
# ----------------------------------------------------------------------------
def reference_forward(params, x, a_hat, pool_mat, num_layers=8):
    bf16, f32 = jnp.bfloat16, jnp.float32
    a = a_hat.astype(bf16)

    def ln(h, gamma, beta):
        mean = jnp.mean(h, axis=-1, keepdims=True)
        var = jnp.mean((h - mean) ** 2, axis=-1, keepdims=True)
        return (h - mean) * jax.lax.rsqrt(var + 1e-5) * gamma + beta

    def block(h_in, w, b, gamma, beta, first=False):
        if first:
            xw = h_in * w.reshape(1, -1)
        else:
            xw = jnp.dot(h_in.astype(bf16), w.astype(bf16), preferred_element_type=f32)
        h = jnp.dot(a, xw.astype(bf16), preferred_element_type=f32) + b
        return jnp.maximum(ln(h, gamma, beta), 0.0)

    h = block(x, params["w_in"], params["b_in"], params["ln_in_g"],
              params["ln_in_b"], first=True)
    for i in range(1, num_layers - 1):
        hh = block(h, params["w_mid"], params["b_mid"], params["ln_mid_g"],
                   params["ln_mid_b"])
        h = hh + h if (i % 2 == 0) else hh
    h = block(h, params["w_out"], params["b_out"], params["ln_out_g"],
              params["ln_out_b"])
    pooled = pool_mat @ h
    z = jnp.maximum(pooled @ params["fc1_w"] + params["fc1_b"], 0.0)
    return jax.nn.sigmoid(z @ params["fc2_w"] + params["fc2_b"])


# ----------------------------------------------------------------------------
# Example run
# ----------------------------------------------------------------------------
if __name__ == "__main__":
    key = jax.random.PRNGKey(0)
    k_param, k_x = jax.random.split(key)

    NUM_NODES = 64          # 2 graphs of 32 nodes each
    NODES_PER_GRAPH = 32
    NUM_GRAPHS = 2
    INPUT_DIM = 1

    params = init_params(k_param, input_dim=INPUT_DIM, hidden_dim=64, output_dim=1)

    x = jax.random.normal(k_x, (NUM_NODES, INPUT_DIM), jnp.float32)

    # deterministic ring graph per sub-graph, made symmetric
    edges = []
    for g in range(NUM_GRAPHS):
        base = g * NODES_PER_GRAPH
        for n in range(NODES_PER_GRAPH):
            u = base + n
            v = base + (n + 1) % NODES_PER_GRAPH
            edges.append((u, v))
            edges.append((v, u))
    edge_index = jnp.array(edges, dtype=jnp.int32).T  # (2, E)

    batch = jnp.concatenate([
        jnp.full((NODES_PER_GRAPH,), g, dtype=jnp.int32) for g in range(NUM_GRAPHS)
    ])

    a_hat = build_a_hat(edge_index, NUM_NODES)
    pool_mat = build_pool_matrix(batch, NUM_GRAPHS)

    out = memory_efficient_gnn_forward(params, x, a_hat, pool_mat, num_layers=8)
    out = jax.block_until_ready(out)

    ref = jax.block_until_ready(reference_forward(params, x, a_hat, pool_mat, num_layers=8))

    assert out.shape == (NUM_GRAPHS, 1)
    assert bool(jnp.all(jnp.isfinite(out)))
    assert bool(jnp.max(jnp.abs(out - ref)) < 5e-3), (out, ref)
    print("KERNEL_OK")
</pallas_src>

<mosaic_0001>
module attributes {stable_mosaic.version = 11 : i64} {
  func.func @_fused_gnn_kernel(%arg0: memref<64x64xbf16, #tpu.memory_space<vmem>>, %arg1: memref<64x1xf32, #tpu.memory_space<vmem>>, %arg2: memref<1x128xf32, #tpu.memory_space<vmem>>, %arg3: memref<1x128xf32, #tpu.memory_space<vmem>>, %arg4: memref<1x128xf32, #tpu.memory_space<vmem>>, %arg5: memref<1x128xf32, #tpu.memory_space<vmem>>, %arg6: memref<128x128xbf16, #tpu.memory_space<vmem>>, %arg7: memref<1x128xf32, #tpu.memory_space<vmem>>, %arg8: memref<1x128xf32, #tpu.memory_space<vmem>>, %arg9: memref<1x128xf32, #tpu.memory_space<vmem>>, %arg10: memref<128x128xbf16, #tpu.memory_space<vmem>>, %arg11: memref<1x128xf32, #tpu.memory_space<vmem>>, %arg12: memref<1x128xf32, #tpu.memory_space<vmem>>, %arg13: memref<1x128xf32, #tpu.memory_space<vmem>>, %arg14: memref<2x64xf32, #tpu.memory_space<vmem>>, %arg15: memref<128x64xf32, #tpu.memory_space<vmem>>, %arg16: memref<1x64xf32, #tpu.memory_space<vmem>>, %arg17: memref<64x1xf32, #tpu.memory_space<vmem>>, %arg18: memref<1x1xf32, #tpu.memory_space<vmem>>, %arg19: memref<2x1xf32, #tpu.memory_space<vmem>>) attributes {dimension_semantics = [], scalar_prefetch = 0 : i64, scratch_operands = 0 : i64, tpu.core_type = #tpu.core_type<tc>} {
    %c0 = arith.constant 0 : index
    %c0_0 = arith.constant 0 : index
    %0 = vector.load %arg0[%c0, %c0_0] : memref<64x64xbf16, #tpu.memory_space<vmem>>, vector<64x64xbf16>
    %c0_1 = arith.constant 0 : index
    %c0_2 = arith.constant 0 : index
    %1 = vector.load %arg1[%c0_1, %c0_2] : memref<64x1xf32, #tpu.memory_space<vmem>>, vector<64x1xf32>
    %c0_3 = arith.constant 0 : index
    %c0_4 = arith.constant 0 : index
    %2 = vector.load %arg2[%c0_3, %c0_4] : memref<1x128xf32, #tpu.memory_space<vmem>>, vector<1x128xf32>
    %3 = vector.broadcast %1 : vector<64x1xf32> to vector<64x128xf32>
    %4 = vector.broadcast %2 : vector<1x128xf32> to vector<64x128xf32>
    %5 = arith.mulf %3, %4 : vector<64x128xf32>
    %c0_5 = arith.constant 0 : index
    %c0_6 = arith.constant 0 : index
    %6 = vector.load %arg3[%c0_5, %c0_6] : memref<1x128xf32, #tpu.memory_space<vmem>>, vector<1x128xf32>
    %c0_7 = arith.constant 0 : index
    %c0_8 = arith.constant 0 : index
    %7 = vector.load %arg4[%c0_7, %c0_8] : memref<1x128xf32, #tpu.memory_space<vmem>>, vector<1x128xf32>
    %c0_9 = arith.constant 0 : index
    %c0_10 = arith.constant 0 : index
    %8 = vector.load %arg5[%c0_9, %c0_10] : memref<1x128xf32, #tpu.memory_space<vmem>>, vector<1x128xf32>
    %9 = arith.truncf %5 : vector<64x128xf32> to vector<64x128xbf16>
    %cst = arith.constant dense<0.000000e+00> : vector<64x128xf32>
    %10 = tpu.matmul %0, %9, %cst {dimension_numbers = #tpu.dot_dimension_numbers<[1], [0], [0], [1], [0, 0, 1, 1], [], []>} : vector<64x64xbf16>, vector<64x128xbf16>, vector<64x128xf32> -> vector<64x128xf32>
    %11 = vector.broadcast %6 : vector<1x128xf32> to vector<64x128xf32>
    %12 = arith.addf %10, %11 : vector<64x128xf32>
    %13 = tpu.iota {dimensions = array<i32: 1>} : vector<64x128xi32>
    %c64_i32 = arith.constant 64 : i32
    %14 = vector.broadcast %c64_i32 : i32 to vector<64x128xi32>
    %15 = arith.cmpi slt, %13, %14 : vector<64x128xi32>
    %16 = arith.extui %15 : vector<64x128xi1> to vector<64x128xi32>
    %17 = arith.sitofp %16 : vector<64x128xi32> to vector<64x128xf32>
    %cst_11 = arith.constant dense<0.000000e+00> : vector<64xf32>
    %18 = vector.multi_reduction <add>, %12, %cst_11 [1] : vector<64x128xf32> to vector<64xf32>
    %19 = vector.shape_cast %18 : vector<64xf32> to vector<64x1xf32>
    %cst_12 = arith.constant 1.562500e-02 : f32
    %20 = vector.broadcast %cst_12 : f32 to vector<64x1xf32>
    %21 = arith.mulf %19, %20 : vector<64x1xf32>
    %22 = vector.broadcast %21 : vector<64x1xf32> to vector<64x128xf32>
    %23 = arith.subf %12, %22 : vector<64x128xf32>
    %24 = arith.mulf %23, %17 : vector<64x128xf32>
    %25 = arith.mulf %24, %24 : vector<64x128xf32>
    %cst_13 = arith.constant dense<0.000000e+00> : vector<64xf32>
    %26 = vector.multi_reduction <add>, %25, %cst_13 [1] : vector<64x128xf32> to vector<64xf32>
    %27 = vector.shape_cast %26 : vector<64xf32> to vector<64x1xf32>
    %cst_14 = arith.constant 1.562500e-02 : f32
    %28 = vector.broadcast %cst_14 : f32 to vector<64x1xf32>
    %29 = arith.mulf %27, %28 : vector<64x1xf32>
    %cst_15 = arith.constant 9.99999974E-6 : f32
    %30 = vector.broadcast %cst_15 : f32 to vector<64x1xf32>
    %31 = arith.addf %29, %30 : vector<64x1xf32>
    %32 = math.rsqrt %31 : vector<64x1xf32>
    %33 = vector.broadcast %32 : vector<64x1xf32> to vector<64x128xf32>
    %34 = arith.mulf %24, %33 : vector<64x128xf32>
    %35 = vector.broadcast %7 : vector<1x128xf32> to vector<64x128xf32>
    %36 = arith.mulf %34, %35 : vector<64x128xf32>
    %37 = vector.broadcast %8 : vector<1x128xf32> to vector<64x128xf32>
    %38 = arith.addf %36, %37 : vector<64x128xf32>
    %cst_16 = arith.constant 0.000000e+00 : f32
    %39 = vector.broadcast %cst_16 : f32 to vector<64x128xf32>
    %40 = arith.maximumf %38, %39 : vector<64x128xf32>
    %c0_17 = arith.constant 0 : index
    %c0_18 = arith.constant 0 : index
    %41 = vector.load %arg6[%c0_17, %c0_18] : memref<128x128xbf16, #tpu.memory_space<vmem>>, vector<128x128xbf16>
    %c0_19 = arith.constant 0 : index
    %c0_20 = arith.constant 0 : index
    %42 = vector.load %arg7[%c0_19, %c0_20] : memref<1x128xf32, #tpu.memory_space<vmem>>, vector<1x128xf32>
    %c0_21 = arith.constant 0 : index
    %c0_22 = arith.constant 0 : index
    %43 = vector.load %arg8[%c0_21, %c0_22] : memref<1x128xf32, #tpu.memory_space<vmem>>, vector<1x128xf32>
    %c0_23 = arith.constant 0 : index
    %c0_24 = arith.constant 0 : index
    %44 = vector.load %arg9[%c0_23, %c0_24] : memref<1x128xf32, #tpu.memory_space<vmem>>, vector<1x128xf32>
    %45 = arith.truncf %40 : vector<64x128xf32> to vector<64x128xbf16>
    %cst_25 = arith.constant dense<0.000000e+00> : vector<64x128xf32>
    %46 = tpu.matmul %45, %41, %cst_25 {dimension_numbers = #tpu.dot_dimension_numbers<[1], [0], [0], [1], [0, 0, 1, 1], [], []>} : vector<64x128xbf16>, vector<128x128xbf16>, vector<64x128xf32> -> vector<64x128xf32>
    %47 = arith.truncf %46 : vector<64x128xf32> to vector<64x128xbf16>
    %cst_26 = arith.constant dense<0.000000e+00> : vector<64x128xf32>
    %48 = tpu.matmul %0, %47, %cst_26 {dimension_numbers = #tpu.dot_dimension_numbers<[1], [0], [0], [1], [0, 0, 1, 1], [], []>} : vector<64x64xbf16>, vector<64x128xbf16>, vector<64x128xf32> -> vector<64x128xf32>
    %49 = vector.broadcast %42 : vector<1x128xf32> to vector<64x128xf32>
    %50 = arith.addf %48, %49 : vector<64x128xf32>
    %51 = tpu.iota {dimensions = array<i32: 1>} : vector<64x128xi32>
    %c64_i32_27 = arith.constant 64 : i32
    %52 = vector.broadcast %c64_i32_27 : i32 to vector<64x128xi32>
    %53 = arith.cmpi slt, %51, %52 : vector<64x128xi32>
    %54 = arith.extui %53 : vector<64x128xi1> to vector<64x128xi32>
    %55 = arith.sitofp %54 : vector<64x128xi32> to vector<64x128xf32>
    %cst_28 = arith.constant dense<0.000000e+00> : vector<64xf32>
    %56 = vector.multi_reduction <add>, %50, %cst_28 [1] : vector<64x128xf32> to vector<64xf32>
    %57 = vector.shape_cast %56 : vector<64xf32> to vector<64x1xf32>
    %cst_29 = arith.constant 1.562500e-02 : f32
    %58 = vector.broadcast %cst_29 : f32 to vector<64x1xf32>
    %59 = arith.mulf %57, %58 : vector<64x1xf32>
    %60 = vector.broadcast %59 : vector<64x1xf32> to vector<64x128xf32>
    %61 = arith.subf %50, %60 : vector<64x128xf32>
    %62 = arith.mulf %61, %55 : vector<64x128xf32>
    %63 = arith.mulf %62, %62 : vector<64x128xf32>
    %cst_30 = arith.constant dense<0.000000e+00> : vector<64xf32>
    %64 = vector.multi_reduction <add>, %63, %cst_30 [1] : vector<64x128xf32> to vector<64xf32>
    %65 = vector.shape_cast %64 : vector<64xf32> to vector<64x1xf32>
    %cst_31 = arith.constant 1.562500e-02 : f32
    %66 = vector.broadcast %cst_31 : f32 to vector<64x1xf32>
    %67 = arith.mulf %65, %66 : vector<64x1xf32>
    %cst_32 = arith.constant 9.99999974E-6 : f32
    %68 = vector.broadcast %cst_32 : f32 to vector<64x1xf32>
    %69 = arith.addf %67, %68 : vector<64x1xf32>
    %70 = math.rsqrt %69 : vector<64x1xf32>
    %71 = vector.broadcast %70 : vector<64x1xf32> to vector<64x128xf32>
    %72 = arith.mulf %62, %71 : vector<64x128xf32>
    %73 = vector.broadcast %43 : vector<1x128xf32> to vector<64x128xf32>
    %74 = arith.mulf %72, %73 : vector<64x128xf32>
    %75 = vector.broadcast %44 : vector<1x128xf32> to vector<64x128xf32>
    %76 = arith.addf %74, %75 : vector<64x128xf32>
    %cst_33 = arith.constant 0.000000e+00 : f32
    %77 = vector.broadcast %cst_33 : f32 to vector<64x128xf32>
    %78 = arith.maximumf %76, %77 : vector<64x128xf32>
    %79 = arith.truncf %78 : vector<64x128xf32> to vector<64x128xbf16>
    %cst_34 = arith.constant dense<0.000000e+00> : vector<64x128xf32>
    %80 = tpu.matmul %79, %41, %cst_34 {dimension_numbers = #tpu.dot_dimension_numbers<[1], [0], [0], [1], [0, 0, 1, 1], [], []>} : vector<64x128xbf16>, vector<128x128xbf16>, vector<64x128xf32> -> vector<64x128xf32>
    %81 = arith.truncf %80 : vector<64x128xf32> to vector<64x128xbf16>
    %cst_35 = arith.constant dense<0.000000e+00> : vector<64x128xf32>
    %82 = tpu.matmul %0, %81, %cst_35 {dimension_numbers = #tpu.dot_dimension_numbers<[1], [0], [0], [1], [0, 0, 1, 1], [], []>} : vector<64x64xbf16>, vector<64x128xbf16>, vector<64x128xf32> -> vector<64x128xf32>
    %83 = vector.broadcast %42 : vector<1x128xf32> to vector<64x128xf32>
    %84 = arith.addf %82, %83 : vector<64x128xf32>
    %85 = tpu.iota {dimensions = array<i32: 1>} : vector<64x128xi32>
    %c64_i32_36 = arith.constant 64 : i32
    %86 = vector.broadcast %c64_i32_36 : i32 to vector<64x128xi32>
    %87 = arith.cmpi slt, %85, %86 : vector<64x128xi32>
    %88 = arith.extui %87 : vector<64x128xi1> to vector<64x128xi32>
    %89 = arith.sitofp %88 : vector<64x128xi32> to vector<64x128xf32>
    %cst_37 = arith.constant dense<0.000000e+00> : vector<64xf32>
    %90 = vector.multi_reduction <add>, %84, %cst_37 [1] : vector<64x128xf32> to vector<64xf32>
    %91 = vector.shape_cast %90 : vector<64xf32> to vector<64x1xf32>
    %cst_38 = arith.constant 1.562500e-02 : f32
    %92 = vector.broadcast %cst_38 : f32 to vector<64x1xf32>
    %93 = arith.mulf %91, %92 : vector<64x1xf32>
    %94 = vector.broadcast %93 : vector<64x1xf32> to vector<64x128xf32>
    %95 = arith.subf %84, %94 : vector<64x128xf32>
    %96 = arith.mulf %95, %89 : vector<64x128xf32>
    %97 = arith.mulf %96, %96 : vector<64x128xf32>
    %cst_39 = arith.constant dense<0.000000e+00> : vector<64xf32>
    %98 = vector.multi_reduction <add>, %97, %cst_39 [1] : vector<64x128xf32> to vector<64xf32>
    %99 = vector.shape_cast %98 : vector<64xf32> to vector<64x1xf32>
    %cst_40 = arith.constant 1.562500e-02 : f32
    %100 = vector.broadcast %cst_40 : f32 to vector<64x1xf32>
    %101 = arith.mulf %99, %100 : vector<64x1xf32>
    %cst_41 = arith.constant 9.99999974E-6 : f32
    %102 = vector.broadcast %cst_41 : f32 to vector<64x1xf32>
    %103 = arith.addf %101, %102 : vector<64x1xf32>
    %104 = math.rsqrt %103 : vector<64x1xf32>
    %105 = vector.broadcast %104 : vector<64x1xf32> to vector<64x128xf32>
    %106 = arith.mulf %96, %105 : vector<64x128xf32>
    %107 = vector.broadcast %43 : vector<1x128xf32> to vector<64x128xf32>
    %108 = arith.mulf %106, %107 : vector<64x128xf32>
    %109 = vector.broadcast %44 : vector<1x128xf32> to vector<64x128xf32>
    %110 = arith.addf %108, %109 : vector<64x128xf32>
    %cst_42 = arith.constant 0.000000e+00 : f32
    %111 = vector.broadcast %cst_42 : f32 to vector<64x128xf32>
    %112 = arith.maximumf %110, %111 : vector<64x128xf32>
    %113 = arith.addf %112, %78 : vector<64x128xf32>
    %114 = arith.truncf %113 : vector<64x128xf32> to vector<64x128xbf16>
    %cst_43 = arith.constant dense<0.000000e+00> : vector<64x128xf32>
    %115 = tpu.matmul %114, %41, %cst_43 {dimension_numbers = #tpu.dot_dimension_numbers<[1], [0], [0], [1], [0, 0, 1, 1], [], []>} : vector<64x128xbf16>, vector<128x128xbf16>, vector<64x128xf32> -> vector<64x128xf32>
    %116 = arith.truncf %115 : vector<64x128xf32> to vector<64x128xbf16>
    %cst_44 = arith.constant dense<0.000000e+00> : vector<64x128xf32>
    %117 = tpu.matmul %0, %116, %cst_44 {dimension_numbers = #tpu.dot_dimension_numbers<[1], [0], [0], [1], [0, 0, 1, 1], [], []>} : vector<64x64xbf16>, vector<64x128xbf16>, vector<64x128xf32> -> vector<64x128xf32>
    %118 = vector.broadcast %42 : vector<1x128xf32> to vector<64x128xf32>
    %119 = arith.addf %117, %118 : vector<64x128xf32>
    %120 = tpu.iota {dimensions = array<i32: 1>} : vector<64x128xi32>
    %c64_i32_45 = arith.constant 64 : i32
    %121 = vector.broadcast %c64_i32_45 : i32 to vector<64x128xi32>
    %122 = arith.cmpi slt, %120, %121 : vector<64x128xi32>
    %123 = arith.extui %122 : vector<64x128xi1> to vector<64x128xi32>
    %124 = arith.sitofp %123 : vector<64x128xi32> to vector<64x128xf32>
    %cst_46 = arith.constant dense<0.000000e+00> : vector<64xf32>
    %125 = vector.multi_reduction <add>, %119, %cst_46 [1] : vector<64x128xf32> to vector<64xf32>
    %126 = vector.shape_cast %125 : vector<64xf32> to vector<64x1xf32>
    %cst_47 = arith.constant 1.562500e-02 : f32
    %127 = vector.broadcast %cst_47 : f32 to vector<64x1xf32>
    %128 = arith.mulf %126, %127 : vector<64x1xf32>
    %129 = vector.broadcast %128 : vector<64x1xf32> to vector<64x128xf32>
    %130 = arith.subf %119, %129 : vector<64x128xf32>
    %131 = arith.mulf %130, %124 : vector<64x128xf32>
    %132 = arith.mulf %131, %131 : vector<64x128xf32>
    %cst_48 = arith.constant dense<0.000000e+00> : vector<64xf32>
    %133 = vector.multi_reduction <add>, %132, %cst_48 [1] : vector<64x128xf32> to vector<64xf32>
    %134 = vector.shape_cast %133 : vector<64xf32> to vector<64x1xf32>
    %cst_49 = arith.constant 1.562500e-02 : f32
    %135 = vector.broadcast %cst_49 : f32 to vector<64x1xf32>
    %136 = arith.mulf %134, %135 : vector<64x1xf32>
    %cst_50 = arith.constant 9.99999974E-6 : f32
    %137 = vector.broadcast %cst_50 : f32 to vector<64x1xf32>
    %138 = arith.addf %136, %137 : vector<64x1xf32>
    %139 = math.rsqrt %138 : vector<64x1xf32>
    %140 = vector.broadcast %139 : vector<64x1xf32> to vector<64x128xf32>
    %141 = arith.mulf %131, %140 : vector<64x128xf32>
    %142 = vector.broadcast %43 : vector<1x128xf32> to vector<64x128xf32>
    %143 = arith.mulf %141, %142 : vector<64x128xf32>
    %144 = vector.broadcast %44 : vector<1x128xf32> to vector<64x128xf32>
    %145 = arith.addf %143, %144 : vector<64x128xf32>
    %cst_51 = arith.constant 0.000000e+00 : f32
    %146 = vector.broadcast %cst_51 : f32 to vector<64x128xf32>
    %147 = arith.maximumf %145, %146 : vector<64x128xf32>
    %148 = arith.truncf %147 : vector<64x128xf32> to vector<64x128xbf16>
    %cst_52 = arith.constant dense<0.000000e+00> : vector<64x128xf32>
    %149 = tpu.matmul %148, %41, %cst_52 {dimension_numbers = #tpu.dot_dimension_numbers<[1], [0], [0], [1], [0, 0, 1, 1], [], []>} : vector<64x128xbf16>, vector<128x128xbf16>, vector<64x128xf32> -> vector<64x128xf32>
    %150 = arith.truncf %149 : vector<64x128xf32> to vector<64x128xbf16>
    %cst_53 = arith.constant dense<0.000000e+00> : vector<64x128xf32>
    %151 = tpu.matmul %0, %150, %cst_53 {dimension_numbers = #tpu.dot_dimension_numbers<[1], [0], [0], [1], [0, 0, 1, 1], [], []>} : vector<64x64xbf16>, vector<64x128xbf16>, vector<64x128xf32> -> vector<64x128xf32>
    %152 = vector.broadcast %42 : vector<1x128xf32> to vector<64x128xf32>
    %153 = arith.addf %151, %152 : vector<64x128xf32>
    %154 = tpu.iota {dimensions = array<i32: 1>} : vector<64x128xi32>
    %c64_i32_54 = arith.constant 64 : i32
    %155 = vector.broadcast %c64_i32_54 : i32 to vector<64x128xi32>
    %156 = arith.cmpi slt, %154, %155 : vector<64x128xi32>
    %157 = arith.extui %156 : vector<64x128xi1> to vector<64x128xi32>
    %158 = arith.sitofp %157 : vector<64x128xi32> to vector<64x128xf32>
    %cst_55 = arith.constant dense<0.000000e+00> : vector<64xf32>
    %159 = vector.multi_reduction <add>, %153, %cst_55 [1] : vector<64x128xf32> to vector<64xf32>
    %160 = vector.shape_cast %159 : vector<64xf32> to vector<64x1xf32>
    %cst_56 = arith.constant 1.562500e-02 : f32
    %161 = vector.broadcast %cst_56 : f32 to vector<64x1xf32>
    %162 = arith.mulf %160, %161 : vector<64x1xf32>
    %163 = vector.broadcast %162 : vector<64x1xf32> to vector<64x128xf32>
    %164 = arith.subf %153, %163 : vector<64x128xf32>
    %165 = arith.mulf %164, %158 : vector<64x128xf32>
    %166 = arith.mulf %165, %165 : vector<64x128xf32>
    %cst_57 = arith.constant dense<0.000000e+00> : vector<64xf32>
    %167 = vector.multi_reduction <add>, %166, %cst_57 [1] : vector<64x128xf32> to vector<64xf32>
    %168 = vector.shape_cast %167 : vector<64xf32> to vector<64x1xf32>
    %cst_58 = arith.constant 1.562500e-02 : f32
    %169 = vector.broadcast %cst_58 : f32 to vector<64x1xf32>
    %170 = arith.mulf %168, %169 : vector<64x1xf32>
    %cst_59 = arith.constant 9.99999974E-6 : f32
    %171 = vector.broadcast %cst_59 : f32 to vector<64x1xf32>
    %172 = arith.addf %170, %171 : vector<64x1xf32>
    %173 = math.rsqrt %172 : vector<64x1xf32>
    %174 = vector.broadcast %173 : vector<64x1xf32> to vector<64x128xf32>
    %175 = arith.mulf %165, %174 : vector<64x128xf32>
    %176 = vector.broadcast %43 : vector<1x128xf32> to vector<64x128xf32>
    %177 = arith.mulf %175, %176 : vector<64x128xf32>
    %178 = vector.broadcast %44 : vector<1x128xf32> to vector<64x128xf32>
    %179 = arith.addf %177, %178 : vector<64x128xf32>
    %cst_60 = arith.constant 0.000000e+00 : f32
    %180 = vector.broadcast %cst_60 : f32 to vector<64x128xf32>
    %181 = arith.maximumf %179, %180 : vector<64x128xf32>
    %182 = arith.addf %181, %147 : vector<64x128xf32>
    %183 = arith.truncf %182 : vector<64x128xf32> to vector<64x128xbf16>
    %cst_61 = arith.constant dense<0.000000e+00> : vector<64x128xf32>
    %184 = tpu.matmul %183, %41, %cst_61 {dimension_numbers = #tpu.dot_dimension_numbers<[1], [0], [0], [1], [0, 0, 1, 1], [], []>} : vector<64x128xbf16>, vector<128x128xbf16>, vector<64x128xf32> -> vector<64x128xf32>
    %185 = arith.truncf %184 : vector<64x128xf32> to vector<64x128xbf16>
    %cst_62 = arith.constant dense<0.000000e+00> : vector<64x128xf32>
    %186 = tpu.matmul %0, %185, %cst_62 {dimension_numbers = #tpu.dot_dimension_numbers<[1], [0], [0], [1], [0, 0, 1, 1], [], []>} : vector<64x64xbf16>, vector<64x128xbf16>, vector<64x128xf32> -> vector<64x128xf32>
    %187 = vector.broadcast %42 : vector<1x128xf32> to vector<64x128xf32>
    %188 = arith.addf %186, %187 : vector<64x128xf32>
    %189 = tpu.iota {dimensions = array<i32: 1>} : vector<64x128xi32>
    %c64_i32_63 = arith.constant 64 : i32
    %190 = vector.broadcast %c64_i32_63 : i32 to vector<64x128xi32>
    %191 = arith.cmpi slt, %189, %190 : vector<64x128xi32>
    %192 = arith.extui %191 : vector<64x128xi1> to vector<64x128xi32>
    %193 = arith.sitofp %192 : vector<64x128xi32> to vector<64x128xf32>
    %cst_64 = arith.constant dense<0.000000e+00> : vector<64xf32>
    %194 = vector.multi_reduction <add>, %188, %cst_64 [1] : vector<64x128xf32> to vector<64xf32>
    %195 = vector.shape_cast %194 : vector<64xf32> to vector<64x1xf32>
    %cst_65 = arith.constant 1.562500e-02 : f32
    %196 = vector.broadcast %cst_65 : f32 to vector<64x1xf32>
    %197 = arith.mulf %195, %196 : vector<64x1xf32>
    %198 = vector.broadcast %197 : vector<64x1xf32> to vector<64x128xf32>
    %199 = arith.subf %188, %198 : vector<64x128xf32>
    %200 = arith.mulf %199, %193 : vector<64x128xf32>
    %201 = arith.mulf %200, %200 : vector<64x128xf32>
    %cst_66 = arith.constant dense<0.000000e+00> : vector<64xf32>
    %202 = vector.multi_reduction <add>, %201, %cst_66 [1] : vector<64x128xf32> to vector<64xf32>
    %203 = vector.shape_cast %202 : vector<64xf32> to vector<64x1xf32>
    %cst_67 = arith.constant 1.562500e-02 : f32
    %204 = vector.broadcast %cst_67 : f32 to vector<64x1xf32>
    %205 = arith.mulf %203, %204 : vector<64x1xf32>
    %cst_68 = arith.constant 9.99999974E-6 : f32
    %206 = vector.broadcast %cst_68 : f32 to vector<64x1xf32>
    %207 = arith.addf %205, %206 : vector<64x1xf32>
    %208 = math.rsqrt %207 : vector<64x1xf32>
    %209 = vector.broadcast %208 : vector<64x1xf32> to vector<64x128xf32>
    %210 = arith.mulf %200, %209 : vector<64x128xf32>
    %211 = vector.broadcast %43 : vector<1x128xf32> to vector<64x128xf32>
    %212 = arith.mulf %210, %211 : vector<64x128xf32>
    %213 = vector.broadcast %44 : vector<1x128xf32> to vector<64x128xf32>
    %214 = arith.addf %212, %213 : vector<64x128xf32>
    %cst_69 = arith.constant 0.000000e+00 : f32
    %215 = vector.broadcast %cst_69 : f32 to vector<64x128xf32>
    %216 = arith.maximumf %214, %215 : vector<64x128xf32>
    %217 = arith.truncf %216 : vector<64x128xf32> to vector<64x128xbf16>
    %cst_70 = arith.constant dense<0.000000e+00> : vector<64x128xf32>
    %218 = tpu.matmul %217, %41, %cst_70 {dimension_numbers = #tpu.dot_dimension_numbers<[1], [0], [0], [1], [0, 0, 1, 1], [], []>} : vector<64x128xbf16>, vector<128x128xbf16>, vector<64x128xf32> -> vector<64x128xf32>
    %219 = arith.truncf %218 : vector<64x128xf32> to vector<64x128xbf16>
    %cst_71 = arith.constant dense<0.000000e+00> : vector<64x128xf32>
    %220 = tpu.matmul %0, %219, %cst_71 {dimension_numbers = #tpu.dot_dimension_numbers<[1], [0], [0], [1], [0, 0, 1, 1], [], []>} : vector<64x64xbf16>, vector<64x128xbf16>, vector<64x128xf32> -> vector<64x128xf32>
    %221 = vector.broadcast %42 : vector<1x128xf32> to vector<64x128xf32>
    %222 = arith.addf %220, %221 : vector<64x128xf32>
    %223 = tpu.iota {dimensions = array<i32: 1>} : vector<64x128xi32>
    %c64_i32_72 = arith.constant 64 : i32
    %224 = vector.broadcast %c64_i32_72 : i32 to vector<64x128xi32>
    %225 = arith.cmpi slt, %223, %224 : vector<64x128xi32>
    %226 = arith.extui %225 : vector<64x128xi1> to vector<64x128xi32>
    %227 = arith.sitofp %226 : vector<64x128xi32> to vector<64x128xf32>
    %cst_73 = arith.constant dense<0.000000e+00> : vector<64xf32>
    %228 = vector.multi_reduction <add>, %222, %cst_73 [1] : vector<64x128xf32> to vector<64xf32>
    %229 = vector.shape_cast %228 : vector<64xf32> to vector<64x1xf32>
    %cst_74 = arith.constant 1.562500e-02 : f32
    %230 = vector.broadcast %cst_74 : f32 to vector<64x1xf32>
    %231 = arith.mulf %229, %230 : vector<64x1xf32>
    %232 = vector.broadcast %231 : vector<64x1xf32> to vector<64x128xf32>
    %233 = arith.subf %222, %232 : vector<64x128xf32>
    %234 = arith.mulf %233, %227 : vector<64x128xf32>
    %235 = arith.mulf %234, %234 : vector<64x128xf32>
    %cst_75 = arith.constant dense<0.000000e+00> : vector<64xf32>
    %236 = vector.multi_reduction <add>, %235, %cst_75 [1] : vector<64x128xf32> to vector<64xf32>
    %237 = vector.shape_cast %236 : vector<64xf32> to vector<64x1xf32>
    %cst_76 = arith.constant 1.562500e-02 : f32
    %238 = vector.broadcast %cst_76 : f32 to vector<64x1xf32>
    %239 = arith.mulf %237, %238 : vector<64x1xf32>
    %cst_77 = arith.constant 9.99999974E-6 : f32
    %240 = vector.broadcast %cst_77 : f32 to vector<64x1xf32>
    %241 = arith.addf %239, %240 : vector<64x1xf32>
    %242 = math.rsqrt %241 : vector<64x1xf32>
    %243 = vector.broadcast %242 : vector<64x1xf32> to vector<64x128xf32>
    %244 = arith.mulf %234, %243 : vector<64x128xf32>
    %245 = vector.broadcast %43 : vector<1x128xf32> to vector<64x128xf32>
    %246 = arith.mulf %244, %245 : vector<64x128xf32>
    %247 = vector.broadcast %44 : vector<1x128xf32> to vector<64x128xf32>
    %248 = arith.addf %246, %247 : vector<64x128xf32>
    %cst_78 = arith.constant 0.000000e+00 : f32
    %249 = vector.broadcast %cst_78 : f32 to vector<64x128xf32>
    %250 = arith.maximumf %248, %249 : vector<64x128xf32>
    %251 = arith.addf %250, %216 : vector<64x128xf32>
    %252 = arith.truncf %251 : vector<64x128xf32> to vector<64x128xbf16>
    %c0_79 = arith.constant 0 : index
    %c0_80 = arith.constant 0 : index
    %253 = vector.load %arg10[%c0_79, %c0_80] : memref<128x128xbf16, #tpu.memory_space<vmem>>, vector<128x128xbf16>
    %cst_81 = arith.constant dense<0.000000e+00> : vector<64x128xf32>
    %254 = tpu.matmul %252, %253, %cst_81 {dimension_numbers = #tpu.dot_dimension_numbers<[1], [0], [0], [1], [0, 0, 1, 1], [], []>} : vector<64x128xbf16>, vector<128x128xbf16>, vector<64x128xf32> -> vector<64x128xf32>
    %c0_82 = arith.constant 0 : index
    %c0_83 = arith.constant 0 : index
    %255 = vector.load %arg11[%c0_82, %c0_83] : memref<1x128xf32, #tpu.memory_space<vmem>>, vector<1x128xf32>
    %c0_84 = arith.constant 0 : index
    %c0_85 = arith.constant 0 : index
    %256 = vector.load %arg12[%c0_84, %c0_85] : memref<1x128xf32, #tpu.memory_space<vmem>>, vector<1x128xf32>
    %c0_86 = arith.constant 0 : index
    %c0_87 = arith.constant 0 : index
    %257 = vector.load %arg13[%c0_86, %c0_87] : memref<1x128xf32, #tpu.memory_space<vmem>>, vector<1x128xf32>
    %258 = arith.truncf %254 : vector<64x128xf32> to vector<64x128xbf16>
    %cst_88 = arith.constant dense<0.000000e+00> : vector<64x128xf32>
    %259 = tpu.matmul %0, %258, %cst_88 {dimension_numbers = #tpu.dot_dimension_numbers<[1], [0], [0], [1], [0, 0, 1, 1], [], []>} : vector<64x64xbf16>, vector<64x128xbf16>, vector<64x128xf32> -> vector<64x128xf32>
    %260 = vector.broadcast %255 : vector<1x128xf32> to vector<64x128xf32>
    %261 = arith.addf %259, %260 : vector<64x128xf32>
    %262 = tpu.iota {dimensions = array<i32: 1>} : vector<64x128xi32>
    %c64_i32_89 = arith.constant 64 : i32
    %263 = vector.broadcast %c64_i32_89 : i32 to vector<64x128xi32>
    %264 = arith.cmpi slt, %262, %263 : vector<64x128xi32>
    %265 = arith.extui %264 : vector<64x128xi1> to vector<64x128xi32>
    %266 = arith.sitofp %265 : vector<64x128xi32> to vector<64x128xf32>
    %cst_90 = arith.constant dense<0.000000e+00> : vector<64xf32>
    %267 = vector.multi_reduction <add>, %261, %cst_90 [1] : vector<64x128xf32> to vector<64xf32>
    %268 = vector.shape_cast %267 : vector<64xf32> to vector<64x1xf32>
    %cst_91 = arith.constant 1.562500e-02 : f32
    %269 = vector.broadcast %cst_91 : f32 to vector<64x1xf32>
    %270 = arith.mulf %268, %269 : vector<64x1xf32>
    %271 = vector.broadcast %270 : vector<64x1xf32> to vector<64x128xf32>
    %272 = arith.subf %261, %271 : vector<64x128xf32>
    %273 = arith.mulf %272, %266 : vector<64x128xf32>
    %274 = arith.mulf %273, %273 : vector<64x128xf32>
    %cst_92 = arith.constant dense<0.000000e+00> : vector<64xf32>
    %275 = vector.multi_reduction <add>, %274, %cst_92 [1] : vector<64x128xf32> to vector<64xf32>
    %276 = vector.shape_cast %275 : vector<64xf32> to vector<64x1xf32>
    %cst_93 = arith.constant 1.562500e-02 : f32
    %277 = vector.broadcast %cst_93 : f32 to vector<64x1xf32>
    %278 = arith.mulf %276, %277 : vector<64x1xf32>
    %cst_94 = arith.constant 9.99999974E-6 : f32
    %279 = vector.broadcast %cst_94 : f32 to vector<64x1xf32>
    %280 = arith.addf %278, %279 : vector<64x1xf32>
    %281 = math.rsqrt %280 : vector<64x1xf32>
    %282 = vector.broadcast %281 : vector<64x1xf32> to vector<64x128xf32>
    %283 = arith.mulf %273, %282 : vector<64x128xf32>
    %284 = vector.broadcast %256 : vector<1x128xf32> to vector<64x128xf32>
    %285 = arith.mulf %283, %284 : vector<64x128xf32>
    %286 = vector.broadcast %257 : vector<1x128xf32> to vector<64x128xf32>
    %287 = arith.addf %285, %286 : vector<64x128xf32>
    %cst_95 = arith.constant 0.000000e+00 : f32
    %288 = vector.broadcast %cst_95 : f32 to vector<64x128xf32>
    %289 = arith.maximumf %287, %288 : vector<64x128xf32>
    %c0_96 = arith.constant 0 : index
    %c0_97 = arith.constant 0 : index
    %290 = vector.load %arg14[%c0_96, %c0_97] : memref<2x64xf32, #tpu.memory_space<vmem>>, vector<2x64xf32>
    %cst_98 = arith.constant dense<0.000000e+00> : vector<2x128xf32>
    %291 = tpu.matmul %290, %289, %cst_98 {dimension_numbers = #tpu.dot_dimension_numbers<[1], [0], [0], [1], [0, 0, 1, 1], [], []>} : vector<2x64xf32>, vector<64x128xf32>, vector<2x128xf32> -> vector<2x128xf32>
    %c0_99 = arith.constant 0 : index
    %c0_100 = arith.constant 0 : index
    %292 = vector.load %arg15[%c0_99, %c0_100] : memref<128x64xf32, #tpu.memory_space<vmem>>, vector<128x64xf32>
    %cst_101 = arith.constant dense<0.000000e+00> : vector<2x64xf32>
    %293 = tpu.matmul %291, %292, %cst_101 {dimension_numbers = #tpu.dot_dimension_numbers<[1], [0], [0], [1], [0, 0, 1, 1], [], []>} : vector<2x128xf32>, vector<128x64xf32>, vector<2x64xf32> -> vector<2x64xf32>
    %c0_102 = arith.constant 0 : index
    %c0_103 = arith.constant 0 : index
    %294 = vector.load %arg16[%c0_102, %c0_103] : memref<1x64xf32, #tpu.memory_space<vmem>>, vector<1x64xf32>
    %295 = vector.broadcast %294 : vector<1x64xf32> to vector<2x64xf32>
    %296 = arith.addf %293, %295 : vector<2x64xf32>
    %cst_104 = arith.constant 0.000000e+00 : f32
    %297 = vector.broadcast %cst_104 : f32 to vector<2x64xf32>
    %298 = arith.maximumf %296, %297 : vector<2x64xf32>
    %c0_105 = arith.constant 0 : index
    %c0_106 = arith.constant 0 : index
    %299 = vector.load %arg17[%c0_105, %c0_106] : memref<64x1xf32, #tpu.memory_space<vmem>>, vector<64x1xf32>
    %cst_107 = arith.constant dense<0.000000e+00> : vector<2x1xf32>
    %300 = tpu.matmul %298, %299, %cst_107 {dimension_numbers = #tpu.dot_dimension_numbers<[1], [0], [0], [1], [0, 0, 1, 1], [], []>} : vector<2x64xf32>, vector<64x1xf32>, vector<2x1xf32> -> vector<2x1xf32>
    %c0_108 = arith.constant 0 : index
    %c0_109 = arith.constant 0 : index
    %301 = vector.load %arg18[%c0_108, %c0_109] : memref<1x1xf32, #tpu.memory_space<vmem>>, vector<1x1xf32>
    %302 = vector.broadcast %301 : vector<1x1xf32> to vector<2x1xf32>
    %303 = arith.addf %300, %302 : vector<2x1xf32>
    %304 = arith.negf %303 : vector<2x1xf32>
    %305 = math.exp %304 : vector<2x1xf32>
    %cst_110 = arith.constant 1.000000e+00 : f32
    %306 = vector.broadcast %cst_110 : f32 to vector<2x1xf32>
    %307 = arith.addf %306, %305 : vector<2x1xf32>
    %308 = arith.divf %306, %307 : vector<2x1xf32>
    %c0_111 = arith.constant 0 : index
    %c0_112 = arith.constant 0 : index
    %309 = vector.load %arg19[%c0_111, %c0_112] : memref<2x1xf32, #tpu.memory_space<vmem>>, vector<2x1xf32>
    tpu.vector_store %arg19[%c0_111, %c0_112], %308 {strides = array<i32>} : memref<2x1xf32, #tpu.memory_space<vmem>>, vector<2x1xf32>,
    return
  }
}

</mosaic_0001>

<llo_original>
// kernel: memory_efficient_gnn_forward.1
$region0: #{memory_efficient_gnn_forward.1}
  #allocation0 [shape = 'u32[]', space=smem, size = 0x4, offset = 0x4, fixed_abs, tag = 'smem constant byte address 0x4 - core index']
  #allocation1 [shape = 'u32[144,128]{1,0:T(1,128)}', space=vmem, size = 0x12000, scoped, tag = 'internal scratch']
  #allocation2 [shape = 'f32[1,1]{1,0:T(1,128)S(1)}', space=vmem, size = 0x200, scoped, tag = 'scoped memory for memory_efficient_gnn_forward.1']
  %s0 = inlined_call_operand.vmem [shape: bf16[64,64], index: 0, kind: input, shape index: {}]
  %s1 = inlined_call_operand.vmem [shape: f32[64,1], index: 1, kind: input, shape index: {}]
  %s2 = inlined_call_operand.vmem [shape: f32[1,128], index: 2, kind: input, shape index: {}]
  %s3 = inlined_call_operand.vmem [shape: f32[1,128], index: 3, kind: input, shape index: {}]
  %s4 = inlined_call_operand.vmem [shape: f32[1,128], index: 4, kind: input, shape index: {}]
  %s5 = inlined_call_operand.vmem [shape: f32[1,128], index: 5, kind: input, shape index: {}]
  %s6 = inlined_call_operand.vmem [shape: bf16[128,128], index: 6, kind: input, shape index: {}]
  %s7 = inlined_call_operand.vmem [shape: f32[1,128], index: 7, kind: input, shape index: {}]
  %s8 = inlined_call_operand.vmem [shape: f32[1,128], index: 8, kind: input, shape index: {}]
  %s9 = inlined_call_operand.vmem [shape: f32[1,128], index: 9, kind: input, shape index: {}]
  %s10 = inlined_call_operand.vmem [shape: bf16[128,128], index: 10, kind: input, shape index: {}]
  %s11 = inlined_call_operand.vmem [shape: f32[1,128], index: 11, kind: input, shape index: {}]
  %s12 = inlined_call_operand.vmem [shape: f32[1,128], index: 12, kind: input, shape index: {}]
  %s13 = inlined_call_operand.vmem [shape: f32[1,128], index: 13, kind: input, shape index: {}]
  %s14 = inlined_call_operand.vmem [shape: f32[2,64], index: 14, kind: input, shape index: {}]
  %s15 = inlined_call_operand.vmem [shape: f32[128,64], index: 15, kind: input, shape index: {}]
  %s16 = inlined_call_operand.vmem [shape: f32[1,64], index: 16, kind: input, shape index: {}]
  %s17 = inlined_call_operand.vmem [shape: f32[64,1], index: 17, kind: input, shape index: {}]
  %s18 = inlined_call_operand.<no memory space> [shape: f32[1,1], index: 18, kind: input, shape index: {}]
  %s19 = inlined_call_operand.vmem [shape: f32[2,1], index: 19, kind: output, shape index: {}]
  %s20 = sld [smem:[#allocation0]]
  $region86: #{memory_efficient_gnn_forward.1} parent=0
    _
  %s22 = ssub.s32 1, %s20
  %s23 = scalar_select 0, %s22, %s20
  %v24 = vstv %s18
  %25 = vst [vmem:[#allocation2] sm:$0x1] %v24
  // Predicated region
  $region2: #{memory_efficient_gnn_forward.1} parent=0 // pred_check
    _
  $region3: #{memory_efficient_gnn_forward.1} parent=0 // pred_check_branch
    %27 = sbr.rel (0) target = $region5
  $region4: #{memory_efficient_gnn_forward.1} parent=0 // pred_region
    _
  $region5: #{memory_efficient_gnn_forward.1} parent=0 // pred_fallthru
    _
  // Predicated region
  $region6: #{memory_efficient_gnn_forward.1} parent=0 // pred_check
    _
  $region7: #{memory_efficient_gnn_forward.1} parent=0 // pred_check_branch
    %29 = sbr.rel (0) target = $region9
  $region8: #{memory_efficient_gnn_forward.1} parent=0 // pred_region
    _
  $region9: #{memory_efficient_gnn_forward.1} parent=0 // pred_fallthru
    _
  // Predicated region
  $region10: #{memory_efficient_gnn_forward.1} parent=0 // pred_check
    _
  $region11: #{memory_efficient_gnn_forward.1} parent=0 // pred_check_branch
    %31 = sbr.rel (0) target = $region13
  $region12: #{memory_efficient_gnn_forward.1} parent=0 // pred_region
    _
  $region13: #{memory_efficient_gnn_forward.1} parent=0 // pred_fallthru
    _
  // Predicated region
  $region14: #{memory_efficient_gnn_forward.1} parent=0 // pred_check
    _
  $region15: #{memory_efficient_gnn_forward.1} parent=0 // pred_check_branch
    %33 = sbr.rel (0) target = $region17
  $region16: #{memory_efficient_gnn_forward.1} parent=0 // pred_region
    _
  $region17: #{memory_efficient_gnn_forward.1} parent=0 // pred_fallthru
    _
  // Predicated region
  $region18: #{memory_efficient_gnn_forward.1} parent=0 // pred_check
    _
  $region19: #{memory_efficient_gnn_forward.1} parent=0 // pred_check_branch
    %35 = sbr.rel (0) target = $region21
  $region20: #{memory_efficient_gnn_forward.1} parent=0 // pred_region
    _
  $region21: #{memory_efficient_gnn_forward.1} parent=0 // pred_fallthru
    _
  // Predicated region
  $region22: #{memory_efficient_gnn_forward.1} parent=0 // pred_check
    _
  $region23: #{memory_efficient_gnn_forward.1} parent=0 // pred_check_branch
    %37 = sbr.rel (0) target = $region25
  $region24: #{memory_efficient_gnn_forward.1} parent=0 // pred_region
    _
  $region25: #{memory_efficient_gnn_forward.1} parent=0 // pred_fallthru
    _
  // Predicated region
  $region26: #{memory_efficient_gnn_forward.1} parent=0 // pred_check
    _
  $region27: #{memory_efficient_gnn_forward.1} parent=0 // pred_check_branch
    %39 = sbr.rel (0) target = $region29
  $region28: #{memory_efficient_gnn_forward.1} parent=0 // pred_region
    _
  $region29: #{memory_efficient_gnn_forward.1} parent=0 // pred_fallthru
    _
  // Predicated region
  $region30: #{memory_efficient_gnn_forward.1} parent=0 // pred_check
    _
  $region31: #{memory_efficient_gnn_forward.1} parent=0 // pred_check_branch
    %41 = sbr.rel (0) target = $region33
  $region32: #{memory_efficient_gnn_forward.1} parent=0 // pred_region
    _
  $region33: #{memory_efficient_gnn_forward.1} parent=0 // pred_fallthru
    _
  // Predicated region
  $region34: #{memory_efficient_gnn_forward.1} parent=0 // pred_check
    _
  $region35: #{memory_efficient_gnn_forward.1} parent=0 // pred_check_branch
    %43 = sbr.rel (0) target = $region37
  $region36: #{memory_efficient_gnn_forward.1} parent=0 // pred_region
    _
  $region37: #{memory_efficient_gnn_forward.1} parent=0 // pred_fallthru
    _
  // Predicated region
  $region38: #{memory_efficient_gnn_forward.1} parent=0 // pred_check
    _
  $region39: #{memory_efficient_gnn_forward.1} parent=0 // pred_check_branch
    %45 = sbr.rel (0) target = $region41
  $region40: #{memory_efficient_gnn_forward.1} parent=0 // pred_region
    _
  $region41: #{memory_efficient_gnn_forward.1} parent=0 // pred_fallthru
    _
  // Predicated region
  $region42: #{memory_efficient_gnn_forward.1} parent=0 // pred_check
    _
  $region43: #{memory_efficient_gnn_forward.1} parent=0 // pred_check_branch
    %47 = sbr.rel (0) target = $region45
  $region44: #{memory_efficient_gnn_forward.1} parent=0 // pred_region
    _
  $region45: #{memory_efficient_gnn_forward.1} parent=0 // pred_fallthru
    _
  // Predicated region
  $region46: #{memory_efficient_gnn_forward.1} parent=0 // pred_check
    _
  $region47: #{memory_efficient_gnn_forward.1} parent=0 // pred_check_branch
    %49 = sbr.rel (0) target = $region49
  $region48: #{memory_efficient_gnn_forward.1} parent=0 // pred_region
    _
  $region49: #{memory_efficient_gnn_forward.1} parent=0 // pred_fallthru
    _
  // Predicated region
  $region50: #{memory_efficient_gnn_forward.1} parent=0 // pred_check
    _
  $region51: #{memory_efficient_gnn_forward.1} parent=0 // pred_check_branch
    %51 = sbr.rel (0) target = $region53
  $region52: #{memory_efficient_gnn_forward.1} parent=0 // pred_region
    _
  $region53: #{memory_efficient_gnn_forward.1} parent=0 // pred_fallthru
    _
  // Predicated region
  $region54: #{memory_efficient_gnn_forward.1} parent=0 // pred_check
    _
  $region55: #{memory_efficient_gnn_forward.1} parent=0 // pred_check_branch
    %53 = sbr.rel (0) target = $region57
  $region56: #{memory_efficient_gnn_forward.1} parent=0 // pred_region
    _
  $region57: #{memory_efficient_gnn_forward.1} parent=0 // pred_fallthru
    _
  // Predicated region
  $region58: #{memory_efficient_gnn_forward.1} parent=0 // pred_check
    _
  $region59: #{memory_efficient_gnn_forward.1} parent=0 // pred_check_branch
    %55 = sbr.rel (0) target = $region61
  $region60: #{memory_efficient_gnn_forward.1} parent=0 // pred_region
    _
  $region61: #{memory_efficient_gnn_forward.1} parent=0 // pred_fallthru
    _
  // Predicated region
  $region62: #{memory_efficient_gnn_forward.1} parent=0 // pred_check
    _
  $region63: #{memory_efficient_gnn_forward.1} parent=0 // pred_check_branch
    %57 = sbr.rel (0) target = $region65
  $region64: #{memory_efficient_gnn_forward.1} parent=0 // pred_region
    _
  $region65: #{memory_efficient_gnn_forward.1} parent=0 // pred_fallthru
    _
  // Predicated region
  $region66: #{memory_efficient_gnn_forward.1} parent=0 // pred_check
    _
  $region67: #{memory_efficient_gnn_forward.1} parent=0 // pred_check_branch
    %59 = sbr.rel (0) target = $region69
  $region68: #{memory_efficient_gnn_forward.1} parent=0 // pred_region
    _
  $region69: #{memory_efficient_gnn_forward.1} parent=0 // pred_fallthru
    _
  // Predicated region
  $region70: #{memory_efficient_gnn_forward.1} parent=0 // pred_check
    _
  $region71: #{memory_efficient_gnn_forward.1} parent=0 // pred_check_branch
    %61 = sbr.rel (0) target = $region73
  $region72: #{memory_efficient_gnn_forward.1} parent=0 // pred_region
    _
  $region73: #{memory_efficient_gnn_forward.1} parent=0 // pred_fallthru
    _
  // Predicated region
  $region74: #{memory_efficient_gnn_forward.1} parent=0 // pred_check
    _
  $region75: #{memory_efficient_gnn_forward.1} parent=0 // pred_check_branch
    %63 = sbr.rel (0) target = $region77
  $region76: #{memory_efficient_gnn_forward.1} parent=0 // pred_region
    _
  $region77: #{memory_efficient_gnn_forward.1} parent=0 // pred_fallthru
    _
  %v65 = vld [vmem:[%s0] sm:$0xf]
  %v66 = vld [vmem:[%s0 + $0x4] sm:$0xf]
  %v67 = vld [vmem:[%s0 + $0x8] sm:$0xf]
  %v68 = vld [vmem:[%s0 + $0xc] sm:$0xf]
  %v69 = vld [vmem:[%s0 + $0x10] sm:$0xf]
  %v70 = vld [vmem:[%s0 + $0x14] sm:$0xf]
  %v71 = vld [vmem:[%s0 + $0x18] sm:$0xf]
  %v72 = vld [vmem:[%s0 + $0x1c] sm:$0xf]
  %v73 = vld [vmem:[%s1] sm:$0xff]
  %v74 = vld [vmem:[%s1 + $0x8] sm:$0xff]
  %v75 = vld [vmem:[%s1 + $0x10] sm:$0xff]
  %v76 = vld [vmem:[%s1 + $0x18] sm:$0xff]
  %v77 = vld [vmem:[%s1 + $0x20] sm:$0xff]
  %v78 = vld [vmem:[%s1 + $0x28] sm:$0xff]
  %v79 = vld [vmem:[%s1 + $0x30] sm:$0xff]
  %v80 = vld [vmem:[%s1 + $0x38] sm:$0xff]
  %v81 = vld [vmem:[%s2] sm:$0x1]
  %83 = vset.pattern.permute.xlu0 0
  %84 = vperm.xlu0 %83, %v73
  %v85 = vpop.permute.xlu0 %84
  %88 = vset.pattern.permute.xlu0 0
  %89 = vperm.xlu0 %88, %v74
  %v90 = vpop.permute.xlu0 %89
  %93 = vset.pattern.permute.xlu0 0
  %94 = vperm.xlu0 %93, %v75
  %v95 = vpop.permute.xlu0 %94
  %98 = vset.pattern.permute.xlu0 0
  %99 = vperm.xlu0 %98, %v76
  %v100 = vpop.permute.xlu0 %99
  %103 = vset.pattern.permute.xlu0 0
  %104 = vperm.xlu0 %103, %v77
  %v105 = vpop.permute.xlu0 %104
  %108 = vset.pattern.permute.xlu0 0
  %109 = vperm.xlu0 %108, %v78
  %v110 = vpop.permute.xlu0 %109
  %113 = vset.pattern.permute.xlu0 0
  %114 = vperm.xlu0 %113, %v79
  %v115 = vpop.permute.xlu0 %114
  %118 = vset.pattern.permute.xlu0 0
  %119 = vperm.xlu0 %118, %v80
  %v120 = vpop.permute.xlu0 %119
  %v123 = vlaneseq
  %v124 = vshrl.u32 %v123, 7
  %v125 = vsub.s32 0, %v124
  %v126 = vrot.slane %v81, %v125
  %v128 = vmul.f32 %v85, %v126
  %v129 = vmul.f32 %v90, %v126
  %v130 = vmul.f32 %v95, %v126
  %v131 = vmul.f32 %v100, %v126
  %v132 = vmul.f32 %v105, %v126
  %v133 = vmul.f32 %v110, %v126
  %v134 = vmul.f32 %v115, %v126
  %v135 = vmul.f32 %v120, %v126
  %v136 = vld [vmem:[%s3] sm:$0x1]
  %v137 = vld [vmem:[%s4] sm:$0x1]
  %v138 = vld [vmem:[%s5] sm:$0x1]
  %v139 = vpack.c.bf16 %v129, %v128
  %v140 = vpack.c.bf16 %v131, %v130
  %v141 = vpack.c.bf16 %v133, %v132
  %v142 = vpack.c.bf16 %v135, %v134
  %v144 = vlaneseq
  %v145 = vshrl.u32 %v144, 7
  %v146 = vsub.s32 0, %v145
  %v147 = vrot.slane %v136, %v146
  %v157 = vunpack.c.l.b16 %v65
  %v158 = vunpack.c.l.b16 %v66
  %v159 = vunpack.c.l.b16 %v67
  %v160 = vunpack.c.l.b16 %v68
  %v161 = vunpack.c.l.b16 %v69
  %v162 = vunpack.c.l.b16 %v70
  %v163 = vunpack.c.l.b16 %v71
  %v164 = vunpack.c.l.b16 %v72
  %v165 = vpack.c.b16 %v158, %v157
  %v166 = vpack.c.b16 %v160, %v159
  %v167 = vpack.c.b16 %v162, %v161
  %v168 = vpack.c.b16 %v164, %v163
  %vm169 = vcmask 523264
  %v171 = vsel %vm169, %v165, 0
  %v174 = vsel %vm169, %v166, 0
  %v177 = vsel %vm169, %v167, 0
  %v180 = vsel %vm169, %v168, 0
  %182 = vmatprep.subr.bf16.mxu0 0
  %183 = vmatpush1.bf16.msra.mxu0 0
  %184 = vmatprep.subr.bf16.mxu0 0
  %185 = vmatpush1.bf16.msra.mxu0 0
  %186 = vmatprep.subr.bf16.mxu0 0
  %187 = vmatpush1.bf16.msra.mxu0 0
  %188 = vmatprep.subr.bf16.mxu0 0
  %189 = vmatpush1.bf16.msra.mxu0 0
  %190 = vmatprep.subr.bf16.mxu0 0
  %191 = vmatpush1.bf16.msra.mxu0 %v142
  %192 = vmatprep.subr.bf16.mxu0 0
  %193 = vmatpush1.bf16.msra.mxu0 %v141
  %194 = vmatprep.subr.bf16.mxu0 0
  %195 = vmatpush1.bf16.msra.mxu0 %v140
  %196 = vmatprep.subr.bf16.mxu0 0
  %197 = vmatpush1.bf16.msra.mxu0 %v139
  %198 = vmatprep.subr.bf16.mxu0 0
  %199 = vmatpush2.bf16.msra.mxu0 0
  %200 = vmatprep.subr.bf16.mxu0 0
  %201 = vmatpush2.bf16.msra.mxu0 0
  %202 = vmatprep.subr.bf16.mxu0 0
  %203 = vmatpush2.bf16.msra.mxu0 0
  %204 = vmatprep.subr.bf16.mxu0 0
  %205 = vmatpush2.bf16.msra.mxu0 0
  %206 = vmatprep.subr.bf16.mxu0 0
  %207 = vmatpush2.bf16.msra.mxu0 0
  %208 = vmatprep.subr.bf16.mxu0 0
  %209 = vmatpush2.bf16.msra.mxu0 0
  %210 = vmatprep.subr.bf16.mxu0 0
  %211 = vmatpush2.bf16.msra.mxu0 0
  %212 = vmatprep.subr.bf16.mxu0 0
  %213 = vmatpush2.bf16.msra.mxu0 0
  %214 = vmatprep.mubr.bf16.mxu0 0
  %215 = vmatmul.mubr.bf16.gmra.mxu0 %v171
  %v216 = vpop.f32.mrf.mxu0
  %v217 = vadd.f32 %v147, %v216
  %v218 = vpop.f32.mrf.mxu0
  %v219 = vpop.f32.mrf.mxu0
  %v220 = vadd.f32 %v147, %v219
  %v221 = vpop.f32.mrf.mxu0
  %222 = vmatprep.mubr.bf16.mxu0 0
  %223 = vmatmul.mubr.bf16.gmra.mxu0 %v174
  %v224 = vpop.f32.mrf.mxu0
  %v225 = vadd.f32 %v147, %v224
  %v226 = vpop.f32.mrf.mxu0
  %v227 = vpop.f32.mrf.mxu0
  %v228 = vadd.f32 %v147, %v227
  %v229 = vpop.f32.mrf.mxu0
  %230 = vmatprep.mubr.bf16.mxu0 0
  %231 = vmatmul.mubr.bf16.gmra.mxu0 %v177
  %v232 = vpop.f32.mrf.mxu0
  %v233 = vadd.f32 %v147, %v232
  %v234 = vpop.f32.mrf.mxu0
  %v235 = vpop.f32.mrf.mxu0
  %v236 = vadd.f32 %v147, %v235
  %v237 = vpop.f32.mrf.mxu0
  %238 = vmatprep.mubr.bf16.mxu0 0
  %239 = vmatmul.mubr.bf16.gmra.mxu0 %v180
  %v240 = vpop.f32.mrf.mxu0
  %v241 = vadd.f32 %v147, %v240
  %v242 = vpop.f32.mrf.mxu0
  %v243 = vpop.f32.mrf.mxu0
  %v244 = vadd.f32 %v147, %v243
  %v245 = vpop.f32.mrf.mxu0
  %246 = vdwg.mxu0
  %v247 = vlaneseq
  %v248 = vand.u32 %v247, 127
  %vm249 = vcmp.lt.s32.totalorder %v248, 64
  %v250 = vsel %vm249, 1, 0
  %v251 = vcvt.s32.f32 %v250
  %252 = vadd.xlane.f32.xlu0 %v217
  %v253 = vpop.xlane.xlu0 %252
  %254 = vadd.xlane.f32.xlu0 %v220
  %v255 = vpop.xlane.xlu0 %254
  %256 = vadd.xlane.f32.xlu0 %v225
  %v257 = vpop.xlane.xlu0 %256
  %258 = vadd.xlane.f32.xlu0 %v228
  %v259 = vpop.xlane.xlu0 %258
  %260 = vadd.xlane.f32.xlu0 %v233
  %v261 = vpop.xlane.xlu0 %260
  %262 = vadd.xlane.f32.xlu0 %v236
  %v263 = vpop.xlane.xlu0 %262
  %264 = vadd.xlane.f32.xlu0 %v241
  %v265 = vpop.xlane.xlu0 %264
  %266 = vadd.xlane.f32.xlu0 %v244
  %v267 = vpop.xlane.xlu0 %266
  %v268 = vmul.f32 %v253, 0.015625
  %v269 = vmul.f32 %v255, 0.015625
  %v270 = vmul.f32 %v257, 0.015625
  %v271 = vmul.f32 %v259, 0.015625
  %v272 = vmul.f32 %v261, 0.015625
  %v273 = vmul.f32 %v263, 0.015625
  %v274 = vmul.f32 %v265, 0.015625
  %v275 = vmul.f32 %v267, 0.015625
  %v276 = vsub.f32 %v217, %v268
  %v277 = vsub.f32 %v220, %v269
  %v278 = vsub.f32 %v225, %v270
  %v279 = vsub.f32 %v228, %v271
  %v280 = vsub.f32 %v233, %v272
  %v281 = vsub.f32 %v236, %v273
  %v282 = vsub.f32 %v241, %v274
  %v283 = vsub.f32 %v244, %v275
  %v284 = vmul.f32 %v276, %v251
  %v285 = vmul.f32 %v277, %v251
  %v286 = vmul.f32 %v278, %v251
  %v287 = vmul.f32 %v279, %v251
  %v288 = vmul.f32 %v280, %v251
  %v289 = vmul.f32 %v281, %v251
  %v290 = vmul.f32 %v282, %v251
  %v291 = vmul.f32 %v283, %v251
  %v292 = vmul.f32 %v284, %v284
  %v293 = vmul.f32 %v285, %v285
  %v294 = vmul.f32 %v286, %v286
  %v295 = vmul.f32 %v287, %v287
  %v296 = vmul.f32 %v288, %v288
  %v297 = vmul.f32 %v289, %v289
  %v298 = vmul.f32 %v290, %v290
  %v299 = vmul.f32 %v291, %v291
  %300 = vadd.xlane.f32.xlu0 %v292
  %v301 = vpop.xlane.xlu0 %300
  %302 = vadd.xlane.f32.xlu0 %v293
  %v303 = vpop.xlane.xlu0 %302
  %304 = vadd.xlane.f32.xlu0 %v294
  %v305 = vpop.xlane.xlu0 %304
  %306 = vadd.xlane.f32.xlu0 %v295
  %v307 = vpop.xlane.xlu0 %306
  %308 = vadd.xlane.f32.xlu0 %v296
  %v309 = vpop.xlane.xlu0 %308
  %310 = vadd.xlane.f32.xlu0 %v297
  %v311 = vpop.xlane.xlu0 %310
  %312 = vadd.xlane.f32.xlu0 %v298
  %v313 = vpop.xlane.xlu0 %312
  %314 = vadd.xlane.f32.xlu0 %v299
  %v315 = vpop.xlane.xlu0 %314
  %v316 = vmul.f32 %v301, 0.015625
  %v317 = vmul.f32 %v303, 0.015625
  %v318 = vmul.f32 %v305, 0.015625
  %v319 = vmul.f32 %v307, 0.015625
  %v320 = vmul.f32 %v309, 0.015625
  %v321 = vmul.f32 %v311, 0.015625
  %v322 = vmul.f32 %v313, 0.015625
  %v323 = vmul.f32 %v315, 0.015625
  %v324 = vadd.f32 %v316, 1e-05
  %v325 = vadd.f32 %v317, 1e-05
  %v326 = vadd.f32 %v318, 1e-05
  %v327 = vadd.f32 %v319, 1e-05
  %v328 = vadd.f32 %v320, 1e-05
  %v329 = vadd.f32 %v321, 1e-05
  %v330 = vadd.f32 %v322, 1e-05
  %v331 = vadd.f32 %v323, 1e-05
  %v332 = vrsqrt.pop %v324
  %v333 = vrsqrt.pop %v325
  %v334 = vrsqrt.pop %v326
  %v335 = vrsqrt.pop %v327
  %v336 = vrsqrt.pop %v328
  %v337 = vrsqrt.pop %v329
  %v338 = vrsqrt.pop %v330
  %v339 = vrsqrt.pop %v331
  %v340 = vmul.f32 %v284, %v332
  %v341 = vmul.f32 %v285, %v333
  %v342 = vmul.f32 %v286, %v334
  %v343 = vmul.f32 %v287, %v335
  %v344 = vmul.f32 %v288, %v336
  %v345 = vmul.f32 %v289, %v337
  %v346 = vmul.f32 %v290, %v338
  %v347 = vmul.f32 %v291, %v339
  %v349 = vlaneseq
  %v350 = vshrl.u32 %v349, 7
  %v351 = vsub.s32 0, %v350
  %v352 = vrot.slane %v137, %v351
  %v354 = vmul.f32 %v340, %v352
  %v355 = vmul.f32 %v341, %v352
  %v356 = vmul.f32 %v342, %v352
  %v357 = vmul.f32 %v343, %v352
  %v358 = vmul.f32 %v344, %v352
  %v359 = vmul.f32 %v345, %v352
  %v360 = vmul.f32 %v346, %v352
  %v361 = vmul.f32 %v347, %v352
  %v363 = vlaneseq
  %v364 = vshrl.u32 %v363, 7
  %v365 = vsub.s32 0, %v364
  %v366 = vrot.slane %v138, %v365
  %v368 = vadd.f32 %v354, %v366
  %v369 = vadd.f32 %v355, %v366
  %v370 = vadd.f32 %v356, %v366
  %v371 = vadd.f32 %v357, %v366
  %v372 = vadd.f32 %v358, %v366
  %v373 = vadd.f32 %v359, %v366
  %v374 = vadd.f32 %v360, %v366
  %v375 = vadd.f32 %v361, %v366
  %v376 = vmax.f32 %v368, 0.0
  %v377 = vmax.f32 %v369, 0.0
  %v378 = vmax.f32 %v370, 0.0
  %v379 = vmax.f32 %v371, 0.0
  %v380 = vmax.f32 %v372, 0.0
  %v381 = vmax.f32 %v373, 0.0
  %v382 = vmax.f32 %v374, 0.0
  %v383 = vmax.f32 %v375, 0.0
  %v384 = vld [vmem:[%s6] sm:$0xf]
  %v385 = vld [vmem:[%s6 + $0x4] sm:$0xf]
  %v386 = vld [vmem:[%s6 + $0x8] sm:$0xf]
  %v387 = vld [vmem:[%s6 + $0xc] sm:$0xf]
  %v388 = vld [vmem:[%s6 + $0x10] sm:$0xf]
  %v389 = vld [vmem:[%s6 + $0x14] sm:$0xf]
  %v390 = vld [vmem:[%s6 + $0x18] sm:$0xf]
  %v391 = vld [vmem:[%s6 + $0x1c] sm:$0xf]
  %v392 = vld [vmem:[%s6 + $0x20] sm:$0xf]
  %v393 = vld [vmem:[%s6 + $0x24] sm:$0xf]
  %v394 = vld [vmem:[%s6 + $0x28] sm:$0xf]
  %v395 = vld [vmem:[%s6 + $0x2c] sm:$0xf]
  %v396 = vld [vmem:[%s6 + $0x30] sm:$0xf]
  %v397 = vld [vmem:[%s6 + $0x34] sm:$0xf]
  %v398 = vld [vmem:[%s6 + $0x38] sm:$0xf]
  %v399 = vld [vmem:[%s6 + $0x3c] sm:$0xf]
  %v400 = vld [vmem:[%s7] sm:$0x1]
  %v401 = vld [vmem:[%s8] sm:$0x1]
  %v402 = vld [vmem:[%s9] sm:$0x1]
  %v403 = vpack.c.bf16 %v377, %v376
  %v404 = vpack.c.bf16 %v379, %v378
  %v405 = vpack.c.bf16 %v381, %v380
  %v406 = vpack.c.bf16 %v383, %v382
  %v423 = vunpack.c.l.b16 %v384
  %v424 = vunpack.c.l.b16 %v385
  %v425 = vunpack.c.l.b16 %v386
  %v426 = vunpack.c.l.b16 %v387
  %v427 = vunpack.c.l.b16 %v388
  %v428 = vunpack.c.l.b16 %v389
  %v429 = vunpack.c.l.b16 %v390
  %v430 = vunpack.c.l.b16 %v391
  %v431 = vunpack.c.l.b16 %v392
  %v432 = vunpack.c.l.b16 %v393
  %v433 = vunpack.c.l.b16 %v394
  %v434 = vunpack.c.l.b16 %v395
  %v435 = vunpack.c.l.b16 %v396
  %v436 = vunpack.c.l.b16 %v397
  %v437 = vunpack.c.l.b16 %v398
  %v438 = vunpack.c.l.b16 %v399
  %v439 = vpack.c.b16 %v424, %v423
  %v440 = vpack.c.b16 %v426, %v425
  %v441 = vpack.c.b16 %v428, %v427
  %v442 = vpack.c.b16 %v430, %v429
  %v443 = vpack.c.b16 %v432, %v431
  %v444 = vpack.c.b16 %v434, %v433
  %v445 = vpack.c.b16 %v436, %v435
  %v446 = vpack.c.b16 %v438, %v437
  %455 = vmatprep.subr.bf16.mxu0 0
  %456 = vmatpush1.bf16.msra.mxu0 %v446
  %457 = vmatprep.subr.bf16.mxu0 0
  %458 = vmatpush1.bf16.msra.mxu0 %v445
  %459 = vmatprep.subr.bf16.mxu0 0
  %460 = vmatpush1.bf16.msra.mxu0 %v444
  %461 = vmatprep.subr.bf16.mxu0 0
  %462 = vmatpush1.bf16.msra.mxu0 %v443
  %463 = vmatprep.subr.bf16.mxu0 0
  %464 = vmatpush1.bf16.msra.mxu0 %v442
  %465 = vmatprep.subr.bf16.mxu0 0
  %466 = vmatpush1.bf16.msra.mxu0 %v441
  %467 = vmatprep.subr.bf16.mxu0 0
  %468 = vmatpush1.bf16.msra.mxu0 %v440
  %469 = vmatprep.subr.bf16.mxu0 0
  %470 = vmatpush1.bf16.msra.mxu0 %v439
  %471 = vmatprep.subr.bf16.mxu0 0
  %472 = vmatpush2.bf16.msra.mxu0 0
  %473 = vmatprep.subr.bf16.mxu0 0
  %474 = vmatpush2.bf16.msra.mxu0 0
  %475 = vmatprep.subr.bf16.mxu0 0
  %476 = vmatpush2.bf16.msra.mxu0 0
  %477 = vmatprep.subr.bf16.mxu0 0
  %478 = vmatpush2.bf16.msra.mxu0 0
  %479 = vmatprep.subr.bf16.mxu0 0
  %480 = vmatpush2.bf16.msra.mxu0 0
  %481 = vmatprep.subr.bf16.mxu0 0
  %482 = vmatpush2.bf16.msra.mxu0 0
  %483 = vmatprep.subr.bf16.mxu0 0
  %484 = vmatpush2.bf16.msra.mxu0 0
  %485 = vmatprep.subr.bf16.mxu0 0
  %486 = vmatpush2.bf16.msra.mxu0 0
  %487 = vmatprep.mubr.bf16.mxu0 0
  %488 = vmatmul.mubr.bf16.gmra.mxu0 %v403
  %v489 = vpop.f32.mrf.mxu0
  %v490 = vadd.f32 0.0, %v489
  %v491 = vpop.f32.mrf.mxu0
  %v492 = vpop.f32.mrf.mxu0
  %v493 = vadd.f32 0.0, %v492
  %v494 = vpop.f32.mrf.mxu0
  %495 = vmatprep.mubr.bf16.mxu0 0
  %496 = vmatmul.mubr.bf16.gmra.mxu0 %v404
  %v497 = vpop.f32.mrf.mxu0
  %v498 = vadd.f32 0.0, %v497
  %v499 = vpop.f32.mrf.mxu0
  %v500 = vpop.f32.mrf.mxu0
  %v501 = vadd.f32 0.0, %v500
  %v502 = vpop.f32.mrf.mxu0
  %503 = vmatprep.mubr.bf16.mxu0 0
  %504 = vmatmul.mubr.bf16.gmra.mxu0 %v405
  %v505 = vpop.f32.mrf.mxu0
  %v506 = vadd.f32 0.0, %v505
  %v507 = vpop.f32.mrf.mxu0
  %v508 = vpop.f32.mrf.mxu0
  %v509 = vadd.f32 0.0, %v508
  %v510 = vpop.f32.mrf.mxu0
  %511 = vmatprep.mubr.bf16.mxu0 0
  %512 = vmatmul.mubr.bf16.gmra.mxu0 %v406
  %v513 = vpop.f32.mrf.mxu0
  %v514 = vadd.f32 0.0, %v513
  %v515 = vpop.f32.mrf.mxu0
  %v516 = vpop.f32.mrf.mxu0
  %v517 = vadd.f32 0.0, %v516
  %v518 = vpop.f32.mrf.mxu0
  %519 = vdwg.mxu0
  %v520 = vpack.c.bf16 %v493, %v490
  %v521 = vpack.c.bf16 %v501, %v498
  %v522 = vpack.c.bf16 %v509, %v506
  %v523 = vpack.c.bf16 %v517, %v514
  %v525 = vlaneseq
  %v526 = vshrl.u32 %v525, 7
  %v527 = vsub.s32 0, %v526
  %v528 = vrot.slane %v400, %v527
  %530 = vmatprep.subr.bf16.mxu0 0
  %531 = vmatpush1.bf16.msra.mxu0 0
  %532 = vmatprep.subr.bf16.mxu0 0
  %533 = vmatpush1.bf16.msra.mxu0 0
  %534 = vmatprep.subr.bf16.mxu0 0
  %535 = vmatpush1.bf16.msra.mxu0 0
  %536 = vmatprep.subr.bf16.mxu0 0
  %537 = vmatpush1.bf16.msra.mxu0 0
  %538 = vmatprep.subr.bf16.mxu0 0
  %539 = vmatpush1.bf16.msra.mxu0 %v523
  %540 = vmatprep.subr.bf16.mxu0 0
  %541 = vmatpush1.bf16.msra.mxu0 %v522
  %542 = vmatprep.subr.bf16.mxu0 0
  %543 = vmatpush1.bf16.msra.mxu0 %v521
  %544 = vmatprep.subr.bf16.mxu0 0
  %545 = vmatpush1.bf16.msra.mxu0 %v520
  %546 = vmatprep.subr.bf16.mxu0 0
  %547 = vmatpush2.bf16.msra.mxu0 0
  %548 = vmatprep.subr.bf16.mxu0 0
  %549 = vmatpush2.bf16.msra.mxu0 0
  %550 = vmatprep.subr.bf16.mxu0 0
  %551 = vmatpush2.bf16.msra.mxu0 0
  %552 = vmatprep.subr.bf16.mxu0 0
  %553 = vmatpush2.bf16.msra.mxu0 0
  %554 = vmatprep.subr.bf16.mxu0 0
  %555 = vmatpush2.bf16.msra.mxu0 0
  %556 = vmatprep.subr.bf16.mxu0 0
  %557 = vmatpush2.bf16.msra.mxu0 0
  %558 = vmatprep.subr.bf16.mxu0 0
  %559 = vmatpush2.bf16.msra.mxu0 0
  %560 = vmatprep.subr.bf16.mxu0 0
  %561 = vmatpush2.bf16.msra.mxu0 0
  %562 = vmatprep.mubr.bf16.mxu0 0
  %563 = vmatmul.mubr.bf16.gmra.mxu0 %v171
  %v564 = vpop.f32.mrf.mxu0
  %v565 = vadd.f32 %v528, %v564
  %v566 = vpop.f32.mrf.mxu0
  %v567 = vpop.f32.mrf.mxu0
  %v568 = vadd.f32 %v528, %v567
  %v569 = vpop.f32.mrf.mxu0
  %570 = vmatprep.mubr.bf16.mxu0 0
  %571 = vmatmul.mubr.bf16.gmra.mxu0 %v174
  %v572 = vpop.f32.mrf.mxu0
  %v573 = vadd.f32 %v528, %v572
  %v574 = vpop.f32.mrf.mxu0
  %v575 = vpop.f32.mrf.mxu0
  %v576 = vadd.f32 %v528, %v575
  %v577 = vpop.f32.mrf.mxu0
  %578 = vmatprep.mubr.bf16.mxu0 0
  %579 = vmatmul.mubr.bf16.gmra.mxu0 %v177
  %v580 = vpop.f32.mrf.mxu0
  %v581 = vadd.f32 %v528, %v580
  %v582 = vpop.f32.mrf.mxu0
  %v583 = vpop.f32.mrf.mxu0
  %v584 = vadd.f32 %v528, %v583
  %v585 = vpop.f32.mrf.mxu0
  %586 = vmatprep.mubr.bf16.mxu0 0
  %587 = vmatmul.mubr.bf16.gmra.mxu0 %v180
  %v588 = vpop.f32.mrf.mxu0
  %v589 = vadd.f32 %v528, %v588
  %v590 = vpop.f32.mrf.mxu0
  %v591 = vpop.f32.mrf.mxu0
  %v592 = vadd.f32 %v528, %v591
  %v593 = vpop.f32.mrf.mxu0
  %594 = vdwg.mxu0
  %595 = vadd.xlane.f32.xlu0 %v565
  %v596 = vpop.xlane.xlu0 %595
  %597 = vadd.xlane.f32.xlu0 %v568
  %v598 = vpop.xlane.xlu0 %597
  %599 = vadd.xlane.f32.xlu0 %v573
  %v600 = vpop.xlane.xlu0 %599
  %601 = vadd.xlane.f32.xlu0 %v576
  %v602 = vpop.xlane.xlu0 %601
  %603 = vadd.xlane.f32.xlu0 %v581
  %v604 = vpop.xlane.xlu0 %603
  %605 = vadd.xlane.f32.xlu0 %v584
  %v606 = vpop.xlane.xlu0 %605
  %607 = vadd.xlane.f32.xlu0 %v589
  %v608 = vpop.xlane.xlu0 %607
  %609 = vadd.xlane.f32.xlu0 %v592
  %v610 = vpop.xlane.xlu0 %609
  %v611 = vmul.f32 %v596, 0.015625
  %v612 = vmul.f32 %v598, 0.015625
  %v613 = vmul.f32 %v600, 0.015625
  %v614 = vmul.f32 %v602, 0.015625
  %v615 = vmul.f32 %v604, 0.015625
  %v616 = vmul.f32 %v606, 0.015625
  %v617 = vmul.f32 %v608, 0.015625
  %v618 = vmul.f32 %v610, 0.015625
  %v619 = vsub.f32 %v565, %v611
  %v620 = vsub.f32 %v568, %v612
  %v621 = vsub.f32 %v573, %v613
  %v622 = vsub.f32 %v576, %v614
  %v623 = vsub.f32 %v581, %v615
  %v624 = vsub.f32 %v584, %v616
  %v625 = vsub.f32 %v589, %v617
  %v626 = vsub.f32 %v592, %v618
  %v627 = vmul.f32 %v619, %v251
  %v628 = vmul.f32 %v620, %v251
  %v629 = vmul.f32 %v621, %v251
  %v630 = vmul.f32 %v622, %v251
  %v631 = vmul.f32 %v623, %v251
  %v632 = vmul.f32 %v624, %v251
  %v633 = vmul.f32 %v625, %v251
  %v634 = vmul.f32 %v626, %v251
  %v635 = vmul.f32 %v627, %v627
  %v636 = vmul.f32 %v628, %v628
  %v637 = vmul.f32 %v629, %v629
  %v638 = vmul.f32 %v630, %v630
  %v639 = vmul.f32 %v631, %v631
  %v640 = vmul.f32 %v632, %v632
  %v641 = vmul.f32 %v633, %v633
  %v642 = vmul.f32 %v634, %v634
  %643 = vadd.xlane.f32.xlu0 %v635
  %v644 = vpop.xlane.xlu0 %643
  %645 = vadd.xlane.f32.xlu0 %v636
  %v646 = vpop.xlane.xlu0 %645
  %647 = vadd.xlane.f32.xlu0 %v637
  %v648 = vpop.xlane.xlu0 %647
  %649 = vadd.xlane.f32.xlu0 %v638
  %v650 = vpop.xlane.xlu0 %649
  %651 = vadd.xlane.f32.xlu0 %v639
  %v652 = vpop.xlane.xlu0 %651
  %653 = vadd.xlane.f32.xlu0 %v640
  %v654 = vpop.xlane.xlu0 %653
  %655 = vadd.xlane.f32.xlu0 %v641
  %v656 = vpop.xlane.xlu0 %655
  %657 = vadd.xlane.f32.xlu0 %v642
  %v658 = vpop.xlane.xlu0 %657
  %v659 = vmul.f32 %v644, 0.015625
  %v660 = vmul.f32 %v646, 0.015625
  %v661 = vmul.f32 %v648, 0.015625
  %v662 = vmul.f32 %v650, 0.015625
  %v663 = vmul.f32 %v652, 0.015625
  %v664 = vmul.f32 %v654, 0.015625
  %v665 = vmul.f32 %v656, 0.015625
  %v666 = vmul.f32 %v658, 0.015625
  %v667 = vadd.f32 %v659, 1e-05
  %v668 = vadd.f32 %v660, 1e-05
  %v669 = vadd.f32 %v661, 1e-05
  %v670 = vadd.f32 %v662, 1e-05
  %v671 = vadd.f32 %v663, 1e-05
  %v672 = vadd.f32 %v664, 1e-05
  %v673 = vadd.f32 %v665, 1e-05
  %v674 = vadd.f32 %v666, 1e-05
  %v675 = vrsqrt.pop %v667
  %v676 = vrsqrt.pop %v668
  %v677 = vrsqrt.pop %v669
  %v678 = vrsqrt.pop %v670
  %v679 = vrsqrt.pop %v671
  %v680 = vrsqrt.pop %v672
  %v681 = vrsqrt.pop %v673
  %v682 = vrsqrt.pop %v674
  %v683 = vmul.f32 %v627, %v675
  %v684 = vmul.f32 %v628, %v676
  %v685 = vmul.f32 %v629, %v677
  %v686 = vmul.f32 %v630, %v678
  %v687 = vmul.f32 %v631, %v679
  %v688 = vmul.f32 %v632, %v680
  %v689 = vmul.f32 %v633, %v681
  %v690 = vmul.f32 %v634, %v682
  %v692 = vlaneseq
  %v693 = vshrl.u32 %v692, 7
  %v694 = vsub.s32 0, %v693
  %v695 = vrot.slane %v401, %v694
  %v697 = vmul.f32 %v683, %v695
  %v698 = vmul.f32 %v684, %v695
  %v699 = vmul.f32 %v685, %v695
  %v700 = vmul.f32 %v686, %v695
  %v701 = vmul.f32 %v687, %v695
  %v702 = vmul.f32 %v688, %v695
  %v703 = vmul.f32 %v689, %v695
  %v704 = vmul.f32 %v690, %v695
  %v706 = vlaneseq
  %v707 = vshrl.u32 %v706, 7
  %v708 = vsub.s32 0, %v707
  %v709 = vrot.slane %v402, %v708
  %v711 = vadd.f32 %v697, %v709
  %v712 = vadd.f32 %v698, %v709
  %v713 = vadd.f32 %v699, %v709
  %v714 = vadd.f32 %v700, %v709
  %v715 = vadd.f32 %v701, %v709
  %v716 = vadd.f32 %v702, %v709
  %v717 = vadd.f32 %v703, %v709
  %v718 = vadd.f32 %v704, %v709
  %v719 = vmax.f32 %v711, 0.0
  %v720 = vmax.f32 %v712, 0.0
  %v721 = vmax.f32 %v713, 0.0
  %v722 = vmax.f32 %v714, 0.0
  %v723 = vmax.f32 %v715, 0.0
  %v724 = vmax.f32 %v716, 0.0
  %v725 = vmax.f32 %v717, 0.0
  %v726 = vmax.f32 %v718, 0.0
  %v727 = vpack.c.bf16 %v720, %v719
  %v728 = vpack.c.bf16 %v722, %v721
  %v729 = vpack.c.bf16 %v724, %v723
  %v730 = vpack.c.bf16 %v726, %v725
  %731 = vmatprep.subr.bf16.mxu0 0
  %732 = vmatpush1.bf16.msra.mxu0 %v446
  %733 = vmatprep.subr.bf16.mxu0 0
  %734 = vmatpush1.bf16.msra.mxu0 %v445
  %735 = vmatprep.subr.bf16.mxu0 0
  %736 = vmatpush1.bf16.msra.mxu0 %v444
  %737 = vmatprep.subr.bf16.mxu0 0
  %738 = vmatpush1.bf16.msra.mxu0 %v443
  %739 = vmatprep.subr.bf16.mxu0 0
  %740 = vmatpush1.bf16.msra.mxu0 %v442
  %741 = vmatprep.subr.bf16.mxu0 0
  %742 = vmatpush1.bf16.msra.mxu0 %v441
  %743 = vmatprep.subr.bf16.mxu0 0
  %744 = vmatpush1.bf16.msra.mxu0 %v440
  %745 = vmatprep.subr.bf16.mxu0 0
  %746 = vmatpush1.bf16.msra.mxu0 %v439
  %747 = vmatprep.subr.bf16.mxu0 0
  %748 = vmatpush2.bf16.msra.mxu0 0
  %749 = vmatprep.subr.bf16.mxu0 0
  %750 = vmatpush2.bf16.msra.mxu0 0
  %751 = vmatprep.subr.bf16.mxu0 0
  %752 = vmatpush2.bf16.msra.mxu0 0
  %753 = vmatprep.subr.bf16.mxu0 0
  %754 = vmatpush2.bf16.msra.mxu0 0
  %755 = vmatprep.subr.bf16.mxu0 0
  %756 = vmatpush2.bf16.msra.mxu0 0
  %757 = vmatprep.subr.bf16.mxu0 0
  %758 = vmatpush2.bf16.msra.mxu0 0
  %759 = vmatprep.subr.bf16.mxu0 0
  %760 = vmatpush2.bf16.msra.mxu0 0
  %761 = vmatprep.subr.bf16.mxu0 0
  %762 = vmatpush2.bf16.msra.mxu0 0
  %763 = vmatprep.mubr.bf16.mxu0 0
  %764 = vmatmul.mubr.bf16.gmra.mxu0 %v727
  %v765 = vpop.f32.mrf.mxu0
  %v766 = vadd.f32 0.0, %v765
  %v767 = vpop.f32.mrf.mxu0
  %v768 = vpop.f32.mrf.mxu0
  %v769 = vadd.f32 0.0, %v768
  %v770 = vpop.f32.mrf.mxu0
  %771 = vmatprep.mubr.bf16.mxu0 0
  %772 = vmatmul.mubr.bf16.gmra.mxu0 %v728
  %v773 = vpop.f32.mrf.mxu0
  %v774 = vadd.f32 0.0, %v773
  %v775 = vpop.f32.mrf.mxu0
  %v776 = vpop.f32.mrf.mxu0
  %v777 = vadd.f32 0.0, %v776
  %v778 = vpop.f32.mrf.mxu0
  %779 = vmatprep.mubr.bf16.mxu0 0
  %780 = vmatmul.mubr.bf16.gmra.mxu0 %v729
  %v781 = vpop.f32.mrf.mxu0
  %v782 = vadd.f32 0.0, %v781
  %v783 = vpop.f32.mrf.mxu0
  %v784 = vpop.f32.mrf.mxu0
  %v785 = vadd.f32 0.0, %v784
  %v786 = vpop.f32.mrf.mxu0
  %787 = vmatprep.mubr.bf16.mxu0 0
  %788 = vmatmul.mubr.bf16.gmra.mxu0 %v730
  %v789 = vpop.f32.mrf.mxu0
  %v790 = vadd.f32 0.0, %v789
  %v791 = vpop.f32.mrf.mxu0
  %v792 = vpop.f32.mrf.mxu0
  %v793 = vadd.f32 0.0, %v792
  %v794 = vpop.f32.mrf.mxu0
  %795 = vdwg.mxu0
  %v796 = vpack.c.bf16 %v769, %v766
  %v797 = vpack.c.bf16 %v777, %v774
  %v798 = vpack.c.bf16 %v785, %v782
  %v799 = vpack.c.bf16 %v793, %v790
  %800 = vmatprep.subr.bf16.mxu0 0
  %801 = vmatpush1.bf16.msra.mxu0 0
  %802 = vmatprep.subr.bf16.mxu0 0
  %803 = vmatpush1.bf16.msra.mxu0 0
  %804 = vmatprep.subr.bf16.mxu0 0
  %805 = vmatpush1.bf16.msra.mxu0 0
  %806 = vmatprep.subr.bf16.mxu0 0
  %807 = vmatpush1.bf16.msra.mxu0 0
  %808 = vmatprep.subr.bf16.mxu0 0
  %809 = vmatpush1.bf16.msra.mxu0 %v799
  %810 = vmatprep.subr.bf16.mxu0 0
  %811 = vmatpush1.bf16.msra.mxu0 %v798
  %812 = vmatprep.subr.bf16.mxu0 0
  %813 = vmatpush1.bf16.msra.mxu0 %v797
  %814 = vmatprep.subr.bf16.mxu0 0
  %815 = vmatpush1.bf16.msra.mxu0 %v796
  %816 = vmatprep.subr.bf16.mxu0 0
  %817 = vmatpush2.bf16.msra.mxu0 0
  %818 = vmatprep.subr.bf16.mxu0 0
  %819 = vmatpush2.bf16.msra.mxu0 0
  %820 = vmatprep.subr.bf16.mxu0 0
  %821 = vmatpush2.bf16.msra.mxu0 0
  %822 = vmatprep.subr.bf16.mxu0 0
  %823 = vmatpush2.bf16.msra.mxu0 0
  %824 = vmatprep.subr.bf16.mxu0 0
  %825 = vmatpush2.bf16.msra.mxu0 0
  %826 = vmatprep.subr.bf16.mxu0 0
  %827 = vmatpush2.bf16.msra.mxu0 0
  %828 = vmatprep.subr.bf16.mxu0 0
  %829 = vmatpush2.bf16.msra.mxu0 0
  %830 = vmatprep.subr.bf16.mxu0 0
  %831 = vmatpush2.bf16.msra.mxu0 0
  %832 = vmatprep.mubr.bf16.mxu0 0
  %833 = vmatmul.mubr.bf16.gmra.mxu0 %v171
  %v834 = vpop.f32.mrf.mxu0
  %v835 = vadd.f32 %v528, %v834
  %v836 = vpop.f32.mrf.mxu0
  %v837 = vpop.f32.mrf.mxu0
  %v838 = vadd.f32 %v528, %v837
  %v839 = vpop.f32.mrf.mxu0
  %840 = vmatprep.mubr.bf16.mxu0 0
  %841 = vmatmul.mubr.bf16.gmra.mxu0 %v174
  %v842 = vpop.f32.mrf.mxu0
  %v843 = vadd.f32 %v528, %v842
  %v844 = vpop.f32.mrf.mxu0
  %v845 = vpop.f32.mrf.mxu0
  %v846 = vadd.f32 %v528, %v845
  %v847 = vpop.f32.mrf.mxu0
  %848 = vmatprep.mubr.bf16.mxu0 0
  %849 = vmatmul.mubr.bf16.gmra.mxu0 %v177
  %v850 = vpop.f32.mrf.mxu0
  %v851 = vadd.f32 %v528, %v850
  %v852 = vpop.f32.mrf.mxu0
  %v853 = vpop.f32.mrf.mxu0
  %v854 = vadd.f32 %v528, %v853
  %v855 = vpop.f32.mrf.mxu0
  %856 = vmatprep.mubr.bf16.mxu0 0
  %857 = vmatmul.mubr.bf16.gmra.mxu0 %v180
  %v858 = vpop.f32.mrf.mxu0
  %v859 = vadd.f32 %v528, %v858
  %v860 = vpop.f32.mrf.mxu0
  %v861 = vpop.f32.mrf.mxu0
  %v862 = vadd.f32 %v528, %v861
  %v863 = vpop.f32.mrf.mxu0
  %864 = vdwg.mxu0
  %865 = vadd.xlane.f32.xlu0 %v835
  %v866 = vpop.xlane.xlu0 %865
  %867 = vadd.xlane.f32.xlu0 %v838
  %v868 = vpop.xlane.xlu0 %867
  %869 = vadd.xlane.f32.xlu0 %v843
  %v870 = vpop.xlane.xlu0 %869
  %871 = vadd.xlane.f32.xlu0 %v846
  %v872 = vpop.xlane.xlu0 %871
  %873 = vadd.xlane.f32.xlu0 %v851
  %v874 = vpop.xlane.xlu0 %873
  %875 = vadd.xlane.f32.xlu0 %v854
  %v876 = vpop.xlane.xlu0 %875
  %877 = vadd.xlane.f32.xlu0 %v859
  %v878 = vpop.xlane.xlu0 %877
  %879 = vadd.xlane.f32.xlu0 %v862
  %v880 = vpop.xlane.xlu0 %879
  %v881 = vmul.f32 %v866, 0.015625
  %v882 = vmul.f32 %v868, 0.015625
  %v883 = vmul.f32 %v870, 0.015625
  %v884 = vmul.f32 %v872, 0.015625
  %v885 = vmul.f32 %v874, 0.015625
  %v886 = vmul.f32 %v876, 0.015625
  %v887 = vmul.f32 %v878, 0.015625
  %v888 = vmul.f32 %v880, 0.015625
  %v889 = vsub.f32 %v835, %v881
  %v890 = vsub.f32 %v838, %v882
  %v891 = vsub.f32 %v843, %v883
  %v892 = vsub.f32 %v846, %v884
  %v893 = vsub.f32 %v851, %v885
  %v894 = vsub.f32 %v854, %v886
  %v895 = vsub.f32 %v859, %v887
  %v896 = vsub.f32 %v862, %v888
  %v897 = vmul.f32 %v889, %v251
  %v898 = vmul.f32 %v890, %v251
  %v899 = vmul.f32 %v891, %v251
  %v900 = vmul.f32 %v892, %v251
  %v901 = vmul.f32 %v893, %v251
  %v902 = vmul.f32 %v894, %v251
  %v903 = vmul.f32 %v895, %v251
  %v904 = vmul.f32 %v896, %v251
  %v905 = vmul.f32 %v897, %v897
  %v906 = vmul.f32 %v898, %v898
  %v907 = vmul.f32 %v899, %v899
  %v908 = vmul.f32 %v900, %v900
  %v909 = vmul.f32 %v901, %v901
  %v910 = vmul.f32 %v902, %v902
  %v911 = vmul.f32 %v903, %v903
  %v912 = vmul.f32 %v904, %v904
  %913 = vadd.xlane.f32.xlu0 %v905
  %v914 = vpop.xlane.xlu0 %913
  %915 = vadd.xlane.f32.xlu0 %v906
  %v916 = vpop.xlane.xlu0 %915
  %917 = vadd.xlane.f32.xlu0 %v907
  %v918 = vpop.xlane.xlu0 %917
  %919 = vadd.xlane.f32.xlu0 %v908
  %v920 = vpop.xlane.xlu0 %919
  %921 = vadd.xlane.f32.xlu0 %v909
  %v922 = vpop.xlane.xlu0 %921
  %923 = vadd.xlane.f32.xlu0 %v910
  %v924 = vpop.xlane.xlu0 %923
  %925 = vadd.xlane.f32.xlu0 %v911
  %v926 = vpop.xlane.xlu0 %925
  %927 = vadd.xlane.f32.xlu0 %v912
  %v928 = vpop.xlane.xlu0 %927
  %v929 = vmul.f32 %v914, 0.015625
  %v930 = vmul.f32 %v916, 0.015625
  %v931 = vmul.f32 %v918, 0.015625
  %v932 = vmul.f32 %v920, 0.015625
  %v933 = vmul.f32 %v922, 0.015625
  %v934 = vmul.f32 %v924, 0.015625
  %v935 = vmul.f32 %v926, 0.015625
  %v936 = vmul.f32 %v928, 0.015625
  %v937 = vadd.f32 %v929, 1e-05
  %v938 = vadd.f32 %v930, 1e-05
  %v939 = vadd.f32 %v931, 1e-05
  %v940 = vadd.f32 %v932, 1e-05
  %v941 = vadd.f32 %v933, 1e-05
  %v942 = vadd.f32 %v934, 1e-05
  %v943 = vadd.f32 %v935, 1e-05
  %v944 = vadd.f32 %v936, 1e-05
  %v945 = vrsqrt.pop %v937
  %v946 = vrsqrt.pop %v938
  %v947 = vrsqrt.pop %v939
  %v948 = vrsqrt.pop %v940
  %v949 = vrsqrt.pop %v941
  %v950 = vrsqrt.pop %v942
  %v951 = vrsqrt.pop %v943
  %v952 = vrsqrt.pop %v944
  %v953 = vmul.f32 %v897, %v945
  %v954 = vmul.f32 %v898, %v946
  %v955 = vmul.f32 %v899, %v947
  %v956 = vmul.f32 %v900, %v948
  %v957 = vmul.f32 %v901, %v949
  %v958 = vmul.f32 %v902, %v950
  %v959 = vmul.f32 %v903, %v951
  %v960 = vmul.f32 %v904, %v952
  %v961 = vmul.f32 %v953, %v695
  %v962 = vmul.f32 %v954, %v695
  %v963 = vmul.f32 %v955, %v695
  %v964 = vmul.f32 %v956, %v695
  %v965 = vmul.f32 %v957, %v695
  %v966 = vmul.f32 %v958, %v695
  %v967 = vmul.f32 %v959, %v695
  %v968 = vmul.f32 %v960, %v695
  %v969 = vadd.f32 %v961, %v709
  %v970 = vadd.f32 %v962, %v709
  %v971 = vadd.f32 %v963, %v709
  %v972 = vadd.f32 %v964, %v709
  %v973 = vadd.f32 %v965, %v709
  %v974 = vadd.f32 %v966, %v709
  %v975 = vadd.f32 %v967, %v709
  %v976 = vadd.f32 %v968, %v709
  %v977 = vmax.f32 %v969, 0.0
  %v978 = vmax.f32 %v970, 0.0
  %v979 = vmax.f32 %v971, 0.0
  %v980 = vmax.f32 %v972, 0.0
  %v981 = vmax.f32 %v973, 0.0
  %v982 = vmax.f32 %v974, 0.0
  %v983 = vmax.f32 %v975, 0.0
  %v984 = vmax.f32 %v976, 0.0
  %v985 = vadd.f32 %v977, %v719
  %v986 = vadd.f32 %v978, %v720
  %v987 = vadd.f32 %v979, %v721
  %v988 = vadd.f32 %v980, %v722
  %v989 = vadd.f32 %v981, %v723
  %v990 = vadd.f32 %v982, %v724
  %v991 = vadd.f32 %v983, %v725
  %v992 = vadd.f32 %v984, %v726
  %v993 = vpack.c.bf16 %v986, %v985
  %v994 = vpack.c.bf16 %v988, %v987
  %v995 = vpack.c.bf16 %v990, %v989
  %v996 = vpack.c.bf16 %v992, %v991
  %997 = vmatprep.subr.bf16.mxu0 0
  %998 = vmatpush1.bf16.msra.mxu0 %v446
  %999 = vmatprep.subr.bf16.mxu0 0
  %1000 = vmatpush1.bf16.msra.mxu0 %v445
  %1001 = vmatprep.subr.bf16.mxu0 0
  %1002 = vmatpush1.bf16.msra.mxu0 %v444
  %1003 = vmatprep.subr.bf16.mxu0 0
  %1004 = vmatpush1.bf16.msra.mxu0 %v443
  %1005 = vmatprep.subr.bf16.mxu0 0
  %1006 = vmatpush1.bf16.msra.mxu0 %v442
  %1007 = vmatprep.subr.bf16.mxu0 0
  %1008 = vmatpush1.bf16.msra.mxu0 %v441
  %1009 = vmatprep.subr.bf16.mxu0 0
  %1010 = vmatpush1.bf16.msra.mxu0 %v440
  %1011 = vmatprep.subr.bf16.mxu0 0
  %1012 = vmatpush1.bf16.msra.mxu0 %v439
  %1013 = vmatprep.subr.bf16.mxu0 0
  %1014 = vmatpush2.bf16.msra.mxu0 0
  %1015 = vmatprep.subr.bf16.mxu0 0
  %1016 = vmatpush2.bf16.msra.mxu0 0
  %1017 = vmatprep.subr.bf16.mxu0 0
  %1018 = vmatpush2.bf16.msra.mxu0 0
  %1019 = vmatprep.subr.bf16.mxu0 0
  %1020 = vmatpush2.bf16.msra.mxu0 0
  %1021 = vmatprep.subr.bf16.mxu0 0
  %1022 = vmatpush2.bf16.msra.mxu0 0
  %1023 = vmatprep.subr.bf16.mxu0 0
  %1024 = vmatpush2.bf16.msra.mxu0 0
  %1025 = vmatprep.subr.bf16.mxu0 0
  %1026 = vmatpush2.bf16.msra.mxu0 0
  %1027 = vmatprep.subr.bf16.mxu0 0
  %1028 = vmatpush2.bf16.msra.mxu0 0
  %1029 = vmatprep.mubr.bf16.mxu0 0
  %1030 = vmatmul.mubr.bf16.gmra.mxu0 %v993
  %v1031 = vpop.f32.mrf.mxu0
  %v1032 = vadd.f32 0.0, %v1031
  %v1033 = vpop.f32.mrf.mxu0
  %v1034 = vpop.f32.mrf.mxu0
  %v1035 = vadd.f32 0.0, %v1034
  %v1036 = vpop.f32.mrf.mxu0
  %1037 = vmatprep.mubr.bf16.mxu0 0
  %1038 = vmatmul.mubr.bf16.gmra.mxu0 %v994
  %v1039 = vpop.f32.mrf.mxu0
  %v1040 = vadd.f32 0.0, %v1039
  %v1041 = vpop.f32.mrf.mxu0
  %v1042 = vpop.f32.mrf.mxu0
  %v1043 = vadd.f32 0.0, %v1042
  %v1044 = vpop.f32.mrf.mxu0
  %1045 = vmatprep.mubr.bf16.mxu0 0
  %1046 = vmatmul.mubr.bf16.gmra.mxu0 %v995
  %v1047 = vpop.f32.mrf.mxu0
  %v1048 = vadd.f32 0.0, %v1047
  %v1049 = vpop.f32.mrf.mxu0
  %v1050 = vpop.f32.mrf.mxu0
  %v1051 = vadd.f32 0.0, %v1050
  %v1052 = vpop.f32.mrf.mxu0
  %1053 = vmatprep.mubr.bf16.mxu0 0
  %1054 = vmatmul.mubr.bf16.gmra.mxu0 %v996
  %v1055 = vpop.f32.mrf.mxu0
  %v1056 = vadd.f32 0.0, %v1055
  %v1057 = vpop.f32.mrf.mxu0
  %v1058 = vpop.f32.mrf.mxu0
  %v1059 = vadd.f32 0.0, %v1058
  %v1060 = vpop.f32.mrf.mxu0
  %1061 = vdwg.mxu0
  %v1062 = vpack.c.bf16 %v1035, %v1032
  %v1063 = vpack.c.bf16 %v1043, %v1040
  %v1064 = vpack.c.bf16 %v1051, %v1048
  %v1065 = vpack.c.bf16 %v1059, %v1056
  %1066 = vmatprep.subr.bf16.mxu0 0
  %1067 = vmatpush1.bf16.msra.mxu0 0
  %1068 = vmatprep.subr.bf16.mxu0 0
  %1069 = vmatpush1.bf16.msra.mxu0 0
  %1070 = vmatprep.subr.bf16.mxu0 0
  %1071 = vmatpush1.bf16.msra.mxu0 0
  %1072 = vmatprep.subr.bf16.mxu0 0
  %1073 = vmatpush1.bf16.msra.mxu0 0
  %1074 = vmatprep.subr.bf16.mxu0 0
  %1075 = vmatpush1.bf16.msra.mxu0 %v1065
  %1076 = vmatprep.subr.bf16.mxu0 0
  %1077 = vmatpush1.bf16.msra.mxu0 %v1064
  %1078 = vmatprep.subr.bf16.mxu0 0
  %1079 = vmatpush1.bf16.msra.mxu0 %v1063
  %1080 = vmatprep.subr.bf16.mxu0 0
  %1081 = vmatpush1.bf16.msra.mxu0 %v1062
  %1082 = vmatprep.subr.bf16.mxu0 0
  %1083 = vmatpush2.bf16.msra.mxu0 0
  %1084 = vmatprep.subr.bf16.mxu0 0
  %1085 = vmatpush2.bf16.msra.mxu0 0
  %1086 = vmatprep.subr.bf16.mxu0 0
  %1087 = vmatpush2.bf16.msra.mxu0 0
  %1088 = vmatprep.subr.bf16.mxu0 0
  %1089 = vmatpush2.bf16.msra.mxu0 0
  %1090 = vmatprep.subr.bf16.mxu0 0
  %1091 = vmatpush2.bf16.msra.mxu0 0
  %1092 = vmatprep.subr.bf16.mxu0 0
  %1093 = vmatpush2.bf16.msra.mxu0 0
  %1094 = vmatprep.subr.bf16.mxu0 0
  %1095 = vmatpush2.bf16.msra.mxu0 0
  %1096 = vmatprep.subr.bf16.mxu0 0
  %1097 = vmatpush2.bf16.msra.mxu0 0
  %1098 = vmatprep.mubr.bf16.mxu0 0
  %1099 = vmatmul.mubr.bf16.gmra.mxu0 %v171
  %v1100 = vpop.f32.mrf.mxu0
  %v1101 = vadd.f32 %v528, %v1100
  %v1102 = vpop.f32.mrf.mxu0
  %v1103 = vpop.f32.mrf.mxu0
  %v1104 = vadd.f32 %v528, %v1103
  %v1105 = vpop.f32.mrf.mxu0
  %1106 = vmatprep.mubr.bf16.mxu0 0
  %1107 = vmatmul.mubr.bf16.gmra.mxu0 %v174
  %v1108 = vpop.f32.mrf.mxu0
  %v1109 = vadd.f32 %v528, %v1108
  %v1110 = vpop.f32.mrf.mxu0
  %v1111 = vpop.f32.mrf.mxu0
  %v1112 = vadd.f32 %v528, %v1111
  %v1113 = vpop.f32.mrf.mxu0
  %1114 = vmatprep.mubr.bf16.mxu0 0
  %1115 = vmatmul.mubr.bf16.gmra.mxu0 %v177
  %v1116 = vpop.f32.mrf.mxu0
  %v1117 = vadd.f32 %v528, %v1116
  %v1118 = vpop.f32.mrf.mxu0
  %v1119 = vpop.f32.mrf.mxu0
  %v1120 = vadd.f32 %v528, %v1119
  %v1121 = vpop.f32.mrf.mxu0
  %1122 = vmatprep.mubr.bf16.mxu0 0
  %1123 = vmatmul.mubr.bf16.gmra.mxu0 %v180
  %v1124 = vpop.f32.mrf.mxu0
  %v1125 = vadd.f32 %v528, %v1124
  %v1126 = vpop.f32.mrf.mxu0
  %v1127 = vpop.f32.mrf.mxu0
  %v1128 = vadd.f32 %v528, %v1127
  %v1129 = vpop.f32.mrf.mxu0
  %1130 = vdwg.mxu0
  %1131 = vadd.xlane.f32.xlu0 %v1101
  %v1132 = vpop.xlane.xlu0 %1131
  %1133 = vadd.xlane.f32.xlu0 %v1104
  %v1134 = vpop.xlane.xlu0 %1133
  %1135 = vadd.xlane.f32.xlu0 %v1109
  %v1136 = vpop.xlane.xlu0 %1135
  %1137 = vadd.xlane.f32.xlu0 %v1112
  %v1138 = vpop.xlane.xlu0 %1137
  %1139 = vadd.xlane.f32.xlu0 %v1117
  %v1140 = vpop.xlane.xlu0 %1139
  %1141 = vadd.xlane.f32.xlu0 %v1120
  %v1142 = vpop.xlane.xlu0 %1141
  %1143 = vadd.xlane.f32.xlu0 %v1125
  %v1144 = vpop.xlane.xlu0 %1143
  %1145 = vadd.xlane.f32.xlu0 %v1128
  %v1146 = vpop.xlane.xlu0 %1145
  %v1147 = vmul.f32 %v1132, 0.015625
  %v1148 = vmul.f32 %v1134, 0.015625
  %v1149 = vmul.f32 %v1136, 0.015625
  %v1150 = vmul.f32 %v1138, 0.015625
  %v1151 = vmul.f32 %v1140, 0.015625
  %v1152 = vmul.f32 %v1142, 0.015625
  %v1153 = vmul.f32 %v1144, 0.015625
  %v1154 = vmul.f32 %v1146, 0.015625
  %v1155 = vsub.f32 %v1101, %v1147
  %v1156 = vsub.f32 %v1104, %v1148
  %v1157 = vsub.f32 %v1109, %v1149
  %v1158 = vsub.f32 %v1112, %v1150
  %v1159 = vsub.f32 %v1117, %v1151
  %v1160 = vsub.f32 %v1120, %v1152
  %v1161 = vsub.f32 %v1125, %v1153
  %v1162 = vsub.f32 %v1128, %v1154
  %v1163 = vmul.f32 %v1155, %v251
  %v1164 = vmul.f32 %v1156, %v251
  %v1165 = vmul.f32 %v1157, %v251
  %v1166 = vmul.f32 %v1158, %v251
  %v1167 = vmul.f32 %v1159, %v251
  %v1168 = vmul.f32 %v1160, %v251
  %v1169 = vmul.f32 %v1161, %v251
  %v1170 = vmul.f32 %v1162, %v251
  %v1171 = vmul.f32 %v1163, %v1163
  %v1172 = vmul.f32 %v1164, %v1164
  %v1173 = vmul.f32 %v1165, %v1165
  %v1174 = vmul.f32 %v1166, %v1166
  %v1175 = vmul.f32 %v1167, %v1167
  %v1176 = vmul.f32 %v1168, %v1168
  %v1177 = vmul.f32 %v1169, %v1169
  %v1178 = vmul.f32 %v1170, %v1170
  %1179 = vadd.xlane.f32.xlu0 %v1171
  %v1180 = vpop.xlane.xlu0 %1179
  %1181 = vadd.xlane.f32.xlu0 %v1172
  %v1182 = vpop.xlane.xlu0 %1181
  %1183 = vadd.xlane.f32.xlu0 %v1173
  %v1184 = vpop.xlane.xlu0 %1183
  %1185 = vadd.xlane.f32.xlu0 %v1174
  %v1186 = vpop.xlane.xlu0 %1185
  %1187 = vadd.xlane.f32.xlu0 %v1175
  %v1188 = vpop.xlane.xlu0 %1187
  %1189 = vadd.xlane.f32.xlu0 %v1176
  %v1190 = vpop.xlane.xlu0 %1189
  %1191 = vadd.xlane.f32.xlu0 %v1177
  %v1192 = vpop.xlane.xlu0 %1191
  %1193 = vadd.xlane.f32.xlu0 %v1178
  %v1194 = vpop.xlane.xlu0 %1193
  %v1195 = vmul.f32 %v1180, 0.015625
  %v1196 = vmul.f32 %v1182, 0.015625
  %v1197 = vmul.f32 %v1184, 0.015625
  %v1198 = vmul.f32 %v1186, 0.015625
  %v1199 = vmul.f32 %v1188, 0.015625
  %v1200 = vmul.f32 %v1190, 0.015625
  %v1201 = vmul.f32 %v1192, 0.015625
  %v1202 = vmul.f32 %v1194, 0.015625
  %v1203 = vadd.f32 %v1195, 1e-05
  %v1204 = vadd.f32 %v1196, 1e-05
  %v1205 = vadd.f32 %v1197, 1e-05
  %v1206 = vadd.f32 %v1198, 1e-05
  %v1207 = vadd.f32 %v1199, 1e-05
  %v1208 = vadd.f32 %v1200, 1e-05
  %v1209 = vadd.f32 %v1201, 1e-05
  %v1210 = vadd.f32 %v1202, 1e-05
  %v1211 = vrsqrt.pop %v1203
  %v1212 = vrsqrt.pop %v1204
  %v1213 = vrsqrt.pop %v1205
  %v1214 = vrsqrt.pop %v1206
  %v1215 = vrsqrt.pop %v1207
  %v1216 = vrsqrt.pop %v1208
  %v1217 = vrsqrt.pop %v1209
  %v1218 = vrsqrt.pop %v1210
  %v1219 = vmul.f32 %v1163, %v1211
  %v1220 = vmul.f32 %v1164, %v1212
  %v1221 = vmul.f32 %v1165, %v1213
  %v1222 = vmul.f32 %v1166, %v1214
  %v1223 = vmul.f32 %v1167, %v1215
  %v1224 = vmul.f32 %v1168, %v1216
  %v1225 = vmul.f32 %v1169, %v1217
  %v1226 = vmul.f32 %v1170, %v1218
  %v1227 = vmul.f32 %v1219, %v695
  %v1228 = vmul.f32 %v1220, %v695
  %v1229 = vmul.f32 %v1221, %v695
  %v1230 = vmul.f32 %v1222, %v695
  %v1231 = vmul.f32 %v1223, %v695
  %v1232 = vmul.f32 %v1224, %v695
  %v1233 = vmul.f32 %v1225, %v695
  %v1234 = vmul.f32 %v1226, %v695
  %v1235 = vadd.f32 %v1227, %v709
  %v1236 = vadd.f32 %v1228, %v709
  %v1237 = vadd.f32 %v1229, %v709
  %v1238 = vadd.f32 %v1230, %v709
  %v1239 = vadd.f32 %v1231, %v709
  %v1240 = vadd.f32 %v1232, %v709
  %v1241 = vadd.f32 %v1233, %v709
  %v1242 = vadd.f32 %v1234, %v709
  %v1243 = vmax.f32 %v1235, 0.0
  %v1244 = vmax.f32 %v1236, 0.0
  %v1245 = vmax.f32 %v1237, 0.0
  %v1246 = vmax.f32 %v1238, 0.0
  %v1247 = vmax.f32 %v1239, 0.0
  %v1248 = vmax.f32 %v1240, 0.0
  %v1249 = vmax.f32 %v1241, 0.0
  %v1250 = vmax.f32 %v1242, 0.0
  %v1251 = vpack.c.bf16 %v1244, %v1243
  %v1252 = vpack.c.bf16 %v1246, %v1245
  %v1253 = vpack.c.bf16 %v1248, %v1247
  %v1254 = vpack.c.bf16 %v1250, %v1249
  %1255 = vmatprep.subr.bf16.mxu0 0
  %1256 = vmatpush1.bf16.msra.mxu0 %v446
  %1257 = vmatprep.subr.bf16.mxu0 0
  %1258 = vmatpush1.bf16.msra.mxu0 %v445
  %1259 = vmatprep.subr.bf16.mxu0 0
  %1260 = vmatpush1.bf16.msra.mxu0 %v444
  %1261 = vmatprep.subr.bf16.mxu0 0
  %1262 = vmatpush1.bf16.msra.mxu0 %v443
  %1263 = vmatprep.subr.bf16.mxu0 0
  %1264 = vmatpush1.bf16.msra.mxu0 %v442
  %1265 = vmatprep.subr.bf16.mxu0 0
  %1266 = vmatpush1.bf16.msra.mxu0 %v441
  %1267 = vmatprep.subr.bf16.mxu0 0
  %1268 = vmatpush1.bf16.msra.mxu0 %v440
  %1269 = vmatprep.subr.bf16.mxu0 0
  %1270 = vmatpush1.bf16.msra.mxu0 %v439
  %1271 = vmatprep.subr.bf16.mxu0 0
  %1272 = vmatpush2.bf16.msra.mxu0 0
  %1273 = vmatprep.subr.bf16.mxu0 0
  %1274 = vmatpush2.bf16.msra.mxu0 0
  %1275 = vmatprep.subr.bf16.mxu0 0
  %1276 = vmatpush2.bf16.msra.mxu0 0
  %1277 = vmatprep.subr.bf16.mxu0 0
  %1278 = vmatpush2.bf16.msra.mxu0 0
  %1279 = vmatprep.subr.bf16.mxu0 0
  %1280 = vmatpush2.bf16.msra.mxu0 0
  %1281 = vmatprep.subr.bf16.mxu0 0
  %1282 = vmatpush2.bf16.msra.mxu0 0
  %1283 = vmatprep.subr.bf16.mxu0 0
  %1284 = vmatpush2.bf16.msra.mxu0 0
  %1285 = vmatprep.subr.bf16.mxu0 0
  %1286 = vmatpush2.bf16.msra.mxu0 0
  %1287 = vmatprep.mubr.bf16.mxu0 0
  %1288 = vmatmul.mubr.bf16.gmra.mxu0 %v1251
  %v1289 = vpop.f32.mrf.mxu0
  %v1290 = vadd.f32 0.0, %v1289
  %v1291 = vpop.f32.mrf.mxu0
  %v1292 = vpop.f32.mrf.mxu0
  %v1293 = vadd.f32 0.0, %v1292
  %v1294 = vpop.f32.mrf.mxu0
  %1295 = vmatprep.mubr.bf16.mxu0 0
  %1296 = vmatmul.mubr.bf16.gmra.mxu0 %v1252
  %v1297 = vpop.f32.mrf.mxu0
  %v1298 = vadd.f32 0.0, %v1297
  %v1299 = vpop.f32.mrf.mxu0
  %v1300 = vpop.f32.mrf.mxu0
  %v1301 = vadd.f32 0.0, %v1300
  %v1302 = vpop.f32.mrf.mxu0
  %1303 = vmatprep.mubr.bf16.mxu0 0
  %1304 = vmatmul.mubr.bf16.gmra.mxu0 %v1253
  %v1305 = vpop.f32.mrf.mxu0
  %v1306 = vadd.f32 0.0, %v1305
  %v1307 = vpop.f32.mrf.mxu0
  %v1308 = vpop.f32.mrf.mxu0
  %v1309 = vadd.f32 0.0, %v1308
  %v1310 = vpop.f32.mrf.mxu0
  %1311 = vmatprep.mubr.bf16.mxu0 0
  %1312 = vmatmul.mubr.bf16.gmra.mxu0 %v1254
  %v1313 = vpop.f32.mrf.mxu0
  %v1314 = vadd.f32 0.0, %v1313
  %v1315 = vpop.f32.mrf.mxu0
  %v1316 = vpop.f32.mrf.mxu0
  %v1317 = vadd.f32 0.0, %v1316
  %v1318 = vpop.f32.mrf.mxu0
  %1319 = vdwg.mxu0
  %v1320 = vpack.c.bf16 %v1293, %v1290
  %v1321 = vpack.c.bf16 %v1301, %v1298
  %v1322 = vpack.c.bf16 %v1309, %v1306
  %v1323 = vpack.c.bf16 %v1317, %v1314
  %1324 = vmatprep.subr.bf16.mxu0 0
  %1325 = vmatpush1.bf16.msra.mxu0 0
  %1326 = vmatprep.subr.bf16.mxu0 0
  %1327 = vmatpush1.bf16.msra.mxu0 0
  %1328 = vmatprep.subr.bf16.mxu0 0
  %1329 = vmatpush1.bf16.msra.mxu0 0
  %1330 = vmatprep.subr.bf16.mxu0 0
  %1331 = vmatpush1.bf16.msra.mxu0 0
  %1332 = vmatprep.subr.bf16.mxu0 0
  %1333 = vmatpush1.bf16.msra.mxu0 %v1323
  %1334 = vmatprep.subr.bf16.mxu0 0
  %1335 = vmatpush1.bf16.msra.mxu0 %v1322
  %1336 = vmatprep.subr.bf16.mxu0 0
  %1337 = vmatpush1.bf16.msra.mxu0 %v1321
  %1338 = vmatprep.subr.bf16.mxu0 0
  %1339 = vmatpush1.bf16.msra.mxu0 %v1320
  %1340 = vmatprep.subr.bf16.mxu0 0
  %1341 = vmatpush2.bf16.msra.mxu0 0
  %1342 = vmatprep.subr.bf16.mxu0 0
  %1343 = vmatpush2.bf16.msra.mxu0 0
  %1344 = vmatprep.subr.bf16.mxu0 0
  %1345 = vmatpush2.bf16.msra.mxu0 0
  %1346 = vmatprep.subr.bf16.mxu0 0
  %1347 = vmatpush2.bf16.msra.mxu0 0
  %1348 = vmatprep.subr.bf16.mxu0 0
  %1349 = vmatpush2.bf16.msra.mxu0 0
  %1350 = vmatprep.subr.bf16.mxu0 0
  %1351 = vmatpush2.bf16.msra.mxu0 0
  %1352 = vmatprep.subr.bf16.mxu0 0
  %1353 = vmatpush2.bf16.msra.mxu0 0
  %1354 = vmatprep.subr.bf16.mxu0 0
  %1355 = vmatpush2.bf16.msra.mxu0 0
  %1356 = vmatprep.mubr.bf16.mxu0 0
  %1357 = vmatmul.mubr.bf16.gmra.mxu0 %v171
  %v1358 = vpop.f32.mrf.mxu0
  %v1359 = vadd.f32 %v528, %v1358
  %v1360 = vpop.f32.mrf.mxu0
  %v1361 = vpop.f32.mrf.mxu0
  %v1362 = vadd.f32 %v528, %v1361
  %v1363 = vpop.f32.mrf.mxu0
  %1364 = vmatprep.mubr.bf16.mxu0 0
  %1365 = vmatmul.mubr.bf16.gmra.mxu0 %v174
  %v1366 = vpop.f32.mrf.mxu0
  %v1367 = vadd.f32 %v528, %v1366
  %v1368 = vpop.f32.mrf.mxu0
  %v1369 = vpop.f32.mrf.mxu0
  %v1370 = vadd.f32 %v528, %v1369
  %v1371 = vpop.f32.mrf.mxu0
  %1372 = vmatprep.mubr.bf16.mxu0 0
  %1373 = vmatmul.mubr.bf16.gmra.mxu0 %v177
  %v1374 = vpop.f32.mrf.mxu0
  %v1375 = vadd.f32 %v528, %v1374
  %v1376 = vpop.f32.mrf.mxu0
  %v1377 = vpop.f32.mrf.mxu0
  %v1378 = vadd.f32 %v528, %v1377
  %v1379 = vpop.f32.mrf.mxu0
  %1380 = vmatprep.mubr.bf16.mxu0 0
  %1381 = vmatmul.mubr.bf16.gmra.mxu0 %v180
  %v1382 = vpop.f32.mrf.mxu0
  %v1383 = vadd.f32 %v528, %v1382
  %v1384 = vpop.f32.mrf.mxu0
  %v1385 = vpop.f32.mrf.mxu0
  %v1386 = vadd.f32 %v528, %v1385
  %v1387 = vpop.f32.mrf.mxu0
  %1388 = vdwg.mxu0
  %1389 = vadd.xlane.f32.xlu0 %v1359
  %v1390 = vpop.xlane.xlu0 %1389
  %1391 = vadd.xlane.f32.xlu0 %v1362
  %v1392 = vpop.xlane.xlu0 %1391
  %1393 = vadd.xlane.f32.xlu0 %v1367
  %v1394 = vpop.xlane.xlu0 %1393
  %1395 = vadd.xlane.f32.xlu0 %v1370
  %v1396 = vpop.xlane.xlu0 %1395
  %1397 = vadd.xlane.f32.xlu0 %v1375
  %v1398 = vpop.xlane.xlu0 %1397
  %1399 = vadd.xlane.f32.xlu0 %v1378
  %v1400 = vpop.xlane.xlu0 %1399
  %1401 = vadd.xlane.f32.xlu0 %v1383
  %v1402 = vpop.xlane.xlu0 %1401
  %1403 = vadd.xlane.f32.xlu0 %v1386
  %v1404 = vpop.xlane.xlu0 %1403
  %v1405 = vmul.f32 %v1390, 0.015625
  %v1406 = vmul.f32 %v1392, 0.015625
  %v1407 = vmul.f32 %v1394, 0.015625
  %v1408 = vmul.f32 %v1396, 0.015625
  %v1409 = vmul.f32 %v1398, 0.015625
  %v1410 = vmul.f32 %v1400, 0.015625
  %v1411 = vmul.f32 %v1402, 0.015625
  %v1412 = vmul.f32 %v1404, 0.015625
  %v1413 = vsub.f32 %v1359, %v1405
  %v1414 = vsub.f32 %v1362, %v1406
  %v1415 = vsub.f32 %v1367, %v1407
  %v1416 = vsub.f32 %v1370, %v1408
  %v1417 = vsub.f32 %v1375, %v1409
  %v1418 = vsub.f32 %v1378, %v1410
  %v1419 = vsub.f32 %v1383, %v1411
  %v1420 = vsub.f32 %v1386, %v1412
  %v1421 = vmul.f32 %v1413, %v251
  %v1422 = vmul.f32 %v1414, %v251
  %v1423 = vmul.f32 %v1415, %v251
  %v1424 = vmul.f32 %v1416, %v251
  %v1425 = vmul.f32 %v1417, %v251
  %v1426 = vmul.f32 %v1418, %v251
  %v1427 = vmul.f32 %v1419, %v251
  %v1428 = vmul.f32 %v1420, %v251
  %v1429 = vmul.f32 %v1421, %v1421
  %v1430 = vmul.f32 %v1422, %v1422
  %v1431 = vmul.f32 %v1423, %v1423
  %v1432 = vmul.f32 %v1424, %v1424
  %v1433 = vmul.f32 %v1425, %v1425
  %v1434 = vmul.f32 %v1426, %v1426
  %v1435 = vmul.f32 %v1427, %v1427
  %v1436 = vmul.f32 %v1428, %v1428
  %1437 = vadd.xlane.f32.xlu0 %v1429
  %v1438 = vpop.xlane.xlu0 %1437
  %1439 = vadd.xlane.f32.xlu0 %v1430
  %v1440 = vpop.xlane.xlu0 %1439
  %1441 = vadd.xlane.f32.xlu0 %v1431
  %v1442 = vpop.xlane.xlu0 %1441
  %1443 = vadd.xlane.f32.xlu0 %v1432
  %v1444 = vpop.xlane.xlu0 %1443
  %1445 = vadd.xlane.f32.xlu0 %v1433
  %v1446 = vpop.xlane.xlu0 %1445
  %1447 = vadd.xlane.f32.xlu0 %v1434
  %v1448 = vpop.xlane.xlu0 %1447
  %1449 = vadd.xlane.f32.xlu0 %v1435
  %v1450 = vpop.xlane.xlu0 %1449
  %1451 = vadd.xlane.f32.xlu0 %v1436
  %v1452 = vpop.xlane.xlu0 %1451
  %v1453 = vmul.f32 %v1438, 0.015625
  %v1454 = vmul.f32 %v1440, 0.015625
  %v1455 = vmul.f32 %v1442, 0.015625
  %v1456 = vmul.f32 %v1444, 0.015625
  %v1457 = vmul.f32 %v1446, 0.015625
  %v1458 = vmul.f32 %v1448, 0.015625
  %v1459 = vmul.f32 %v1450, 0.015625
  %v1460 = vmul.f32 %v1452, 0.015625
  %v1461 = vadd.f32 %v1453, 1e-05
  %v1462 = vadd.f32 %v1454, 1e-05
  %v1463 = vadd.f32 %v1455, 1e-05
  %v1464 = vadd.f32 %v1456, 1e-05
  %v1465 = vadd.f32 %v1457, 1e-05
  %v1466 = vadd.f32 %v1458, 1e-05
  %v1467 = vadd.f32 %v1459, 1e-05
  %v1468 = vadd.f32 %v1460, 1e-05
  %v1469 = vrsqrt.pop %v1461
  %v1470 = vrsqrt.pop %v1462
  %v1471 = vrsqrt.pop %v1463
  %v1472 = vrsqrt.pop %v1464
  %v1473 = vrsqrt.pop %v1465
  %v1474 = vrsqrt.pop %v1466
  %v1475 = vrsqrt.pop %v1467
  %v1476 = vrsqrt.pop %v1468
  %v1477 = vmul.f32 %v1421, %v1469
  %v1478 = vmul.f32 %v1422, %v1470
  %v1479 = vmul.f32 %v1423, %v1471
  %v1480 = vmul.f32 %v1424, %v1472
  %v1481 = vmul.f32 %v1425, %v1473
  %v1482 = vmul.f32 %v1426, %v1474
  %v1483 = vmul.f32 %v1427, %v1475
  %v1484 = vmul.f32 %v1428, %v1476
  %v1485 = vmul.f32 %v1477, %v695
  %v1486 = vmul.f32 %v1478, %v695
  %v1487 = vmul.f32 %v1479, %v695
  %v1488 = vmul.f32 %v1480, %v695
  %v1489 = vmul.f32 %v1481, %v695
  %v1490 = vmul.f32 %v1482, %v695
  %v1491 = vmul.f32 %v1483, %v695
  %v1492 = vmul.f32 %v1484, %v695
  %v1493 = vadd.f32 %v1485, %v709
  %v1494 = vadd.f32 %v1486, %v709
  %v1495 = vadd.f32 %v1487, %v709
  %v1496 = vadd.f32 %v1488, %v709
  %v1497 = vadd.f32 %v1489, %v709
  %v1498 = vadd.f32 %v1490, %v709
  %v1499 = vadd.f32 %v1491, %v709
  %v1500 = vadd.f32 %v1492, %v709
  %v1501 = vmax.f32 %v1493, 0.0
  %v1502 = vmax.f32 %v1494, 0.0
  %v1503 = vmax.f32 %v1495, 0.0
  %v1504 = vmax.f32 %v1496, 0.0
  %v1505 = vmax.f32 %v1497, 0.0
  %v1506 = vmax.f32 %v1498, 0.0
  %v1507 = vmax.f32 %v1499, 0.0
  %v1508 = vmax.f32 %v1500, 0.0
  %v1509 = vadd.f32 %v1501, %v1243
  %v1510 = vadd.f32 %v1502, %v1244
  %v1511 = vadd.f32 %v1503, %v1245
  %v1512 = vadd.f32 %v1504, %v1246
  %v1513 = vadd.f32 %v1505, %v1247
  %v1514 = vadd.f32 %v1506, %v1248
  %v1515 = vadd.f32 %v1507, %v1249
  %v1516 = vadd.f32 %v1508, %v1250
  %v1517 = vpack.c.bf16 %v1510, %v1509
  %v1518 = vpack.c.bf16 %v1512, %v1511
  %v1519 = vpack.c.bf16 %v1514, %v1513
  %v1520 = vpack.c.bf16 %v1516, %v1515
  %1521 = vmatprep.subr.bf16.mxu0 0
  %1522 = vmatpush1.bf16.msra.mxu0 %v446
  %1523 = vmatprep.subr.bf16.mxu0 0
  %1524 = vmatpush1.bf16.msra.mxu0 %v445
  %1525 = vmatprep.subr.bf16.mxu0 0
  %1526 = vmatpush1.bf16.msra.mxu0 %v444
  %1527 = vmatprep.subr.bf16.mxu0 0
  %1528 = vmatpush1.bf16.msra.mxu0 %v443
  %1529 = vmatprep.subr.bf16.mxu0 0
  %1530 = vmatpush1.bf16.msra.mxu0 %v442
  %1531 = vmatprep.subr.bf16.mxu0 0
  %1532 = vmatpush1.bf16.msra.mxu0 %v441
  %1533 = vmatprep.subr.bf16.mxu0 0
  %1534 = vmatpush1.bf16.msra.mxu0 %v440
  %1535 = vmatprep.subr.bf16.mxu0 0
  %1536 = vmatpush1.bf16.msra.mxu0 %v439
  %1537 = vmatprep.subr.bf16.mxu0 0
  %1538 = vmatpush2.bf16.msra.mxu0 0
  %1539 = vmatprep.subr.bf16.mxu0 0
  %1540 = vmatpush2.bf16.msra.mxu0 0
  %1541 = vmatprep.subr.bf16.mxu0 0
  %1542 = vmatpush2.bf16.msra.mxu0 0
  %1543 = vmatprep.subr.bf16.mxu0 0
  %1544 = vmatpush2.bf16.msra.mxu0 0
  %1545 = vmatprep.subr.bf16.mxu0 0
  %1546 = vmatpush2.bf16.msra.mxu0 0
  %1547 = vmatprep.subr.bf16.mxu0 0
  %1548 = vmatpush2.bf16.msra.mxu0 0
  %1549 = vmatprep.subr.bf16.mxu0 0
  %1550 = vmatpush2.bf16.msra.mxu0 0
  %1551 = vmatprep.subr.bf16.mxu0 0
  %1552 = vmatpush2.bf16.msra.mxu0 0
  %1553 = vmatprep.mubr.bf16.mxu0 0
  %1554 = vmatmul.mubr.bf16.gmra.mxu0 %v1517
  %v1555 = vpop.f32.mrf.mxu0
  %v1556 = vadd.f32 0.0, %v1555
  %v1557 = vpop.f32.mrf.mxu0
  %v1558 = vpop.f32.mrf.mxu0
  %v1559 = vadd.f32 0.0, %v1558
  %v1560 = vpop.f32.mrf.mxu0
  %1561 = vmatprep.mubr.bf16.mxu0 0
  %1562 = vmatmul.mubr.bf16.gmra.mxu0 %v1518
  %v1563 = vpop.f32.mrf.mxu0
  %v1564 = vadd.f32 0.0, %v1563
  %v1565 = vpop.f32.mrf.mxu0
  %v1566 = vpop.f32.mrf.mxu0
  %v1567 = vadd.f32 0.0, %v1566
  %v1568 = vpop.f32.mrf.mxu0
  %1569 = vmatprep.mubr.bf16.mxu0 0
  %1570 = vmatmul.mubr.bf16.gmra.mxu0 %v1519
  %v1571 = vpop.f32.mrf.mxu0
  %v1572 = vadd.f32 0.0, %v1571
  %v1573 = vpop.f32.mrf.mxu0
  %v1574 = vpop.f32.mrf.mxu0
  %v1575 = vadd.f32 0.0, %v1574
  %v1576 = vpop.f32.mrf.mxu0
  %1577 = vmatprep.mubr.bf16.mxu0 0
  %1578 = vmatmul.mubr.bf16.gmra.mxu0 %v1520
  %v1579 = vpop.f32.mrf.mxu0
  %v1580 = vadd.f32 0.0, %v1579
  %v1581 = vpop.f32.mrf.mxu0
  %v1582 = vpop.f32.mrf.mxu0
  %v1583 = vadd.f32 0.0, %v1582
  %v1584 = vpop.f32.mrf.mxu0
  %1585 = vdwg.mxu0
  %v1586 = vpack.c.bf16 %v1559, %v1556
  %v1587 = vpack.c.bf16 %v1567, %v1564
  %v1588 = vpack.c.bf16 %v1575, %v1572
  %v1589 = vpack.c.bf16 %v1583, %v1580
  %1590 = vmatprep.subr.bf16.mxu0 0
  %1591 = vmatpush1.bf16.msra.mxu0 0
  %1592 = vmatprep.subr.bf16.mxu0 0
  %1593 = vmatpush1.bf16.msra.mxu0 0
  %1594 = vmatprep.subr.bf16.mxu0 0
  %1595 = vmatpush1.bf16.msra.mxu0 0
  %1596 = vmatprep.subr.bf16.mxu0 0
  %1597 = vmatpush1.bf16.msra.mxu0 0
  %1598 = vmatprep.subr.bf16.mxu0 0
  %1599 = vmatpush1.bf16.msra.mxu0 %v1589
  %1600 = vmatprep.subr.bf16.mxu0 0
  %1601 = vmatpush1.bf16.msra.mxu0 %v1588
  %1602 = vmatprep.subr.bf16.mxu0 0
  %1603 = vmatpush1.bf16.msra.mxu0 %v1587
  %1604 = vmatprep.subr.bf16.mxu0 0
  %1605 = vmatpush1.bf16.msra.mxu0 %v1586
  %1606 = vmatprep.subr.bf16.mxu0 0
  %1607 = vmatpush2.bf16.msra.mxu0 0
  %1608 = vmatprep.subr.bf16.mxu0 0
  %1609 = vmatpush2.bf16.msra.mxu0 0
  %1610 = vmatprep.subr.bf16.mxu0 0
  %1611 = vmatpush2.bf16.msra.mxu0 0
  %1612 = vmatprep.subr.bf16.mxu0 0
  %1613 = vmatpush2.bf16.msra.mxu0 0
  %1614 = vmatprep.subr.bf16.mxu0 0
  %1615 = vmatpush2.bf16.msra.mxu0 0
  %1616 = vmatprep.subr.bf16.mxu0 0
  %1617 = vmatpush2.bf16.msra.mxu0 0
  %1618 = vmatprep.subr.bf16.mxu0 0
  %1619 = vmatpush2.bf16.msra.mxu0 0
  %1620 = vmatprep.subr.bf16.mxu0 0
  %1621 = vmatpush2.bf16.msra.mxu0 0
  %1622 = vmatprep.mubr.bf16.mxu0 0
  %1623 = vmatmul.mubr.bf16.gmra.mxu0 %v171
  %v1624 = vpop.f32.mrf.mxu0
  %v1625 = vadd.f32 %v528, %v1624
  %v1626 = vpop.f32.mrf.mxu0
  %v1627 = vpop.f32.mrf.mxu0
  %v1628 = vadd.f32 %v528, %v1627
  %v1629 = vpop.f32.mrf.mxu0
  %1630 = vmatprep.mubr.bf16.mxu0 0
  %1631 = vmatmul.mubr.bf16.gmra.mxu0 %v174
  %v1632 = vpop.f32.mrf.mxu0
  %v1633 = vadd.f32 %v528, %v1632
  %v1634 = vpop.f32.mrf.mxu0
  %v1635 = vpop.f32.mrf.mxu0
  %v1636 = vadd.f32 %v528, %v1635
  %v1637 = vpop.f32.mrf.mxu0
  %1638 = vmatprep.mubr.bf16.mxu0 0
  %1639 = vmatmul.mubr.bf16.gmra.mxu0 %v177
  %v1640 = vpop.f32.mrf.mxu0
  %v1641 = vadd.f32 %v528, %v1640
  %v1642 = vpop.f32.mrf.mxu0
  %v1643 = vpop.f32.mrf.mxu0
  %v1644 = vadd.f32 %v528, %v1643
  %v1645 = vpop.f32.mrf.mxu0
  %1646 = vmatprep.mubr.bf16.mxu0 0
  %1647 = vmatmul.mubr.bf16.gmra.mxu0 %v180
  %v1648 = vpop.f32.mrf.mxu0
  %v1649 = vadd.f32 %v528, %v1648
  %v1650 = vpop.f32.mrf.mxu0
  %v1651 = vpop.f32.mrf.mxu0
  %v1652 = vadd.f32 %v528, %v1651
  %v1653 = vpop.f32.mrf.mxu0
  %1654 = vdwg.mxu0
  %1655 = vadd.xlane.f32.xlu0 %v1625
  %v1656 = vpop.xlane.xlu0 %1655
  %1657 = vadd.xlane.f32.xlu0 %v1628
  %v1658 = vpop.xlane.xlu0 %1657
  %1659 = vadd.xlane.f32.xlu0 %v1633
  %v1660 = vpop.xlane.xlu0 %1659
  %1661 = vadd.xlane.f32.xlu0 %v1636
  %v1662 = vpop.xlane.xlu0 %1661
  %1663 = vadd.xlane.f32.xlu0 %v1641
  %v1664 = vpop.xlane.xlu0 %1663
  %1665 = vadd.xlane.f32.xlu0 %v1644
  %v1666 = vpop.xlane.xlu0 %1665
  %1667 = vadd.xlane.f32.xlu0 %v1649
  %v1668 = vpop.xlane.xlu0 %1667
  %1669 = vadd.xlane.f32.xlu0 %v1652
  %v1670 = vpop.xlane.xlu0 %1669
  %v1671 = vmul.f32 %v1656, 0.015625
  %v1672 = vmul.f32 %v1658, 0.015625
  %v1673 = vmul.f32 %v1660, 0.015625
  %v1674 = vmul.f32 %v1662, 0.015625
  %v1675 = vmul.f32 %v1664, 0.015625
  %v1676 = vmul.f32 %v1666, 0.015625
  %v1677 = vmul.f32 %v1668, 0.015625
  %v1678 = vmul.f32 %v1670, 0.015625
  %v1679 = vsub.f32 %v1625, %v1671
  %v1680 = vsub.f32 %v1628, %v1672
  %v1681 = vsub.f32 %v1633, %v1673
  %v1682 = vsub.f32 %v1636, %v1674
  %v1683 = vsub.f32 %v1641, %v1675
  %v1684 = vsub.f32 %v1644, %v1676
  %v1685 = vsub.f32 %v1649, %v1677
  %v1686 = vsub.f32 %v1652, %v1678
  %v1687 = vmul.f32 %v1679, %v251
  %v1688 = vmul.f32 %v1680, %v251
  %v1689 = vmul.f32 %v1681, %v251
  %v1690 = vmul.f32 %v1682, %v251
  %v1691 = vmul.f32 %v1683, %v251
  %v1692 = vmul.f32 %v1684, %v251
  %v1693 = vmul.f32 %v1685, %v251
  %v1694 = vmul.f32 %v1686, %v251
  %v1695 = vmul.f32 %v1687, %v1687
  %v1696 = vmul.f32 %v1688, %v1688
  %v1697 = vmul.f32 %v1689, %v1689
  %v1698 = vmul.f32 %v1690, %v1690
  %v1699 = vmul.f32 %v1691, %v1691
  %v1700 = vmul.f32 %v1692, %v1692
  %v1701 = vmul.f32 %v1693, %v1693
  %v1702 = vmul.f32 %v1694, %v1694
  %1703 = vadd.xlane.f32.xlu0 %v1695
  %v1704 = vpop.xlane.xlu0 %1703
  %1705 = vadd.xlane.f32.xlu0 %v1696
  %v1706 = vpop.xlane.xlu0 %1705
  %1707 = vadd.xlane.f32.xlu0 %v1697
  %v1708 = vpop.xlane.xlu0 %1707
  %1709 = vadd.xlane.f32.xlu0 %v1698
  %v1710 = vpop.xlane.xlu0 %1709
  %1711 = vadd.xlane.f32.xlu0 %v1699
  %v1712 = vpop.xlane.xlu0 %1711
  %1713 = vadd.xlane.f32.xlu0 %v1700
  %v1714 = vpop.xlane.xlu0 %1713
  %1715 = vadd.xlane.f32.xlu0 %v1701
  %v1716 = vpop.xlane.xlu0 %1715
  %1717 = vadd.xlane.f32.xlu0 %v1702
  %v1718 = vpop.xlane.xlu0 %1717
  %v1719 = vmul.f32 %v1704, 0.015625
  %v1720 = vmul.f32 %v1706, 0.015625
  %v1721 = vmul.f32 %v1708, 0.015625
  %v1722 = vmul.f32 %v1710, 0.015625
  %v1723 = vmul.f32 %v1712, 0.015625
  %v1724 = vmul.f32 %v1714, 0.015625
  %v1725 = vmul.f32 %v1716, 0.015625
  %v1726 = vmul.f32 %v1718, 0.015625
  %v1727 = vadd.f32 %v1719, 1e-05
  %v1728 = vadd.f32 %v1720, 1e-05
  %v1729 = vadd.f32 %v1721, 1e-05
  %v1730 = vadd.f32 %v1722, 1e-05
  %v1731 = vadd.f32 %v1723, 1e-05
  %v1732 = vadd.f32 %v1724, 1e-05
  %v1733 = vadd.f32 %v1725, 1e-05
  %v1734 = vadd.f32 %v1726, 1e-05
  %v1735 = vrsqrt.pop %v1727
  %v1736 = vrsqrt.pop %v1728
  %v1737 = vrsqrt.pop %v1729
  %v1738 = vrsqrt.pop %v1730
  %v1739 = vrsqrt.pop %v1731
  %v1740 = vrsqrt.pop %v1732
  %v1741 = vrsqrt.pop %v1733
  %v1742 = vrsqrt.pop %v1734
  %v1743 = vmul.f32 %v1687, %v1735
  %v1744 = vmul.f32 %v1688, %v1736
  %v1745 = vmul.f32 %v1689, %v1737
  %v1746 = vmul.f32 %v1690, %v1738
  %v1747 = vmul.f32 %v1691, %v1739
  %v1748 = vmul.f32 %v1692, %v1740
  %v1749 = vmul.f32 %v1693, %v1741
  %v1750 = vmul.f32 %v1694, %v1742
  %v1751 = vmul.f32 %v1743, %v695
  %v1752 = vmul.f32 %v1744, %v695
  %v1753 = vmul.f32 %v1745, %v695
  %v1754 = vmul.f32 %v1746, %v695
  %v1755 = vmul.f32 %v1747, %v695
  %v1756 = vmul.f32 %v1748, %v695
  %v1757 = vmul.f32 %v1749, %v695
  %v1758 = vmul.f32 %v1750, %v695
  %v1759 = vadd.f32 %v1751, %v709
  %v1760 = vadd.f32 %v1752, %v709
  %v1761 = vadd.f32 %v1753, %v709
  %v1762 = vadd.f32 %v1754, %v709
  %v1763 = vadd.f32 %v1755, %v709
  %v1764 = vadd.f32 %v1756, %v709
  %v1765 = vadd.f32 %v1757, %v709
  %v1766 = vadd.f32 %v1758, %v709
  %v1767 = vmax.f32 %v1759, 0.0
  %v1768 = vmax.f32 %v1760, 0.0
  %v1769 = vmax.f32 %v1761, 0.0
  %v1770 = vmax.f32 %v1762, 0.0
  %v1771 = vmax.f32 %v1763, 0.0
  %v1772 = vmax.f32 %v1764, 0.0
  %v1773 = vmax.f32 %v1765, 0.0
  %v1774 = vmax.f32 %v1766, 0.0
  %v1775 = vpack.c.bf16 %v1768, %v1767
  %v1776 = vpack.c.bf16 %v1770, %v1769
  %v1777 = vpack.c.bf16 %v1772, %v1771
  %v1778 = vpack.c.bf16 %v1774, %v1773
  %1779 = vmatprep.subr.bf16.mxu0 0
  %1780 = vmatpush1.bf16.msra.mxu0 %v446
  %1781 = vmatprep.subr.bf16.mxu0 0
  %1782 = vmatpush1.bf16.msra.mxu0 %v445
  %1783 = vmatprep.subr.bf16.mxu0 0
  %1784 = vmatpush1.bf16.msra.mxu0 %v444
  %1785 = vmatprep.subr.bf16.mxu0 0
  %1786 = vmatpush1.bf16.msra.mxu0 %v443
  %1787 = vmatprep.subr.bf16.mxu0 0
  %1788 = vmatpush1.bf16.msra.mxu0 %v442
  %1789 = vmatprep.subr.bf16.mxu0 0
  %1790 = vmatpush1.bf16.msra.mxu0 %v441
  %1791 = vmatprep.subr.bf16.mxu0 0
  %1792 = vmatpush1.bf16.msra.mxu0 %v440
  %1793 = vmatprep.subr.bf16.mxu0 0
  %1794 = vmatpush1.bf16.msra.mxu0 %v439
  %1795 = vmatprep.subr.bf16.mxu0 0
  %1796 = vmatpush2.bf16.msra.mxu0 0
  %1797 = vmatprep.subr.bf16.mxu0 0
  %1798 = vmatpush2.bf16.msra.mxu0 0
  %1799 = vmatprep.subr.bf16.mxu0 0
  %1800 = vmatpush2.bf16.msra.mxu0 0
  %1801 = vmatprep.subr.bf16.mxu0 0
  %1802 = vmatpush2.bf16.msra.mxu0 0
  %1803 = vmatprep.subr.bf16.mxu0 0
  %1804 = vmatpush2.bf16.msra.mxu0 0
  %1805 = vmatprep.subr.bf16.mxu0 0
  %1806 = vmatpush2.bf16.msra.mxu0 0
  %1807 = vmatprep.subr.bf16.mxu0 0
  %1808 = vmatpush2.bf16.msra.mxu0 0
  %1809 = vmatprep.subr.bf16.mxu0 0
  %1810 = vmatpush2.bf16.msra.mxu0 0
  %1811 = vmatprep.mubr.bf16.mxu0 0
  %1812 = vmatmul.mubr.bf16.gmra.mxu0 %v1775
  %v1813 = vpop.f32.mrf.mxu0
  %v1814 = vadd.f32 0.0, %v1813
  %v1815 = vpop.f32.mrf.mxu0
  %v1816 = vpop.f32.mrf.mxu0
  %v1817 = vadd.f32 0.0, %v1816
  %v1818 = vpop.f32.mrf.mxu0
  %1819 = vmatprep.mubr.bf16.mxu0 0
  %1820 = vmatmul.mubr.bf16.gmra.mxu0 %v1776
  %v1821 = vpop.f32.mrf.mxu0
  %v1822 = vadd.f32 0.0, %v1821
  %v1823 = vpop.f32.mrf.mxu0
  %v1824 = vpop.f32.mrf.mxu0
  %v1825 = vadd.f32 0.0, %v1824
  %v1826 = vpop.f32.mrf.mxu0
  %1827 = vmatprep.mubr.bf16.mxu0 0
  %1828 = vmatmul.mubr.bf16.gmra.mxu0 %v1777
  %v1829 = vpop.f32.mrf.mxu0
  %v1830 = vadd.f32 0.0, %v1829
  %v1831 = vpop.f32.mrf.mxu0
  %v1832 = vpop.f32.mrf.mxu0
  %v1833 = vadd.f32 0.0, %v1832
  %v1834 = vpop.f32.mrf.mxu0
  %1835 = vmatprep.mubr.bf16.mxu0 0
  %1836 = vmatmul.mubr.bf16.gmra.mxu0 %v1778
  %v1837 = vpop.f32.mrf.mxu0
  %v1838 = vadd.f32 0.0, %v1837
  %v1839 = vpop.f32.mrf.mxu0
  %v1840 = vpop.f32.mrf.mxu0
  %v1841 = vadd.f32 0.0, %v1840
  %v1842 = vpop.f32.mrf.mxu0
  %1843 = vdwg.mxu0
  %v1844 = vpack.c.bf16 %v1817, %v1814
  %v1845 = vpack.c.bf16 %v1825, %v1822
  %v1846 = vpack.c.bf16 %v1833, %v1830
  %v1847 = vpack.c.bf16 %v1841, %v1838
  %1848 = vmatprep.subr.bf16.mxu0 0
  %1849 = vmatpush1.bf16.msra.mxu0 0
  %1850 = vmatprep.subr.bf16.mxu0 0
  %1851 = vmatpush1.bf16.msra.mxu0 0
  %1852 = vmatprep.subr.bf16.mxu0 0
  %1853 = vmatpush1.bf16.msra.mxu0 0
  %1854 = vmatprep.subr.bf16.mxu0 0
  %1855 = vmatpush1.bf16.msra.mxu0 0
  %1856 = vmatprep.subr.bf16.mxu0 0
  %1857 = vmatpush1.bf16.msra.mxu0 %v1847
  %1858 = vmatprep.subr.bf16.mxu0 0
  %1859 = vmatpush1.bf16.msra.mxu0 %v1846
  %1860 = vmatprep.subr.bf16.mxu0 0
  %1861 = vmatpush1.bf16.msra.mxu0 %v1845
  %1862 = vmatprep.subr.bf16.mxu0 0
  %1863 = vmatpush1.bf16.msra.mxu0 %v1844
  %1864 = vmatprep.subr.bf16.mxu0 0
  %1865 = vmatpush2.bf16.msra.mxu0 0
  %1866 = vmatprep.subr.bf16.mxu0 0
  %1867 = vmatpush2.bf16.msra.mxu0 0
  %1868 = vmatprep.subr.bf16.mxu0 0
  %1869 = vmatpush2.bf16.msra.mxu0 0
  %1870 = vmatprep.subr.bf16.mxu0 0
  %1871 = vmatpush2.bf16.msra.mxu0 0
  %1872 = vmatprep.subr.bf16.mxu0 0
  %1873 = vmatpush2.bf16.msra.mxu0 0
  %1874 = vmatprep.subr.bf16.mxu0 0
  %1875 = vmatpush2.bf16.msra.mxu0 0
  %1876 = vmatprep.subr.bf16.mxu0 0
  %1877 = vmatpush2.bf16.msra.mxu0 0
  %1878 = vmatprep.subr.bf16.mxu0 0
  %1879 = vmatpush2.bf16.msra.mxu0 0
  %1880 = vmatprep.mubr.bf16.mxu0 0
  %1881 = vmatmul.mubr.bf16.gmra.mxu0 %v171
  %v1882 = vpop.f32.mrf.mxu0
  %v1883 = vadd.f32 %v528, %v1882
  %v1884 = vpop.f32.mrf.mxu0
  %v1885 = vpop.f32.mrf.mxu0
  %v1886 = vadd.f32 %v528, %v1885
  %v1887 = vpop.f32.mrf.mxu0
  %1888 = vmatprep.mubr.bf16.mxu0 0
  %1889 = vmatmul.mubr.bf16.gmra.mxu0 %v174
  %v1890 = vpop.f32.mrf.mxu0
  %v1891 = vadd.f32 %v528, %v1890
  %v1892 = vpop.f32.mrf.mxu0
  %v1893 = vpop.f32.mrf.mxu0
  %v1894 = vadd.f32 %v528, %v1893
  %v1895 = vpop.f32.mrf.mxu0
  %1896 = vmatprep.mubr.bf16.mxu0 0
  %1897 = vmatmul.mubr.bf16.gmra.mxu0 %v177
  %v1898 = vpop.f32.mrf.mxu0
  %v1899 = vadd.f32 %v528, %v1898
  %v1900 = vpop.f32.mrf.mxu0
  %v1901 = vpop.f32.mrf.mxu0
  %v1902 = vadd.f32 %v528, %v1901
  %v1903 = vpop.f32.mrf.mxu0
  %1904 = vmatprep.mubr.bf16.mxu0 0
  %1905 = vmatmul.mubr.bf16.gmra.mxu0 %v180
  %v1906 = vpop.f32.mrf.mxu0
  %v1907 = vadd.f32 %v528, %v1906
  %v1908 = vpop.f32.mrf.mxu0
  %v1909 = vpop.f32.mrf.mxu0
  %v1910 = vadd.f32 %v528, %v1909
  %v1911 = vpop.f32.mrf.mxu0
  %1912 = vdwg.mxu0
  %1913 = vadd.xlane.f32.xlu0 %v1883
  %v1914 = vpop.xlane.xlu0 %1913
  %1915 = vadd.xlane.f32.xlu0 %v1886
  %v1916 = vpop.xlane.xlu0 %1915
  %1917 = vadd.xlane.f32.xlu0 %v1891
  %v1918 = vpop.xlane.xlu0 %1917
  %1919 = vadd.xlane.f32.xlu0 %v1894
  %v1920 = vpop.xlane.xlu0 %1919
  %1921 = vadd.xlane.f32.xlu0 %v1899
  %v1922 = vpop.xlane.xlu0 %1921
  %1923 = vadd.xlane.f32.xlu0 %v1902
  %v1924 = vpop.xlane.xlu0 %1923
  %1925 = vadd.xlane.f32.xlu0 %v1907
  %v1926 = vpop.xlane.xlu0 %1925
  %1927 = vadd.xlane.f32.xlu0 %v1910
  %v1928 = vpop.xlane.xlu0 %1927
  %v1929 = vmul.f32 %v1914, 0.015625
  %v1930 = vmul.f32 %v1916, 0.015625
  %v1931 = vmul.f32 %v1918, 0.015625
  %v1932 = vmul.f32 %v1920, 0.015625
  %v1933 = vmul.f32 %v1922, 0.015625
  %v1934 = vmul.f32 %v1924, 0.015625
  %v1935 = vmul.f32 %v1926, 0.015625
  %v1936 = vmul.f32 %v1928, 0.015625
  %v1937 = vsub.f32 %v1883, %v1929
  %v1938 = vsub.f32 %v1886, %v1930
  %v1939 = vsub.f32 %v1891, %v1931
  %v1940 = vsub.f32 %v1894, %v1932
  %v1941 = vsub.f32 %v1899, %v1933
  %v1942 = vsub.f32 %v1902, %v1934
  %v1943 = vsub.f32 %v1907, %v1935
  %v1944 = vsub.f32 %v1910, %v1936
  %v1945 = vmul.f32 %v1937, %v251
  %v1946 = vmul.f32 %v1938, %v251
  %v1947 = vmul.f32 %v1939, %v251
  %v1948 = vmul.f32 %v1940, %v251
  %v1949 = vmul.f32 %v1941, %v251
  %v1950 = vmul.f32 %v1942, %v251
  %v1951 = vmul.f32 %v1943, %v251
  %v1952 = vmul.f32 %v1944, %v251
  %v1953 = vmul.f32 %v1945, %v1945
  %v1954 = vmul.f32 %v1946, %v1946
  %v1955 = vmul.f32 %v1947, %v1947
  %v1956 = vmul.f32 %v1948, %v1948
  %v1957 = vmul.f32 %v1949, %v1949
  %v1958 = vmul.f32 %v1950, %v1950
  %v1959 = vmul.f32 %v1951, %v1951
  %v1960 = vmul.f32 %v1952, %v1952
  %1961 = vadd.xlane.f32.xlu0 %v1953
  %v1962 = vpop.xlane.xlu0 %1961
  %1963 = vadd.xlane.f32.xlu0 %v1954
  %v1964 = vpop.xlane.xlu0 %1963
  %1965 = vadd.xlane.f32.xlu0 %v1955
  %v1966 = vpop.xlane.xlu0 %1965
  %1967 = vadd.xlane.f32.xlu0 %v1956
  %v1968 = vpop.xlane.xlu0 %1967
  %1969 = vadd.xlane.f32.xlu0 %v1957
  %v1970 = vpop.xlane.xlu0 %1969
  %1971 = vadd.xlane.f32.xlu0 %v1958
  %v1972 = vpop.xlane.xlu0 %1971
  %1973 = vadd.xlane.f32.xlu0 %v1959
  %v1974 = vpop.xlane.xlu0 %1973
  %1975 = vadd.xlane.f32.xlu0 %v1960
  %v1976 = vpop.xlane.xlu0 %1975
  %v1977 = vmul.f32 %v1962, 0.015625
  %v1978 = vmul.f32 %v1964, 0.015625
  %v1979 = vmul.f32 %v1966, 0.015625
  %v1980 = vmul.f32 %v1968, 0.015625
  %v1981 = vmul.f32 %v1970, 0.015625
  %v1982 = vmul.f32 %v1972, 0.015625
  %v1983 = vmul.f32 %v1974, 0.015625
  %v1984 = vmul.f32 %v1976, 0.015625
  %v1985 = vadd.f32 %v1977, 1e-05
  %v1986 = vadd.f32 %v1978, 1e-05
  %v1987 = vadd.f32 %v1979, 1e-05
  %v1988 = vadd.f32 %v1980, 1e-05
  %v1989 = vadd.f32 %v1981, 1e-05
  %v1990 = vadd.f32 %v1982, 1e-05
  %v1991 = vadd.f32 %v1983, 1e-05
  %v1992 = vadd.f32 %v1984, 1e-05
  %v1993 = vrsqrt.pop %v1985
  %v1994 = vrsqrt.pop %v1986
  %v1995 = vrsqrt.pop %v1987
  %v1996 = vrsqrt.pop %v1988
  %v1997 = vrsqrt.pop %v1989
  %v1998 = vrsqrt.pop %v1990
  %v1999 = vrsqrt.pop %v1991
  %v2000 = vrsqrt.pop %v1992
  %v2001 = vmul.f32 %v1945, %v1993
  %v2002 = vmul.f32 %v1946, %v1994
  %v2003 = vmul.f32 %v1947, %v1995
  %v2004 = vmul.f32 %v1948, %v1996
  %v2005 = vmul.f32 %v1949, %v1997
  %v2006 = vmul.f32 %v1950, %v1998
  %v2007 = vmul.f32 %v1951, %v1999
  %v2008 = vmul.f32 %v1952, %v2000
  %v2009 = vmul.f32 %v2001, %v695
  %v2010 = vmul.f32 %v2002, %v695
  %v2011 = vmul.f32 %v2003, %v695
  %v2012 = vmul.f32 %v2004, %v695
  %v2013 = vmul.f32 %v2005, %v695
  %v2014 = vmul.f32 %v2006, %v695
  %v2015 = vmul.f32 %v2007, %v695
  %v2016 = vmul.f32 %v2008, %v695
  %v2017 = vadd.f32 %v2009, %v709
  %v2018 = vadd.f32 %v2010, %v709
  %v2019 = vadd.f32 %v2011, %v709
  %v2020 = vadd.f32 %v2012, %v709
  %v2021 = vadd.f32 %v2013, %v709
  %v2022 = vadd.f32 %v2014, %v709
  %v2023 = vadd.f32 %v2015, %v709
  %v2024 = vadd.f32 %v2016, %v709
  %v2025 = vmax.f32 %v2017, 0.0
  %v2026 = vmax.f32 %v2018, 0.0
  %v2027 = vmax.f32 %v2019, 0.0
  %v2028 = vmax.f32 %v2020, 0.0
  %v2029 = vmax.f32 %v2021, 0.0
  %v2030 = vmax.f32 %v2022, 0.0
  %v2031 = vmax.f32 %v2023, 0.0
  %v2032 = vmax.f32 %v2024, 0.0
  %v2033 = vadd.f32 %v2025, %v1767
  %v2034 = vadd.f32 %v2026, %v1768
  %v2035 = vadd.f32 %v2027, %v1769
  %v2036 = vadd.f32 %v2028, %v1770
  %v2037 = vadd.f32 %v2029, %v1771
  %v2038 = vadd.f32 %v2030, %v1772
  %v2039 = vadd.f32 %v2031, %v1773
  %v2040 = vadd.f32 %v2032, %v1774
  %v2041 = vpack.c.bf16 %v2034, %v2033
  %v2042 = vpack.c.bf16 %v2036, %v2035
  %v2043 = vpack.c.bf16 %v2038, %v2037
  %v2044 = vpack.c.bf16 %v2040, %v2039
  %v2045 = vld [vmem:[%s10] sm:$0xf]
  %v2046 = vld [vmem:[%s10 + $0x4] sm:$0xf]
  %v2047 = vld [vmem:[%s10 + $0x8] sm:$0xf]
  %v2048 = vld [vmem:[%s10 + $0xc] sm:$0xf]
  %v2049 = vld [vmem:[%s10 + $0x10] sm:$0xf]
  %v2050 = vld [vmem:[%s10 + $0x14] sm:$0xf]
  %v2051 = vld [vmem:[%s10 + $0x18] sm:$0xf]
  %v2052 = vld [vmem:[%s10 + $0x1c] sm:$0xf]
  %v2053 = vld [vmem:[%s10 + $0x20] sm:$0xf]
  %v2054 = vld [vmem:[%s10 + $0x24] sm:$0xf]
  %v2055 = vld [vmem:[%s10 + $0x28] sm:$0xf]
  %v2056 = vld [vmem:[%s10 + $0x2c] sm:$0xf]
  %v2057 = vld [vmem:[%s10 + $0x30] sm:$0xf]
  %v2058 = vld [vmem:[%s10 + $0x34] sm:$0xf]
  %v2059 = vld [vmem:[%s10 + $0x38] sm:$0xf]
  %v2060 = vld [vmem:[%s10 + $0x3c] sm:$0xf]
  %v2077 = vunpack.c.l.b16 %v2045
  %v2078 = vunpack.c.l.b16 %v2046
  %v2079 = vunpack.c.l.b16 %v2047
  %v2080 = vunpack.c.l.b16 %v2048
  %v2081 = vunpack.c.l.b16 %v2049
  %v2082 = vunpack.c.l.b16 %v2050
  %v2083 = vunpack.c.l.b16 %v2051
  %v2084 = vunpack.c.l.b16 %v2052
  %v2085 = vunpack.c.l.b16 %v2053
  %v2086 = vunpack.c.l.b16 %v2054
  %v2087 = vunpack.c.l.b16 %v2055
  %v2088 = vunpack.c.l.b16 %v2056
  %v2089 = vunpack.c.l.b16 %v2057
  %v2090 = vunpack.c.l.b16 %v2058
  %v2091 = vunpack.c.l.b16 %v2059
  %v2092 = vunpack.c.l.b16 %v2060
  %v2093 = vpack.c.b16 %v2078, %v2077
  %v2094 = vpack.c.b16 %v2080, %v2079
  %v2095 = vpack.c.b16 %v2082, %v2081
  %v2096 = vpack.c.b16 %v2084, %v2083
  %v2097 = vpack.c.b16 %v2086, %v2085
  %v2098 = vpack.c.b16 %v2088, %v2087
  %v2099 = vpack.c.b16 %v2090, %v2089
  %v2100 = vpack.c.b16 %v2092, %v2091
  %2109 = vmatprep.subr.bf16.mxu0 0
  %2110 = vmatpush1.bf16.msra.mxu0 %v2100
  %2111 = vmatprep.subr.bf16.mxu0 0
  %2112 = vmatpush1.bf16.msra.mxu0 %v2099
  %2113 = vmatprep.subr.bf16.mxu0 0
  %2114 = vmatpush1.bf16.msra.mxu0 %v2098
  %2115 = vmatprep.subr.bf16.mxu0 0
  %2116 = vmatpush1.bf16.msra.mxu0 %v2097
  %2117 = vmatprep.subr.bf16.mxu0 0
  %2118 = vmatpush1.bf16.msra.mxu0 %v2096
  %2119 = vmatprep.subr.bf16.mxu0 0
  %2120 = vmatpush1.bf16.msra.mxu0 %v2095
  %2121 = vmatprep.subr.bf16.mxu0 0
  %2122 = vmatpush1.bf16.msra.mxu0 %v2094
  %2123 = vmatprep.subr.bf16.mxu0 0
  %2124 = vmatpush1.bf16.msra.mxu0 %v2093
  %2125 = vmatprep.subr.bf16.mxu0 0
  %2126 = vmatpush2.bf16.msra.mxu0 0
  %2127 = vmatprep.subr.bf16.mxu0 0
  %2128 = vmatpush2.bf16.msra.mxu0 0
  %2129 = vmatprep.subr.bf16.mxu0 0
  %2130 = vmatpush2.bf16.msra.mxu0 0
  %2131 = vmatprep.subr.bf16.mxu0 0
  %2132 = vmatpush2.bf16.msra.mxu0 0
  %2133 = vmatprep.subr.bf16.mxu0 0
  %2134 = vmatpush2.bf16.msra.mxu0 0
  %2135 = vmatprep.subr.bf16.mxu0 0
  %2136 = vmatpush2.bf16.msra.mxu0 0
  %2137 = vmatprep.subr.bf16.mxu0 0
  %2138 = vmatpush2.bf16.msra.mxu0 0
  %2139 = vmatprep.subr.bf16.mxu0 0
  %2140 = vmatpush2.bf16.msra.mxu0 0
  %2141 = vmatprep.mubr.bf16.mxu0 0
  %2142 = vmatmul.mubr.bf16.gmra.mxu0 %v2041
  %v2143 = vpop.f32.mrf.mxu0
  %v2144 = vadd.f32 0.0, %v2143
  %v2145 = vpop.f32.mrf.mxu0
  %v2146 = vpop.f32.mrf.mxu0
  %v2147 = vadd.f32 0.0, %v2146
  %v2148 = vpop.f32.mrf.mxu0
  %2149 = vmatprep.mubr.bf16.mxu0 0
  %2150 = vmatmul.mubr.bf16.gmra.mxu0 %v2042
  %v2151 = vpop.f32.mrf.mxu0
  %v2152 = vadd.f32 0.0, %v2151
  %v2153 = vpop.f32.mrf.mxu0
  %v2154 = vpop.f32.mrf.mxu0
  %v2155 = vadd.f32 0.0, %v2154
  %v2156 = vpop.f32.mrf.mxu0
  %2157 = vmatprep.mubr.bf16.mxu0 0
  %2158 = vmatmul.mubr.bf16.gmra.mxu0 %v2043
  %v2159 = vpop.f32.mrf.mxu0
  %v2160 = vadd.f32 0.0, %v2159
  %v2161 = vpop.f32.mrf.mxu0
  %v2162 = vpop.f32.mrf.mxu0
  %v2163 = vadd.f32 0.0, %v2162
  %v2164 = vpop.f32.mrf.mxu0
  %2165 = vmatprep.mubr.bf16.mxu0 0
  %2166 = vmatmul.mubr.bf16.gmra.mxu0 %v2044
  %v2167 = vpop.f32.mrf.mxu0
  %v2168 = vadd.f32 0.0, %v2167
  %v2169 = vpop.f32.mrf.mxu0
  %v2170 = vpop.f32.mrf.mxu0
  %v2171 = vadd.f32 0.0, %v2170
  %v2172 = vpop.f32.mrf.mxu0
  %2173 = vdwg.mxu0
  %v2174 = vld [vmem:[%s11] sm:$0x1]
  %v2175 = vld [vmem:[%s12] sm:$0x1]
  %v2176 = vld [vmem:[%s13] sm:$0x1]
  %v2177 = vpack.c.bf16 %v2147, %v2144
  %v2178 = vpack.c.bf16 %v2155, %v2152
  %v2179 = vpack.c.bf16 %v2163, %v2160
  %v2180 = vpack.c.bf16 %v2171, %v2168
  %v2182 = vlaneseq
  %v2183 = vshrl.u32 %v2182, 7
  %v2184 = vsub.s32 0, %v2183
  %v2185 = vrot.slane %v2174, %v2184
  %2187 = vmatprep.subr.bf16.mxu0 0
  %2188 = vmatpush1.bf16.msra.mxu0 0
  %2189 = vmatprep.subr.bf16.mxu0 0
  %2190 = vmatpush1.bf16.msra.mxu0 0
  %2191 = vmatprep.subr.bf16.mxu0 0
  %2192 = vmatpush1.bf16.msra.mxu0 0
  %2193 = vmatprep.subr.bf16.mxu0 0
  %2194 = vmatpush1.bf16.msra.mxu0 0
  %2195 = vmatprep.subr.bf16.mxu0 0
  %2196 = vmatpush1.bf16.msra.mxu0 %v2180
  %2197 = vmatprep.subr.bf16.mxu0 0
  %2198 = vmatpush1.bf16.msra.mxu0 %v2179
  %2199 = vmatprep.subr.bf16.mxu0 0
  %2200 = vmatpush1.bf16.msra.mxu0 %v2178
  %2201 = vmatprep.subr.bf16.mxu0 0
  %2202 = vmatpush1.bf16.msra.mxu0 %v2177
  %2203 = vmatprep.subr.bf16.mxu0 0
  %2204 = vmatpush2.bf16.msra.mxu0 0
  %2205 = vmatprep.subr.bf16.mxu0 0
  %2206 = vmatpush2.bf16.msra.mxu0 0
  %2207 = vmatprep.subr.bf16.mxu0 0
  %2208 = vmatpush2.bf16.msra.mxu0 0
  %2209 = vmatprep.subr.bf16.mxu0 0
  %2210 = vmatpush2.bf16.msra.mxu0 0
  %2211 = vmatprep.subr.bf16.mxu0 0
  %2212 = vmatpush2.bf16.msra.mxu0 0
  %2213 = vmatprep.subr.bf16.mxu0 0
  %2214 = vmatpush2.bf16.msra.mxu0 0
  %2215 = vmatprep.subr.bf16.mxu0 0
  %2216 = vmatpush2.bf16.msra.mxu0 0
  %2217 = vmatprep.subr.bf16.mxu0 0
  %2218 = vmatpush2.bf16.msra.mxu0 0
  %2219 = vmatprep.mubr.bf16.mxu0 0
  %2220 = vmatmul.mubr.bf16.gmra.mxu0 %v171
  %v2221 = vpop.f32.mrf.mxu0
  %v2222 = vadd.f32 %v2185, %v2221
  %v2223 = vpop.f32.mrf.mxu0
  %v2224 = vpop.f32.mrf.mxu0
  %v2225 = vadd.f32 %v2185, %v2224
  %v2226 = vpop.f32.mrf.mxu0
  %2227 = vmatprep.mubr.bf16.mxu0 0
  %2228 = vmatmul.mubr.bf16.gmra.mxu0 %v174
  %v2229 = vpop.f32.mrf.mxu0
  %v2230 = vadd.f32 %v2185, %v2229
  %v2231 = vpop.f32.mrf.mxu0
  %v2232 = vpop.f32.mrf.mxu0
  %v2233 = vadd.f32 %v2185, %v2232
  %v2234 = vpop.f32.mrf.mxu0
  %2235 = vmatprep.mubr.bf16.mxu0 0
  %2236 = vmatmul.mubr.bf16.gmra.mxu0 %v177
  %v2237 = vpop.f32.mrf.mxu0
  %v2238 = vadd.f32 %v2185, %v2237
  %v2239 = vpop.f32.mrf.mxu0
  %v2240 = vpop.f32.mrf.mxu0
  %v2241 = vadd.f32 %v2185, %v2240
  %v2242 = vpop.f32.mrf.mxu0
  %2243 = vmatprep.mubr.bf16.mxu0 0
  %2244 = vmatmul.mubr.bf16.gmra.mxu0 %v180
  %v2245 = vpop.f32.mrf.mxu0
  %v2246 = vadd.f32 %v2185, %v2245
  %v2247 = vpop.f32.mrf.mxu0
  %v2248 = vpop.f32.mrf.mxu0
  %v2249 = vadd.f32 %v2185, %v2248
  %v2250 = vpop.f32.mrf.mxu0
  %2251 = vdwg.mxu0
  %2252 = vadd.xlane.f32.xlu0 %v2222
  %v2253 = vpop.xlane.xlu0 %2252
  %2254 = vadd.xlane.f32.xlu0 %v2225
  %v2255 = vpop.xlane.xlu0 %2254
  %2256 = vadd.xlane.f32.xlu0 %v2230
  %v2257 = vpop.xlane.xlu0 %2256
  %2258 = vadd.xlane.f32.xlu0 %v2233
  %v2259 = vpop.xlane.xlu0 %2258
  %2260 = vadd.xlane.f32.xlu0 %v2238
  %v2261 = vpop.xlane.xlu0 %2260
  %2262 = vadd.xlane.f32.xlu0 %v2241
  %v2263 = vpop.xlane.xlu0 %2262
  %2264 = vadd.xlane.f32.xlu0 %v2246
  %v2265 = vpop.xlane.xlu0 %2264
  %2266 = vadd.xlane.f32.xlu0 %v2249
  %v2267 = vpop.xlane.xlu0 %2266
  %v2268 = vmul.f32 %v2253, 0.015625
  %v2269 = vmul.f32 %v2255, 0.015625
  %v2270 = vmul.f32 %v2257, 0.015625
  %v2271 = vmul.f32 %v2259, 0.015625
  %v2272 = vmul.f32 %v2261, 0.015625
  %v2273 = vmul.f32 %v2263, 0.015625
  %v2274 = vmul.f32 %v2265, 0.015625
  %v2275 = vmul.f32 %v2267, 0.015625
  %v2276 = vsub.f32 %v2222, %v2268
  %v2277 = vsub.f32 %v2225, %v2269
  %v2278 = vsub.f32 %v2230, %v2270
  %v2279 = vsub.f32 %v2233, %v2271
  %v2280 = vsub.f32 %v2238, %v2272
  %v2281 = vsub.f32 %v2241, %v2273
  %v2282 = vsub.f32 %v2246, %v2274
  %v2283 = vsub.f32 %v2249, %v2275
  %v2284 = vmul.f32 %v2276, %v251
  %v2285 = vmul.f32 %v2277, %v251
  %v2286 = vmul.f32 %v2278, %v251
  %v2287 = vmul.f32 %v2279, %v251
  %v2288 = vmul.f32 %v2280, %v251
  %v2289 = vmul.f32 %v2281, %v251
  %v2290 = vmul.f32 %v2282, %v251
  %v2291 = vmul.f32 %v2283, %v251
  %v2292 = vmul.f32 %v2284, %v2284
  %v2293 = vmul.f32 %v2285, %v2285
  %v2294 = vmul.f32 %v2286, %v2286
  %v2295 = vmul.f32 %v2287, %v2287
  %v2296 = vmul.f32 %v2288, %v2288
  %v2297 = vmul.f32 %v2289, %v2289
  %v2298 = vmul.f32 %v2290, %v2290
  %v2299 = vmul.f32 %v2291, %v2291
  %2300 = vadd.xlane.f32.xlu0 %v2292
  %v2301 = vpop.xlane.xlu0 %2300
  %2302 = vadd.xlane.f32.xlu0 %v2293
  %v2303 = vpop.xlane.xlu0 %2302
  %2304 = vadd.xlane.f32.xlu0 %v2294
  %v2305 = vpop.xlane.xlu0 %2304
  %2306 = vadd.xlane.f32.xlu0 %v2295
  %v2307 = vpop.xlane.xlu0 %2306
  %2308 = vadd.xlane.f32.xlu0 %v2296
  %v2309 = vpop.xlane.xlu0 %2308
  %2310 = vadd.xlane.f32.xlu0 %v2297
  %v2311 = vpop.xlane.xlu0 %2310
  %2312 = vadd.xlane.f32.xlu0 %v2298
  %v2313 = vpop.xlane.xlu0 %2312
  %2314 = vadd.xlane.f32.xlu0 %v2299
  %v2315 = vpop.xlane.xlu0 %2314
  %v2316 = vmul.f32 %v2301, 0.015625
  %v2317 = vmul.f32 %v2303, 0.015625
  %v2318 = vmul.f32 %v2305, 0.015625
  %v2319 = vmul.f32 %v2307, 0.015625
  %v2320 = vmul.f32 %v2309, 0.015625
  %v2321 = vmul.f32 %v2311, 0.015625
  %v2322 = vmul.f32 %v2313, 0.015625
  %v2323 = vmul.f32 %v2315, 0.015625
  %v2324 = vadd.f32 %v2316, 1e-05
  %v2325 = vadd.f32 %v2317, 1e-05
  %v2326 = vadd.f32 %v2318, 1e-05
  %v2327 = vadd.f32 %v2319, 1e-05
  %v2328 = vadd.f32 %v2320, 1e-05
  %v2329 = vadd.f32 %v2321, 1e-05
  %v2330 = vadd.f32 %v2322, 1e-05
  %v2331 = vadd.f32 %v2323, 1e-05
  %v2332 = vrsqrt.pop %v2324
  %v2333 = vrsqrt.pop %v2325
  %v2334 = vrsqrt.pop %v2326
  %v2335 = vrsqrt.pop %v2327
  %v2336 = vrsqrt.pop %v2328
  %v2337 = vrsqrt.pop %v2329
  %v2338 = vrsqrt.pop %v2330
  %v2339 = vrsqrt.pop %v2331
  %v2340 = vmul.f32 %v2284, %v2332
  %v2341 = vmul.f32 %v2285, %v2333
  %v2342 = vmul.f32 %v2286, %v2334
  %v2343 = vmul.f32 %v2287, %v2335
  %v2344 = vmul.f32 %v2288, %v2336
  %v2345 = vmul.f32 %v2289, %v2337
  %v2346 = vmul.f32 %v2290, %v2338
  %v2347 = vmul.f32 %v2291, %v2339
  %v2349 = vlaneseq
  %v2350 = vshrl.u32 %v2349, 7
  %v2351 = vsub.s32 0, %v2350
  %v2352 = vrot.slane %v2175, %v2351
  %v2354 = vmul.f32 %v2340, %v2352
  %v2355 = vmul.f32 %v2341, %v2352
  %v2356 = vmul.f32 %v2342, %v2352
  %v2357 = vmul.f32 %v2343, %v2352
  %v2358 = vmul.f32 %v2344, %v2352
  %v2359 = vmul.f32 %v2345, %v2352
  %v2360 = vmul.f32 %v2346, %v2352
  %v2361 = vmul.f32 %v2347, %v2352
  %v2363 = vlaneseq
  %v2364 = vshrl.u32 %v2363, 7
  %v2365 = vsub.s32 0, %v2364
  %v2366 = vrot.slane %v2176, %v2365
  %v2368 = vadd.f32 %v2354, %v2366
  %v2369 = vadd.f32 %v2355, %v2366
  %v2370 = vadd.f32 %v2356, %v2366
  %v2371 = vadd.f32 %v2357, %v2366
  %v2372 = vadd.f32 %v2358, %v2366
  %v2373 = vadd.f32 %v2359, %v2366
  %v2374 = vadd.f32 %v2360, %v2366
  %v2375 = vadd.f32 %v2361, %v2366
  %v2376 = vmax.f32 %v2368, 0.0
  %v2377 = vmax.f32 %v2369, 0.0
  %v2378 = vmax.f32 %v2370, 0.0
  %v2379 = vmax.f32 %v2371, 0.0
  %v2380 = vmax.f32 %v2372, 0.0
  %v2381 = vmax.f32 %v2373, 0.0
  %v2382 = vmax.f32 %v2374, 0.0
  %v2383 = vmax.f32 %v2375, 0.0
  %v2384 = vld [vmem:[%s14] sm:$0x3]
  %v2386 = vsel %vm169, %v2384, 0
  %2388 = vmatprep.subr.mxu0 0.0
  %2389 = vmatpush1.msra.mxu0 0.0
  %2390 = vmatprep.subr.mxu0 0.0
  %2391 = vmatpush1.msra.mxu0 0.0
  %2392 = vmatprep.subr.mxu0 0.0
  %2393 = vmatpush1.msra.mxu0 0.0
  %2394 = vmatprep.subr.mxu0 0.0
  %2395 = vmatpush1.msra.mxu0 0.0
  %2396 = vmatprep.subr.mxu0 0.0
  %2397 = vmatpush1.msra.mxu0 0.0
  %2398 = vmatprep.subr.mxu0 0.0
  %2399 = vmatpush1.msra.mxu0 0.0
  %2400 = vmatprep.subr.mxu0 0.0
  %2401 = vmatpush1.msra.mxu0 0.0
  %2402 = vmatprep.subr.mxu0 0.0
  %2403 = vmatpush1.msra.mxu0 0.0
  %2404 = vmatprep.subr.mxu0 0.0
  %2405 = vmatpush1.msra.mxu0 %v2383
  %2406 = vmatprep.subr.mxu0 0.0
  %2407 = vmatpush1.msra.mxu0 %v2382
  %2408 = vmatprep.subr.mxu0 0.0
  %2409 = vmatpush1.msra.mxu0 %v2381
  %2410 = vmatprep.subr.mxu0 0.0
  %2411 = vmatpush1.msra.mxu0 %v2380
  %2412 = vmatprep.subr.mxu0 0.0
  %2413 = vmatpush1.msra.mxu0 %v2379
  %2414 = vmatprep.subr.mxu0 0.0
  %2415 = vmatpush1.msra.mxu0 %v2378
  %2416 = vmatprep.subr.mxu0 0.0
  %2417 = vmatpush1.msra.mxu0 %v2377
  %2418 = vmatprep.subr.mxu0 0.0
  %2419 = vmatpush1.msra.mxu0 %v2376
  %2420 = vmatprep.subr.mxu0 0.0
  %2421 = vmatpush2.msra.mxu0 0.0
  %2422 = vmatprep.subr.mxu0 0.0
  %2423 = vmatpush2.msra.mxu0 0.0
  %2424 = vmatprep.subr.mxu0 0.0
  %2425 = vmatpush2.msra.mxu0 0.0
  %2426 = vmatprep.subr.mxu0 0.0
  %2427 = vmatpush2.msra.mxu0 0.0
  %2428 = vmatprep.subr.mxu0 0.0
  %2429 = vmatpush2.msra.mxu0 0.0
  %2430 = vmatprep.subr.mxu0 0.0
  %2431 = vmatpush2.msra.mxu0 0.0
  %2432 = vmatprep.subr.mxu0 0.0
  %2433 = vmatpush2.msra.mxu0 0.0
  %2434 = vmatprep.subr.mxu0 0.0
  %2435 = vmatpush2.msra.mxu0 0.0
  %2436 = vmatprep.subr.mxu0 0.0
  %2437 = vmatpush2.msra.mxu0 0.0
  %2438 = vmatprep.subr.mxu0 0.0
  %2439 = vmatpush2.msra.mxu0 0.0
  %2440 = vmatprep.subr.mxu0 0.0
  %2441 = vmatpush2.msra.mxu0 0.0
  %2442 = vmatprep.subr.mxu0 0.0
  %2443 = vmatpush2.msra.mxu0 0.0
  %2444 = vmatprep.subr.mxu0 0.0
  %2445 = vmatpush2.msra.mxu0 0.0
  %2446 = vmatprep.subr.mxu0 0.0
  %2447 = vmatpush2.msra.mxu0 0.0
  %2448 = vmatprep.subr.mxu0 0.0
  %2449 = vmatpush2.msra.mxu0 0.0
  %2450 = vmatprep.subr.mxu0 0.0
  %2451 = vmatpush2.msra.mxu0 0.0
  %2452 = vmatprep.mubr.f32.mxu0 0.0
  %2453 = vmatmul.mubr.f32.gmra.mxu0 %v2386
  %v2454 = vpop.f32.mrf.mxu0
  %v2455 = vadd.f32 0.0, %v2454
  %v2456 = vpop.f32.mrf.mxu0
  %2457 = vdwg.mxu0
  %v2458 = vld [vmem:[%s15] sm:$0xff]
  %v2459 = vld [vmem:[%s15 + $0x8] sm:$0xff]
  %v2460 = vld [vmem:[%s15 + $0x10] sm:$0xff]
  %v2461 = vld [vmem:[%s15 + $0x18] sm:$0xff]
  %v2462 = vld [vmem:[%s15 + $0x20] sm:$0xff]
  %v2463 = vld [vmem:[%s15 + $0x28] sm:$0xff]
  %v2464 = vld [vmem:[%s15 + $0x30] sm:$0xff]
  %v2465 = vld [vmem:[%s15 + $0x38] sm:$0xff]
  %v2466 = vld [vmem:[%s15 + $0x40] sm:$0xff]
  %v2467 = vld [vmem:[%s15 + $0x48] sm:$0xff]
  %v2468 = vld [vmem:[%s15 + $0x50] sm:$0xff]
  %v2469 = vld [vmem:[%s15 + $0x58] sm:$0xff]
  %v2470 = vld [vmem:[%s15 + $0x60] sm:$0xff]
  %v2471 = vld [vmem:[%s15 + $0x68] sm:$0xff]
  %v2472 = vld [vmem:[%s15 + $0x70] sm:$0xff]
  %v2473 = vld [vmem:[%s15 + $0x78] sm:$0xff]
  %v2474 = vld [vmem:[%s16] sm:$0x1]
  %v2476 = vlaneseq
  %v2477 = vshrl.u32 %v2476, 7
  %v2478 = vsub.s32 0, %v2477
  %v2479 = vrot.slane %v2474, %v2478
  %2481 = vmatprep.subr.mxu0 0.0
  %2482 = vmatpush1.msra.mxu0 %v2473
  %2483 = vmatprep.subr.mxu0 0.0
  %2484 = vmatpush1.msra.mxu0 %v2472
  %2485 = vmatprep.subr.mxu0 0.0
  %2486 = vmatpush1.msra.mxu0 %v2471
  %2487 = vmatprep.subr.mxu0 0.0
  %2488 = vmatpush1.msra.mxu0 %v2470
  %2489 = vmatprep.subr.mxu0 0.0
  %2490 = vmatpush1.msra.mxu0 %v2469
  %2491 = vmatprep.subr.mxu0 0.0
  %2492 = vmatpush1.msra.mxu0 %v2468
  %2493 = vmatprep.subr.mxu0 0.0
  %2494 = vmatpush1.msra.mxu0 %v2467
  %2495 = vmatprep.subr.mxu0 0.0
  %2496 = vmatpush1.msra.mxu0 %v2466
  %2497 = vmatprep.subr.mxu0 0.0
  %2498 = vmatpush1.msra.mxu0 %v2465
  %2499 = vmatprep.subr.mxu0 0.0
  %2500 = vmatpush1.msra.mxu0 %v2464
  %2501 = vmatprep.subr.mxu0 0.0
  %2502 = vmatpush1.msra.mxu0 %v2463
  %2503 = vmatprep.subr.mxu0 0.0
  %2504 = vmatpush1.msra.mxu0 %v2462
  %2505 = vmatprep.subr.mxu0 0.0
  %2506 = vmatpush1.msra.mxu0 %v2461
  %2507 = vmatprep.subr.mxu0 0.0
  %2508 = vmatpush1.msra.mxu0 %v2460
  %2509 = vmatprep.subr.mxu0 0.0
  %2510 = vmatpush1.msra.mxu0 %v2459
  %2511 = vmatprep.subr.mxu0 0.0
  %2512 = vmatpush1.msra.mxu0 %v2458
  %2513 = vmatprep.subr.mxu0 0.0
  %2514 = vmatpush2.msra.mxu0 0.0
  %2515 = vmatprep.subr.mxu0 0.0
  %2516 = vmatpush2.msra.mxu0 0.0
  %2517 = vmatprep.subr.mxu0 0.0
  %2518 = vmatpush2.msra.mxu0 0.0
  %2519 = vmatprep.subr.mxu0 0.0
  %2520 = vmatpush2.msra.mxu0 0.0
  %2521 = vmatprep.subr.mxu0 0.0
  %2522 = vmatpush2.msra.mxu0 0.0
  %2523 = vmatprep.subr.mxu0 0.0
  %2524 = vmatpush2.msra.mxu0 0.0
  %2525 = vmatprep.subr.mxu0 0.0
  %2526 = vmatpush2.msra.mxu0 0.0
  %2527 = vmatprep.subr.mxu0 0.0
  %2528 = vmatpush2.msra.mxu0 0.0
  %2529 = vmatprep.subr.mxu0 0.0
  %2530 = vmatpush2.msra.mxu0 0.0
  %2531 = vmatprep.subr.mxu0 0.0
  %2532 = vmatpush2.msra.mxu0 0.0
  %2533 = vmatprep.subr.mxu0 0.0
  %2534 = vmatpush2.msra.mxu0 0.0
  %2535 = vmatprep.subr.mxu0 0.0
  %2536 = vmatpush2.msra.mxu0 0.0
  %2537 = vmatprep.subr.mxu0 0.0
  %2538 = vmatpush2.msra.mxu0 0.0
  %2539 = vmatprep.subr.mxu0 0.0
  %2540 = vmatpush2.msra.mxu0 0.0
  %2541 = vmatprep.subr.mxu0 0.0
  %2542 = vmatpush2.msra.mxu0 0.0
  %2543 = vmatprep.subr.mxu0 0.0
  %2544 = vmatpush2.msra.mxu0 0.0
  %2545 = vmatprep.mubr.f32.mxu0 0.0
  %2546 = vmatmul.mubr.f32.gmra.mxu0 %v2455
  %v2547 = vpop.f32.mrf.mxu0
  %v2548 = vadd.f32 %v2479, %v2547
  %v2549 = vpop.f32.mrf.mxu0
  %2550 = vdwg.mxu0
  %v2551 = vmax.f32 %v2548, 0.0
  %v2552 = vld [vmem:[%s17] sm:$0xff]
  %v2553 = vld [vmem:[%s17 + $0x8] sm:$0xff]
  %v2554 = vld [vmem:[%s17 + $0x10] sm:$0xff]
  %v2555 = vld [vmem:[%s17 + $0x18] sm:$0xff]
  %v2556 = vld [vmem:[%s17 + $0x20] sm:$0xff]
  %v2557 = vld [vmem:[%s17 + $0x28] sm:$0xff]
  %v2558 = vld [vmem:[%s17 + $0x30] sm:$0xff]
  %v2559 = vld [vmem:[%s17 + $0x38] sm:$0xff]
  %v2560 = vld [vmem:[#allocation2] sm:$0x1]
  %v2562 = vlaneseq
  %v2563 = vshrl.u32 %v2562, 7
  %v2564 = vsub.s32 0, %v2563
  %v2565 = vrot.slane %v2560, %v2564
  %v2568 = vsel %vm169, %v2551, 0
  %2570 = vmatprep.subr.mxu0 0.0
  %2571 = vmatpush1.msra.mxu0 0.0
  %2572 = vmatprep.subr.mxu0 0.0
  %2573 = vmatpush1.msra.mxu0 0.0
  %2574 = vmatprep.subr.mxu0 0.0
  %2575 = vmatpush1.msra.mxu0 0.0
  %2576 = vmatprep.subr.mxu0 0.0
  %2577 = vmatpush1.msra.mxu0 0.0
  %2578 = vmatprep.subr.mxu0 0.0
  %2579 = vmatpush1.msra.mxu0 0.0
  %2580 = vmatprep.subr.mxu0 0.0
  %2581 = vmatpush1.msra.mxu0 0.0
  %2582 = vmatprep.subr.mxu0 0.0
  %2583 = vmatpush1.msra.mxu0 0.0
  %2584 = vmatprep.subr.mxu0 0.0
  %2585 = vmatpush1.msra.mxu0 0.0
  %2586 = vmatprep.subr.mxu0 0.0
  %2587 = vmatpush1.msra.mxu0 %v2559
  %2588 = vmatprep.subr.mxu0 0.0
  %2589 = vmatpush1.msra.mxu0 %v2558
  %2590 = vmatprep.subr.mxu0 0.0
  %2591 = vmatpush1.msra.mxu0 %v2557
  %2592 = vmatprep.subr.mxu0 0.0
  %2593 = vmatpush1.msra.mxu0 %v2556
  %2594 = vmatprep.subr.mxu0 0.0
  %2595 = vmatpush1.msra.mxu0 %v2555
  %2596 = vmatprep.subr.mxu0 0.0
  %2597 = vmatpush1.msra.mxu0 %v2554
  %2598 = vmatprep.subr.mxu0 0.0
  %2599 = vmatpush1.msra.mxu0 %v2553
  %2600 = vmatprep.subr.mxu0 0.0
  %2601 = vmatpush1.msra.mxu0 %v2552
  %2602 = vmatprep.subr.mxu0 0.0
  %2603 = vmatpush2.msra.mxu0 0.0
  %2604 = vmatprep.subr.mxu0 0.0
  %2605 = vmatpush2.msra.mxu0 0.0
  %2606 = vmatprep.subr.mxu0 0.0
  %2607 = vmatpush2.msra.mxu0 0.0
  %2608 = vmatprep.subr.mxu0 0.0
  %2609 = vmatpush2.msra.mxu0 0.0
  %2610 = vmatprep.subr.mxu0 0.0
  %2611 = vmatpush2.msra.mxu0 0.0
  %2612 = vmatprep.subr.mxu0 0.0
  %2613 = vmatpush2.msra.mxu0 0.0
  %2614 = vmatprep.subr.mxu0 0.0
  %2615 = vmatpush2.msra.mxu0 0.0
  %2616 = vmatprep.subr.mxu0 0.0
  %2617 = vmatpush2.msra.mxu0 0.0
  %2618 = vmatprep.subr.mxu0 0.0
  %2619 = vmatpush2.msra.mxu0 0.0
  %2620 = vmatprep.subr.mxu0 0.0
  %2621 = vmatpush2.msra.mxu0 0.0
  %2622 = vmatprep.subr.mxu0 0.0
  %2623 = vmatpush2.msra.mxu0 0.0
  %2624 = vmatprep.subr.mxu0 0.0
  %2625 = vmatpush2.msra.mxu0 0.0
  %2626 = vmatprep.subr.mxu0 0.0
  %2627 = vmatpush2.msra.mxu0 0.0
  %2628 = vmatprep.subr.mxu0 0.0
  %2629 = vmatpush2.msra.mxu0 0.0
  %2630 = vmatprep.subr.mxu0 0.0
  %2631 = vmatpush2.msra.mxu0 0.0
  %2632 = vmatprep.subr.mxu0 0.0
  %2633 = vmatpush2.msra.mxu0 0.0
  %2634 = vmatprep.mubr.f32.mxu0 0.0
  %2635 = vmatmul.mubr.f32.gmra.mxu0 %v2568
  %v2636 = vpop.f32.mrf.mxu0
  %v2637 = vadd.f32 %v2565, %v2636
  %v2638 = vpop.f32.mrf.mxu0
  %2639 = vdwg.mxu0
  %v2640 = vxor.u32 %v2637, 2147483648
  %v2641 = vmul.f32 %v2640, 1.442695
  %v2642 = vpow.pop %v2641
  %v2643 = vadd.f32 %v2642, 1.0
  %v2644 = vrcp.pop %v2643
  %v2645 = vmul.f32 1.0, %v2644
  %vm2646 = vcmask 1024
  %2647 = vst.msk [vmem:[%s19] sm:$0x3] %vm2646, %v2645
  // Predicated region
  $region78: #{memory_efficient_gnn_forward.1} parent=0 // pred_check
    _
  $region79: #{memory_efficient_gnn_forward.1} parent=0 // pred_check_branch
    %2649 = sbr.rel (0) target = $region81
  $region80: #{memory_efficient_gnn_forward.1} parent=0 // pred_region
    _
  $region81: #{memory_efficient_gnn_forward.1} parent=0 // pred_fallthru
    _
  // Predicated region
  $region82: #{memory_efficient_gnn_forward.1} parent=0 // pred_check
    _
  $region83: #{memory_efficient_gnn_forward.1} parent=0 // pred_check_branch
    %2651 = sbr.rel (0) target = $region85
  $region84: #{memory_efficient_gnn_forward.1} parent=0 // pred_region
    _
  $region85: #{memory_efficient_gnn_forward.1} parent=0 // pred_fallthru
    _

</llo_original>
